<compile_context>
chip_gen: v6e
topology: v6e:2x2x1
jax: 0.10.0
libtpu: 0.0.40
codegen_flags: <defaults>
</compile_context>

<pallas_src>
import jax
import jax.numpy as jnp
from jax.experimental import pallas as pl
from jax.experimental.pallas import tpu as pltpu

IMG_SIZE = 28
IN_DIM = IMG_SIZE * IMG_SIZE          # 784
IN_PAD = 896                          # 7 * 128 (lane multiple); do NOT pad K to 1024
H1 = 1024
H2 = 256
OUT_DIM = 10
OUT_PAD = 128                         # lane-dense output tile
MAX_TB = 1024                         # max batch tile (rows)
NEG = -1e30                           # finite "-inf" encoded in padded b3 lanes


def _round_up(x, m):
    return (x + m - 1) // m * m


def _choose_tb(batch):
    """Pick the batch tile.

    - capped at MAX_TB=1024 (big tiles amortize per-step overhead; footprint
      ~18-20 MiB, fits under the explicit 32 MiB VMEM limit on v5e/v6e/v7x)
    - for batch > 32, cap at ceil(batch/2) so grid >= 2 and both v7x cores work
    - always a multiple of 16 rows (clean bf16 sublane packing)
    """
    if batch <= 32:
        return _round_up(batch, 16)
    return min(MAX_TB, _round_up(pl.cdiv(batch, 2), 16))


def _mlp_kernel(x_ref, w1_ref, b1_ref, w2_ref, b2_ref, w3_ref, b3_ref, o_ref):
    """One batch tile, fully fused in VMEM.

    x_ref : (TB, 896)   bf16    w1_ref: (896, 1024) bf16   b1_ref: (1, 1024) f32
    w2_ref: (1024, 256) bf16    b2_ref: (1, 256)  f32
    w3_ref: (256, 128)  bf16    b3_ref: (1, 128)  f32  (lanes >= 10 hold -1e30)
    o_ref : (TB, 128)   f32  -- log_softmax over the first 10 lanes
    """
    x = x_ref[...]

    # layer 1 + ReLU  (bf16 MXU matmul, f32 accumulate; elementwise in f32)
    h1 = jnp.dot(x, w1_ref[...], preferred_element_type=jnp.float32) + b1_ref[...]
    h1 = jnp.maximum(h1, 0.0).astype(jnp.bfloat16)

    # layer 2 + ReLU
    h2 = jnp.dot(h1, w2_ref[...], preferred_element_type=jnp.float32) + b2_ref[...]
    h2 = jnp.maximum(h2, 0.0).astype(jnp.bfloat16)

    # layer 3 (logits): padded lanes are masked by the -1e30 baked into b3
    # (their W3 columns are zero), so no iota/select epilogue is needed.
    logits = jnp.dot(h2, w3_ref[...], preferred_element_type=jnp.float32) + b3_ref[...]

    # numerically-stable log_softmax along dim=1 (f32)
    m = jnp.max(logits, axis=-1, keepdims=True)
    shifted = logits - m
    lse = jnp.log(jnp.sum(jnp.exp(shifted), axis=-1, keepdims=True))
    o_ref[...] = shifted - lse


def prepare_params(w1, b1, w2, b2, w3, b3):
    """Pad + cast (in, out)-layout weights for the kernel.

    Weights -> bf16 (MXU inputs); biases -> f32 rows.  W1 zero-padded along its
    input dim 784 -> 896; W3 zero-padded / b3 NEG-padded along output 10 -> 128.
    """
    w1p = jnp.zeros((IN_PAD, H1), jnp.bfloat16).at[:IN_DIM, :].set(
        w1.astype(jnp.bfloat16))
    w2p = w2.astype(jnp.bfloat16)
    w3p = jnp.zeros((H2, OUT_PAD), jnp.bfloat16).at[:, :OUT_DIM].set(
        w3.astype(jnp.bfloat16))
    b1p = b1.reshape(1, H1).astype(jnp.float32)
    b2p = b2.reshape(1, H2).astype(jnp.float32)
    b3p = jnp.full((1, OUT_PAD), NEG, jnp.float32).at[:, :OUT_DIM].set(
        b3.reshape(1, OUT_DIM).astype(jnp.float32))
    return w1p, b1p, w2p, b2p, w3p, b3p


@jax.jit
def mlp_forward(x, w1p, b1p, w2p, b2p, w3p, b3p):
    """x: any shape whose rows flatten to 784 (same as PyTorch x.view(-1, 784))."""
    x2d = x.reshape(-1, IN_DIM)
    batch = x2d.shape[0]

    tb = _choose_tb(batch)
    padded_batch = _round_up(batch, tb)
    grid = (padded_batch // tb,)

    # single fused pad: batch rows up to padded_batch, lanes 784 -> 896, bf16 cast
    x_pad = jnp.pad(x2d.astype(jnp.bfloat16),
                    ((0, padded_batch - batch), (0, IN_PAD - IN_DIM)))

    # weights/biases: constant index_map => keep resident in VMEM with a single
    # buffer (default double-buffering would waste ~2.3 MiB for data never refetched)
    resident = lambda shape: pl.BlockSpec(
        shape, lambda i: (0, 0), pipeline_mode=pl.Buffered(1))

    flops = 2 * padded_batch * (IN_PAD * H1 + H1 * H2 + H2 * OUT_PAD)
    bytes_accessed = (
        padded_batch * IN_PAD * 2                         # bf16 input tiles
        + (IN_PAD * H1 + H1 * H2 + H2 * OUT_PAD) * 2      # bf16 weights
        + (H1 + H2 + OUT_PAD) * 4                         # f32 biases
        + padded_batch * OUT_PAD * 4                      # f32 output
    )

    out = pl.pallas_call(
        _mlp_kernel,
        out_shape=jax.ShapeDtypeStruct((padded_batch, OUT_PAD), jnp.float32),
        grid=grid,
        in_specs=[
            pl.BlockSpec((tb, IN_PAD), lambda i: (i, 0)),   # x: tiled over batch
            resident((IN_PAD, H1)),
            resident((1, H1)),
            resident((H1, H2)),
            resident((1, H2)),
            resident((H2, OUT_PAD)),
            resident((1, OUT_PAD)),
        ],
        out_specs=pl.BlockSpec((tb, OUT_PAD), lambda i: (i, 0)),
        compiler_params=pltpu.CompilerParams(
            dimension_semantics=("parallel",),
            # big-tile footprint (~18-20 MiB) exceeds v5e's 16 MiB default scoped
            # VMEM; 32 MiB is safe on v5e/v6e (128 MiB phys) and v7x (64 MiB phys)
            vmem_limit_bytes=32 * 1024 * 1024),
        cost_estimate=pl.CostEstimate(
            flops=flops,
            transcendentals=padded_batch * OUT_PAD,
            bytes_accessed=bytes_accessed),
    )(x_pad, w1p, b1p, w2p, b2p, w3p, b3p)

    # TODO(synk): downstream consumers could take the padded (padded_batch, 128)
    # buffer directly (or a bf16 store) to avoid this extra slice pass over HBM.
    return out[:batch, :OUT_DIM]


def init_params(key):
    """Deterministic init mimicking PyTorch nn.Linear default (U[-1/sqrt(fan_in), +])."""
    ks = jax.random.split(key, 6)

    def linear(kw, kb, fan_in, fan_out):
        bound = 1.0 / (fan_in ** 0.5)
        w = jax.random.uniform(kw, (fan_in, fan_out), jnp.float32, -bound, bound)
        b = jax.random.uniform(kb, (fan_out,), jnp.float32, -bound, bound)
        return w, b

    w1, b1 = linear(ks[0], ks[1], IN_DIM, H1)
    w2, b2 = linear(ks[2], ks[3], H1, H2)
    w3, b3 = linear(ks[4], ks[5], H2, OUT_DIM)
    return w1, b1, w2, b2, w3, b3


def _reference(x, params):
    """Pure-JAX reference using the same bf16 weights / f32 accumulation."""
    w1p, b1p, w2p, b2p, w3p, b3p = params
    x2d = x.reshape(-1, IN_DIM).astype(jnp.bfloat16)
    x_pad = jnp.pad(x2d, ((0, 0), (0, IN_PAD - IN_DIM)))
    h1 = jnp.maximum(
        jnp.dot(x_pad, w1p, preferred_element_type=jnp.float32) + b1p, 0.0)
    h2 = jnp.maximum(
        jnp.dot(h1.astype(jnp.bfloat16), w2p, preferred_element_type=jnp.float32)
        + b2p, 0.0)
    logits = (jnp.dot(h2.astype(jnp.bfloat16), w3p,
                      preferred_element_type=jnp.float32) + b3p)[:, :OUT_DIM]
    return jax.nn.log_softmax(logits, axis=-1)


if __name__ == "__main__":
    key = jax.random.PRNGKey(0)
    k_params, k_x = jax.random.split(key)

    w1, b1, w2, b2, w3, b3 = init_params(k_params)
    params = prepare_params(w1, b1, w2, b2, w3, b3)

    # Small MNIST-like batch: (B, C, H, W) = (8, 1, 28, 28), NCHW like PyTorch.
    x = jax.random.normal(k_x, (8, 1, IMG_SIZE, IMG_SIZE), jnp.float32)

    out = mlp_forward(x, *params)
    out = jax.block_until_ready(out)

    # sanity: shape, rows sum (in prob space) to ~1, matches pure-JAX reference
    assert out.shape == (8, OUT_DIM), out.shape
    row_sums = jnp.exp(out).sum(axis=1)
    assert jnp.allclose(row_sums, 1.0, atol=1e-4), row_sums
    ref = _reference(x, params)
    assert jnp.allclose(out, ref, atol=3e-2, rtol=3e-2), float(
        jnp.max(jnp.abs(out - ref)))

    print("KERNEL_OK")
</pallas_src>

<mosaic_0001>
module attributes {stable_mosaic.version = 11 : i64} {
  func.func @_mlp_kernel(%arg0: i32, %arg1: memref<16x896xbf16, #tpu.memory_space<vmem>>, %arg2: memref<896x1024xbf16, #tpu.memory_space<vmem>>, %arg3: memref<1x1024xf32, #tpu.memory_space<vmem>>, %arg4: memref<1024x256xbf16, #tpu.memory_space<vmem>>, %arg5: memref<1x256xf32, #tpu.memory_space<vmem>>, %arg6: memref<256x128xbf16, #tpu.memory_space<vmem>>, %arg7: memref<1x128xf32, #tpu.memory_space<vmem>>, %arg8: memref<16x128xf32, #tpu.memory_space<vmem>>) attributes {dimension_semantics = [#tpu.dimension_semantics<parallel>], iteration_bounds = array<i64: 1>, scalar_prefetch = 0 : i64, scratch_operands = 0 : i64, tpu.core_type = #tpu.core_type<tc>, window_params = [{transform_indices = @transform_0, window_bounds = array<i64: 16, 896>}, {pipeline_mode = #tpu.pipeline_mode<synchronous>, transform_indices = @transform_1, window_bounds = array<i64: 896, 1024>}, {pipeline_mode = #tpu.pipeline_mode<synchronous>, transform_indices = @transform_2, window_bounds = array<i64: 1, 1024>}, {pipeline_mode = #tpu.pipeline_mode<synchronous>, transform_indices = @transform_3, window_bounds = array<i64: 1024, 256>}, {pipeline_mode = #tpu.pipeline_mode<synchronous>, transform_indices = @transform_4, window_bounds = array<i64: 1, 256>}, {pipeline_mode = #tpu.pipeline_mode<synchronous>, transform_indices = @transform_5, window_bounds = array<i64: 256, 128>}, {pipeline_mode = #tpu.pipeline_mode<synchronous>, transform_indices = @transform_6, window_bounds = array<i64: 1, 128>}, {transform_indices = @transform_7, window_bounds = array<i64: 16, 128>}]} {
    %c0 = arith.constant 0 : index
    %c0_0 = arith.constant 0 : index
    %0 = vector.load %arg1[%c0, %c0_0] : memref<16x896xbf16, #tpu.memory_space<vmem>>, vector<16x896xbf16>
    %c0_1 = arith.constant 0 : index
    %c0_2 = arith.constant 0 : index
    %1 = vector.load %arg2[%c0_1, %c0_2] : memref<896x1024xbf16, #tpu.memory_space<vmem>>, vector<896x1024xbf16>
    %cst = arith.constant dense<0.000000e+00> : vector<16x1024xf32>
    %2 = tpu.matmul %0, %1, %cst {dimension_numbers = #tpu.dot_dimension_numbers<[1], [0], [0], [1], [0, 0, 1, 1], [], []>} : vector<16x896xbf16>, vector<896x1024xbf16>, vector<16x1024xf32> -> vector<16x1024xf32>
    %c0_3 = arith.constant 0 : index
    %c0_4 = arith.constant 0 : index
    %3 = vector.load %arg3[%c0_3, %c0_4] : memref<1x1024xf32, #tpu.memory_space<vmem>>, vector<1x1024xf32>
    %4 = vector.broadcast %3 : vector<1x1024xf32> to vector<16x1024xf32>
    %5 = arith.addf %2, %4 : vector<16x1024xf32>
    %cst_5 = arith.constant 0.000000e+00 : f32
    %6 = vector.broadcast %cst_5 : f32 to vector<16x1024xf32>
    %7 = arith.maximumf %5, %6 : vector<16x1024xf32>
    %8 = arith.truncf %7 : vector<16x1024xf32> to vector<16x1024xbf16>
    %c0_6 = arith.constant 0 : index
    %c0_7 = arith.constant 0 : index
    %9 = vector.load %arg4[%c0_6, %c0_7] : memref<1024x256xbf16, #tpu.memory_space<vmem>>, vector<1024x256xbf16>
    %cst_8 = arith.constant dense<0.000000e+00> : vector<16x256xf32>
    %10 = tpu.matmul %8, %9, %cst_8 {dimension_numbers = #tpu.dot_dimension_numbers<[1], [0], [0], [1], [0, 0, 1, 1], [], []>} : vector<16x1024xbf16>, vector<1024x256xbf16>, vector<16x256xf32> -> vector<16x256xf32>
    %c0_9 = arith.constant 0 : index
    %c0_10 = arith.constant 0 : index
    %11 = vector.load %arg5[%c0_9, %c0_10] : memref<1x256xf32, #tpu.memory_space<vmem>>, vector<1x256xf32>
    %12 = vector.broadcast %11 : vector<1x256xf32> to vector<16x256xf32>
    %13 = arith.addf %10, %12 : vector<16x256xf32>
    %cst_11 = arith.constant 0.000000e+00 : f32
    %14 = vector.broadcast %cst_11 : f32 to vector<16x256xf32>
    %15 = arith.maximumf %13, %14 : vector<16x256xf32>
    %16 = arith.truncf %15 : vector<16x256xf32> to vector<16x256xbf16>
    %c0_12 = arith.constant 0 : index
    %c0_13 = arith.constant 0 : index
    %17 = vector.load %arg6[%c0_12, %c0_13] : memref<256x128xbf16, #tpu.memory_space<vmem>>, vector<256x128xbf16>
    %cst_14 = arith.constant dense<0.000000e+00> : vector<16x128xf32>
    %18 = tpu.matmul %16, %17, %cst_14 {dimension_numbers = #tpu.dot_dimension_numbers<[1], [0], [0], [1], [0, 0, 1, 1], [], []>} : vector<16x256xbf16>, vector<256x128xbf16>, vector<16x128xf32> -> vector<16x128xf32>
    %c0_15 = arith.constant 0 : index
    %c0_16 = arith.constant 0 : index
    %19 = vector.load %arg7[%c0_15, %c0_16] : memref<1x128xf32, #tpu.memory_space<vmem>>, vector<1x128xf32>
    %20 = vector.broadcast %19 : vector<1x128xf32> to vector<16x128xf32>
    %21 = arith.addf %18, %20 : vector<16x128xf32>
    %cst_17 = arith.constant dense<0xFF800000> : vector<16xf32>
    %22 = vector.multi_reduction <maximumf>, %21, %cst_17 [1] : vector<16x128xf32> to vector<16xf32>
    %23 = vector.shape_cast %22 : vector<16xf32> to vector<16x1xf32>
    %24 = vector.broadcast %23 : vector<16x1xf32> to vector<16x128xf32>
    %25 = arith.subf %21, %24 : vector<16x128xf32>
    %26 = math.exp %25 : vector<16x128xf32>
    %cst_18 = arith.constant dense<0.000000e+00> : vector<16xf32>
    %27 = vector.multi_reduction <add>, %26, %cst_18 [1] : vector<16x128xf32> to vector<16xf32>
    %28 = vector.shape_cast %27 : vector<16xf32> to vector<16x1xf32>
    %29 = math.log %28 : vector<16x1xf32>
    %30 = vector.broadcast %29 : vector<16x1xf32> to vector<16x128xf32>
    %31 = arith.subf %25, %30 : vector<16x128xf32>
    %c0_19 = arith.constant 0 : index
    %c0_20 = arith.constant 0 : index
    %32 = vector.load %arg8[%c0_19, %c0_20] : memref<16x128xf32, #tpu.memory_space<vmem>>, vector<16x128xf32>
    tpu.vector_store %arg8[%c0_19, %c0_20], %31 {strides = array<i32>} : memref<16x128xf32, #tpu.memory_space<vmem>>, vector<16x128xf32>,
    return
  }
  func.func @transform_0(%arg0: i32) -> (i32, i32) {
    %c0_i32 = arith.constant 0 : i32
    %c0_i32_0 = arith.constant 0 : i32
    return %arg0, %c0_i32 : i32, i32
  }
  func.func @transform_1(%arg0: i32) -> (i32, i32) {
    %c0_i32 = arith.constant 0 : i32
    %c0_i32_0 = arith.constant 0 : i32
    %c0_i32_1 = arith.constant 0 : i32
    return %c0_i32, %c0_i32_0 : i32, i32
  }
  func.func @transform_2(%arg0: i32) -> (i32, i32) {
    %c0_i32 = arith.constant 0 : i32
    %c0_i32_0 = arith.constant 0 : i32
    %c0_i32_1 = arith.constant 0 : i32
    return %c0_i32, %c0_i32_0 : i32, i32
  }
  func.func @transform_3(%arg0: i32) -> (i32, i32) {
    %c0_i32 = arith.constant 0 : i32
    %c0_i32_0 = arith.constant 0 : i32
    %c0_i32_1 = arith.constant 0 : i32
    return %c0_i32, %c0_i32_0 : i32, i32
  }
  func.func @transform_4(%arg0: i32) -> (i32, i32) {
    %c0_i32 = arith.constant 0 : i32
    %c0_i32_0 = arith.constant 0 : i32
    %c0_i32_1 = arith.constant 0 : i32
    return %c0_i32, %c0_i32_0 : i32, i32
  }
  func.func @transform_5(%arg0: i32) -> (i32, i32) {
    %c0_i32 = arith.constant 0 : i32
    %c0_i32_0 = arith.constant 0 : i32
    %c0_i32_1 = arith.constant 0 : i32
    return %c0_i32, %c0_i32_0 : i32, i32
  }
  func.func @transform_6(%arg0: i32) -> (i32, i32) {
    %c0_i32 = arith.constant 0 : i32
    %c0_i32_0 = arith.constant 0 : i32
    %c0_i32_1 = arith.constant 0 : i32
    return %c0_i32, %c0_i32_0 : i32, i32
  }
  func.func @transform_7(%arg0: i32) -> (i32, i32) {
    %c0_i32 = arith.constant 0 : i32
    %c0_i32_0 = arith.constant 0 : i32
    return %arg0, %c0_i32 : i32, i32
  }
}

</mosaic_0001>

<llo_original>
// kernel: mlp_forward.1
$region0: #{mlp_forward.1}
  #allocation0 [shape = 'u32[]', space=smem, size = 0x4, offset = 0x4, fixed_abs, tag = 'smem constant byte address 0x4 - core index']
  #allocation1 [shape = 'u32[144,128]{1,0:T(1,128)}', space=vmem, size = 0x12000, scoped, tag = 'internal scratch']
  %s0 = inlined_call_operand.vmem [shape: bf16[16,896], index: 0, kind: input, shape index: {}]
  %s1 = inlined_call_operand.hbm [shape: bf16[896,1024], index: 1, kind: input, shape index: {}]
  %s2 = inlined_call_operand.hbm [shape: f32[1,1024], index: 2, kind: input, shape index: {}]
  %s3 = inlined_call_operand.hbm [shape: bf16[1024,256], index: 3, kind: input, shape index: {}]
  %s4 = inlined_call_operand.hbm [shape: f32[1,256], index: 4, kind: input, shape index: {}]
  %s5 = inlined_call_operand.hbm [shape: bf16[256,128], index: 5, kind: input, shape index: {}]
  %s6 = inlined_call_operand.hbm [shape: f32[1,128], index: 6, kind: input, shape index: {}]
  %s7 = inlined_call_operand.vmem [shape: f32[16,128], index: 7, kind: output, shape index: {}]
  %s8 = sld [smem:[#allocation0]]
  $region62: #{mlp_forward.1} parent=0
    _
  %s10 = ssub.s32 1, %s8
  %s11 = scalar_select 0, %s10, %s8
  $region1: #{mlp_forward.1} parent=0
    #allocation2 [shape = 'u8[1835008]{0}', space=vmem, size = 0x1c0000, scoped, tag = 'input window, operand 1, single buffered']
    #allocation3 [shape = 's32[1]{0}', space=sflag, size = 0x4, scoped, tag = 'scoped memory for mlp_forward.1']
    #allocation4 [shape = 'u8[4096]{0}', space=vmem, size = 0x1000, scoped, tag = 'input window, operand 2, single buffered']
    #allocation5 [shape = 's32[1]{0}', space=sflag, size = 0x4, scoped, tag = 'scoped memory for mlp_forward.1']
    #allocation6 [shape = 'u8[524288]{0}', space=vmem, size = 0x80000, scoped, tag = 'input window, operand 3, single buffered']
    #allocation7 [shape = 'u8[1024]{0}', space=vmem, size = 0x400, scoped, tag = 'input window, operand 4, single buffered']
    #allocation8 [shape = 's32[1]{0}', space=sflag, size = 0x4, scoped, tag = 'scoped memory for mlp_forward.1']
    #allocation9 [shape = 'u8[65536]{0}', space=vmem, size = 0x10000, scoped, tag = 'input window, operand 5, single buffered']
    #allocation10 [shape = 'u8[512]{0}', space=vmem, size = 0x400, scoped, tag = 'input window, operand 6, single buffered']
    #allocation11 [shape = 's32[1]{0}', space=sflag, size = 0x4, scoped, tag = 'scoped memory for mlp_forward.1']
    %12 = vsyncpa [#allocation3], 0
    %13 = vsyncpa [#allocation5], 0
    %14 = vsyncpa [#allocation8], 0
    %15 = vsyncpa [#allocation11], 0
    // Predicated region
    $region2: #{mlp_forward.1} parent=1 // pred_check
      _
    $region3: #{mlp_forward.1} parent=1 // pred_check_branch
      %17 = sbr.rel (0) target = $region5
    $region4: #{mlp_forward.1} parent=1 // pred_region
      _
    $region5: #{mlp_forward.1} parent=1 // pred_fallthru
      _
    // Predicated region
    $region6: #{mlp_forward.1} parent=1 // pred_check
      _
    $region7: #{mlp_forward.1} parent=1 // pred_check_branch
      %19 = sbr.rel (0) target = $region9
    $region8: #{mlp_forward.1} parent=1 // pred_region
      %s21 = ssub.s32 57344, 57344
      %22 = vsyncadd [#allocation3], %s21
      %s23 = sshll.u32 [#allocation2], 4
      %s24 = int_to_ptr.vmem [resolvable:$true] %s23
      %29 = dma.hbm_to_vmem [thread:$0]  %s1, 57344, %s24, [#allocation3], 512, 512, 32
    $region9: #{mlp_forward.1} parent=1 // pred_fallthru
      _
    // Predicated region
    $region10: #{mlp_forward.1} parent=1 // pred_check
      _
    $region11: #{mlp_forward.1} parent=1 // pred_check_branch
      %31 = sbr.rel (0) target = $region13
    $region12: #{mlp_forward.1} parent=1 // pred_region
      %s33 = ssub.s32 128, 128
      %34 = vsyncadd [#allocation5], %s33
      %s36 = sshll.u32 [#allocation4], 4
      %s37 = int_to_ptr.vmem [resolvable:$true] %s36
      %39 = dma.hbm_to_vmem [thread:$0]  %s2, 128, %s37, [#allocation5]
    $region13: #{mlp_forward.1} parent=1 // pred_fallthru
      _
    // Predicated region
    $region14: #{mlp_forward.1} parent=1 // pred_check
      _
    $region15: #{mlp_forward.1} parent=1 // pred_check_branch
      %41 = sbr.rel (0) target = $region17
    $region16: #{mlp_forward.1} parent=1 // pred_region
      %s43 = ssub.s32 16384, 16384
      %44 = vsyncadd [#allocation5], %s43
      %s45 = sshll.u32 [#allocation6], 4
      %s46 = int_to_ptr.vmem [resolvable:$true] %s45
      %51 = dma.hbm_to_vmem [thread:$0]  %s3, 16384, %s46, [#allocation5], 128, 128, 8
    $region17: #{mlp_forward.1} parent=1 // pred_fallthru
      _
    // Predicated region
    $region18: #{mlp_forward.1} parent=1 // pred_check
      _
    $region19: #{mlp_forward.1} parent=1 // pred_check_branch
      %53 = sbr.rel (0) target = $region21
    $region20: #{mlp_forward.1} parent=1 // pred_region
      %s55 = ssub.s32 32, 32
      %56 = vsyncadd [#allocation8], %s55
      %s58 = sshll.u32 [#allocation7], 4
      %s59 = int_to_ptr.vmem [resolvable:$true] %s58
      %61 = dma.hbm_to_vmem [thread:$0]  %s4, 32, %s59, [#allocation8]
    $region21: #{mlp_forward.1} parent=1 // pred_fallthru
      _
    // Predicated region
    $region22: #{mlp_forward.1} parent=1 // pred_check
      _
    $region23: #{mlp_forward.1} parent=1 // pred_check_branch
      %63 = sbr.rel (0) target = $region25
    $region24: #{mlp_forward.1} parent=1 // pred_region
      %s65 = ssub.s32 2048, 2048
      %66 = vsyncadd [#allocation8], %s65
      %s67 = sshll.u32 [#allocation9], 4
      %s68 = int_to_ptr.vmem [resolvable:$true] %s67
      %73 = dma.hbm_to_vmem [thread:$0]  %s5, 2048, %s68, [#allocation8], 64, 64, 4
    $region25: #{mlp_forward.1} parent=1 // pred_fallthru
      _
    // Predicated region
    $region26: #{mlp_forward.1} parent=1 // pred_check
      _
    $region27: #{mlp_forward.1} parent=1 // pred_check_branch
      %75 = sbr.rel (0) target = $region29
    $region28: #{mlp_forward.1} parent=1 // pred_region
      %s77 = ssub.s32 16, 16
      %78 = vsyncadd [#allocation11], %s77
      %s80 = sshll.u32 [#allocation10], 4
      %s81 = int_to_ptr.vmem [resolvable:$true] %s80
      %83 = dma.hbm_to_vmem [thread:$0]  %s6, 16, %s81, [#allocation11]
    $region29: #{mlp_forward.1} parent=1 // pred_fallthru
      _
    // Predicated region
    $region30: #{mlp_forward.1} parent=1 // pred_check
      _
    $region31: #{mlp_forward.1} parent=1 // pred_check_branch
      %85 = sbr.rel (0) target = $region33
    $region32: #{mlp_forward.1} parent=1 // pred_region
      %86 = dma.done [#allocation3], 57344
    $region33: #{mlp_forward.1} parent=1 // pred_fallthru
      _
    // Predicated region
    $region34: #{mlp_forward.1} parent=1 // pred_check
      _
    $region35: #{mlp_forward.1} parent=1 // pred_check_branch
      %88 = sbr.rel (0) target = $region37
    $region36: #{mlp_forward.1} parent=1 // pred_region
      %89 = dma.done [#allocation5], 128
    $region37: #{mlp_forward.1} parent=1 // pred_fallthru
      _
    // Predicated region
    $region38: #{mlp_forward.1} parent=1 // pred_check
      _
    $region39: #{mlp_forward.1} parent=1 // pred_check_branch
      %91 = sbr.rel (0) target = $region41
    $region40: #{mlp_forward.1} parent=1 // pred_region
      %92 = dma.done [#allocation5], 16384
    $region41: #{mlp_forward.1} parent=1 // pred_fallthru
      _
    // Predicated region
    $region42: #{mlp_forward.1} parent=1 // pred_check
      _
    $region43: #{mlp_forward.1} parent=1 // pred_check_branch
      %94 = sbr.rel (0) target = $region45
    $region44: #{mlp_forward.1} parent=1 // pred_region
      %95 = dma.done [#allocation8], 32
    $region45: #{mlp_forward.1} parent=1 // pred_fallthru
      _
    // Predicated region
    $region46: #{mlp_forward.1} parent=1 // pred_check
      _
    $region47: #{mlp_forward.1} parent=1 // pred_check_branch
      %97 = sbr.rel (0) target = $region49
    $region48: #{mlp_forward.1} parent=1 // pred_region
      %98 = dma.done [#allocation8], 2048
    $region49: #{mlp_forward.1} parent=1 // pred_fallthru
      _
    // Predicated region
    $region50: #{mlp_forward.1} parent=1 // pred_check
      _
    $region51: #{mlp_forward.1} parent=1 // pred_check_branch
      %100 = sbr.rel (0) target = $region53
    $region52: #{mlp_forward.1} parent=1 // pred_region
      %101 = dma.done [#allocation11], 16
    $region53: #{mlp_forward.1} parent=1 // pred_fallthru
      _
    %v103 = vld [vmem:[%s0] sm:$0xff]
    %v104 = vld [vmem:[%s0 + $0x8] sm:$0xff]
    %v105 = vld [vmem:[%s0 + $0x10] sm:$0xff]
    %v106 = vld [vmem:[%s0 + $0x18] sm:$0xf]
    %v107 = vld [vmem:[%s0 + $0x1c] sm:$0xff]
    %v108 = vld [vmem:[%s0 + $0x24] sm:$0xff]
    %v109 = vld [vmem:[%s0 + $0x2c] sm:$0xff]
    %v110 = vld [vmem:[%s0 + $0x34] sm:$0xf]
    %v111 = vld [vmem:[#allocation2] sm:$0xff]
    %v112 = vld [vmem:[#allocation2 + $0x8] sm:$0xff]
    %v113 = vld [vmem:[#allocation2 + $0x10] sm:$0xff]
    %v114 = vld [vmem:[#allocation2 + $0x18] sm:$0xff]
    %v115 = vld [vmem:[#allocation2 + $0x20] sm:$0xff]
    %v116 = vld [vmem:[#allocation2 + $0x28] sm:$0xff]
    %v117 = vld [vmem:[#allocation2 + $0x30] sm:$0xff]
    %v118 = vld [vmem:[#allocation2 + $0x38] sm:$0xff]
    %v119 = vld [vmem:[#allocation2 + $0x40] sm:$0xff]
    %v120 = vld [vmem:[#allocation2 + $0x48] sm:$0xff]
    %v121 = vld [vmem:[#allocation2 + $0x50] sm:$0xff]
    %v122 = vld [vmem:[#allocation2 + $0x58] sm:$0xff]
    %v123 = vld [vmem:[#allocation2 + $0x60] sm:$0xff]
    %v124 = vld [vmem:[#allocation2 + $0x68] sm:$0xff]
    %v125 = vld [vmem:[#allocation2 + $0x70] sm:$0xff]
    %v126 = vld [vmem:[#allocation2 + $0x78] sm:$0xff]
    %v127 = vld [vmem:[#allocation2 + $0x80] sm:$0xff]
    %v128 = vld [vmem:[#allocation2 + $0x88] sm:$0xff]
    %v129 = vld [vmem:[#allocation2 + $0x90] sm:$0xff]
    %v130 = vld [vmem:[#allocation2 + $0x98] sm:$0xff]
    %v131 = vld [vmem:[#allocation2 + $0xa0] sm:$0xff]
    %v132 = vld [vmem:[#allocation2 + $0xa8] sm:$0xff]
    %v133 = vld [vmem:[#allocation2 + $0xb0] sm:$0xff]
    %v134 = vld [vmem:[#allocation2 + $0xb8] sm:$0xff]
    %v135 = vld [vmem:[#allocation2 + $0xc0] sm:$0xff]
    %v136 = vld [vmem:[#allocation2 + $0xc8] sm:$0xff]
    %v137 = vld [vmem:[#allocation2 + $0xd0] sm:$0xff]
    %v138 = vld [vmem:[#allocation2 + $0xd8] sm:$0xff]
    %v139 = vld [vmem:[#allocation2 + $0xe0] sm:$0xff]
    %v140 = vld [vmem:[#allocation2 + $0xe8] sm:$0xff]
    %v141 = vld [vmem:[#allocation2 + $0xf0] sm:$0xff]
    %v142 = vld [vmem:[#allocation2 + $0xf8] sm:$0xff]
    %v143 = vld [vmem:[#allocation2 + $0x100] sm:$0xff]
    %v144 = vld [vmem:[#allocation2 + $0x108] sm:$0xff]
    %v145 = vld [vmem:[#allocation2 + $0x110] sm:$0xff]
    %v146 = vld [vmem:[#allocation2 + $0x118] sm:$0xff]
    %v147 = vld [vmem:[#allocation2 + $0x120] sm:$0xff]
    %v148 = vld [vmem:[#allocation2 + $0x128] sm:$0xff]
    %v149 = vld [vmem:[#allocation2 + $0x130] sm:$0xff]
    %v150 = vld [vmem:[#allocation2 + $0x138] sm:$0xff]
    %v151 = vld [vmem:[#allocation2 + $0x140] sm:$0xff]
    %v152 = vld [vmem:[#allocation2 + $0x148] sm:$0xff]
    %v153 = vld [vmem:[#allocation2 + $0x150] sm:$0xff]
    %v154 = vld [vmem:[#allocation2 + $0x158] sm:$0xff]
    %v155 = vld [vmem:[#allocation2 + $0x160] sm:$0xff]
    %v156 = vld [vmem:[#allocation2 + $0x168] sm:$0xff]
    %v157 = vld [vmem:[#allocation2 + $0x170] sm:$0xff]
    %v158 = vld [vmem:[#allocation2 + $0x178] sm:$0xff]
    %v159 = vld [vmem:[#allocation2 + $0x180] sm:$0xff]
    %v160 = vld [vmem:[#allocation2 + $0x188] sm:$0xff]
    %v161 = vld [vmem:[#allocation2 + $0x190] sm:$0xff]
    %v162 = vld [vmem:[#allocation2 + $0x198] sm:$0xff]
    %v163 = vld [vmem:[#allocation2 + $0x1a0] sm:$0xff]
    %v164 = vld [vmem:[#allocation2 + $0x1a8] sm:$0xff]
    %v165 = vld [vmem:[#allocation2 + $0x1b0] sm:$0xff]
    %v166 = vld [vmem:[#allocation2 + $0x1b8] sm:$0xff]
    %v167 = vld [vmem:[#allocation2 + $0x1c0] sm:$0xff]
    %v168 = vld [vmem:[#allocation2 + $0x1c8] sm:$0xff]
    %v169 = vld [vmem:[#allocation2 + $0x1d0] sm:$0xff]
    %v170 = vld [vmem:[#allocation2 + $0x1d8] sm:$0xff]
    %v171 = vld [vmem:[#allocation2 + $0x1e0] sm:$0xff]
    %v172 = vld [vmem:[#allocation2 + $0x1e8] sm:$0xff]
    %v173 = vld [vmem:[#allocation2 + $0x1f0] sm:$0xff]
    %v174 = vld [vmem:[#allocation2 + $0x1f8] sm:$0xff]
    %v175 = vld [vmem:[#allocation2 + $0x200] sm:$0xff]
    %v176 = vld [vmem:[#allocation2 + $0x208] sm:$0xff]
    %v177 = vld [vmem:[#allocation2 + $0x210] sm:$0xff]
    %v178 = vld [vmem:[#allocation2 + $0x218] sm:$0xff]
    %v179 = vld [vmem:[#allocation2 + $0x220] sm:$0xff]
    %v180 = vld [vmem:[#allocation2 + $0x228] sm:$0xff]
    %v181 = vld [vmem:[#allocation2 + $0x230] sm:$0xff]
    %v182 = vld [vmem:[#allocation2 + $0x238] sm:$0xff]
    %v183 = vld [vmem:[#allocation2 + $0x240] sm:$0xff]
    %v184 = vld [vmem:[#allocation2 + $0x248] sm:$0xff]
    %v185 = vld [vmem:[#allocation2 + $0x250] sm:$0xff]
    %v186 = vld [vmem:[#allocation2 + $0x258] sm:$0xff]
    %v187 = vld [vmem:[#allocation2 + $0x260] sm:$0xff]
    %v188 = vld [vmem:[#allocation2 + $0x268] sm:$0xff]
    %v189 = vld [vmem:[#allocation2 + $0x270] sm:$0xff]
    %v190 = vld [vmem:[#allocation2 + $0x278] sm:$0xff]
    %v191 = vld [vmem:[#allocation2 + $0x280] sm:$0xff]
    %v192 = vld [vmem:[#allocation2 + $0x288] sm:$0xff]
    %v193 = vld [vmem:[#allocation2 + $0x290] sm:$0xff]
    %v194 = vld [vmem:[#allocation2 + $0x298] sm:$0xff]
    %v195 = vld [vmem:[#allocation2 + $0x2a0] sm:$0xff]
    %v196 = vld [vmem:[#allocation2 + $0x2a8] sm:$0xff]
    %v197 = vld [vmem:[#allocation2 + $0x2b0] sm:$0xff]
    %v198 = vld [vmem:[#allocation2 + $0x2b8] sm:$0xff]
    %v199 = vld [vmem:[#allocation2 + $0x2c0] sm:$0xff]
    %v200 = vld [vmem:[#allocation2 + $0x2c8] sm:$0xff]
    %v201 = vld [vmem:[#allocation2 + $0x2d0] sm:$0xff]
    %v202 = vld [vmem:[#allocation2 + $0x2d8] sm:$0xff]
    %v203 = vld [vmem:[#allocation2 + $0x2e0] sm:$0xff]
    %v204 = vld [vmem:[#allocation2 + $0x2e8] sm:$0xff]
    %v205 = vld [vmem:[#allocation2 + $0x2f0] sm:$0xff]
    %v206 = vld [vmem:[#allocation2 + $0x2f8] sm:$0xff]
    %v207 = vld [vmem:[#allocation2 + $0x300] sm:$0xff]
    %v208 = vld [vmem:[#allocation2 + $0x308] sm:$0xff]
    %v209 = vld [vmem:[#allocation2 + $0x310] sm:$0xff]
    %v210 = vld [vmem:[#allocation2 + $0x318] sm:$0xff]
    %v211 = vld [vmem:[#allocation2 + $0x320] sm:$0xff]
    %v212 = vld [vmem:[#allocation2 + $0x328] sm:$0xff]
    %v213 = vld [vmem:[#allocation2 + $0x330] sm:$0xff]
    %v214 = vld [vmem:[#allocation2 + $0x338] sm:$0xff]
    %v215 = vld [vmem:[#allocation2 + $0x340] sm:$0xff]
    %v216 = vld [vmem:[#allocation2 + $0x348] sm:$0xff]
    %v217 = vld [vmem:[#allocation2 + $0x350] sm:$0xff]
    %v218 = vld [vmem:[#allocation2 + $0x358] sm:$0xff]
    %v219 = vld [vmem:[#allocation2 + $0x360] sm:$0xff]
    %v220 = vld [vmem:[#allocation2 + $0x368] sm:$0xff]
    %v221 = vld [vmem:[#allocation2 + $0x370] sm:$0xff]
    %v222 = vld [vmem:[#allocation2 + $0x378] sm:$0xff]
    %v223 = vld [vmem:[#allocation2 + $0x380] sm:$0xff]
    %v224 = vld [vmem:[#allocation2 + $0x388] sm:$0xff]
    %v225 = vld [vmem:[#allocation2 + $0x390] sm:$0xff]
    %v226 = vld [vmem:[#allocation2 + $0x398] sm:$0xff]
    %v227 = vld [vmem:[#allocation2 + $0x3a0] sm:$0xff]
    %v228 = vld [vmem:[#allocation2 + $0x3a8] sm:$0xff]
    %v229 = vld [vmem:[#allocation2 + $0x3b0] sm:$0xff]
    %v230 = vld [vmem:[#allocation2 + $0x3b8] sm:$0xff]
    %v231 = vld [vmem:[#allocation2 + $0x3c0] sm:$0xff]
    %v232 = vld [vmem:[#allocation2 + $0x3c8] sm:$0xff]
    %v233 = vld [vmem:[#allocation2 + $0x3d0] sm:$0xff]
    %v234 = vld [vmem:[#allocation2 + $0x3d8] sm:$0xff]
    %v235 = vld [vmem:[#allocation2 + $0x3e0] sm:$0xff]
    %v236 = vld [vmem:[#allocation2 + $0x3e8] sm:$0xff]
    %v237 = vld [vmem:[#allocation2 + $0x3f0] sm:$0xff]
    %v238 = vld [vmem:[#allocation2 + $0x3f8] sm:$0xff]
    %v239 = vld [vmem:[#allocation2 + $0x400] sm:$0xff]
    %v240 = vld [vmem:[#allocation2 + $0x408] sm:$0xff]
    %v241 = vld [vmem:[#allocation2 + $0x410] sm:$0xff]
    %v242 = vld [vmem:[#allocation2 + $0x418] sm:$0xff]
    %v243 = vld [vmem:[#allocation2 + $0x420] sm:$0xff]
    %v244 = vld [vmem:[#allocation2 + $0x428] sm:$0xff]
    %v245 = vld [vmem:[#allocation2 + $0x430] sm:$0xff]
    %v246 = vld [vmem:[#allocation2 + $0x438] sm:$0xff]
    %v247 = vld [vmem:[#allocation2 + $0x440] sm:$0xff]
    %v248 = vld [vmem:[#allocation2 + $0x448] sm:$0xff]
    %v249 = vld [vmem:[#allocation2 + $0x450] sm:$0xff]
    %v250 = vld [vmem:[#allocation2 + $0x458] sm:$0xff]
    %v251 = vld [vmem:[#allocation2 + $0x460] sm:$0xff]
    %v252 = vld [vmem:[#allocation2 + $0x468] sm:$0xff]
    %v253 = vld [vmem:[#allocation2 + $0x470] sm:$0xff]
    %v254 = vld [vmem:[#allocation2 + $0x478] sm:$0xff]
    %v255 = vld [vmem:[#allocation2 + $0x480] sm:$0xff]
    %v256 = vld [vmem:[#allocation2 + $0x488] sm:$0xff]
    %v257 = vld [vmem:[#allocation2 + $0x490] sm:$0xff]
    %v258 = vld [vmem:[#allocation2 + $0x498] sm:$0xff]
    %v259 = vld [vmem:[#allocation2 + $0x4a0] sm:$0xff]
    %v260 = vld [vmem:[#allocation2 + $0x4a8] sm:$0xff]
    %v261 = vld [vmem:[#allocation2 + $0x4b0] sm:$0xff]
    %v262 = vld [vmem:[#allocation2 + $0x4b8] sm:$0xff]
    %v263 = vld [vmem:[#allocation2 + $0x4c0] sm:$0xff]
    %v264 = vld [vmem:[#allocation2 + $0x4c8] sm:$0xff]
    %v265 = vld [vmem:[#allocation2 + $0x4d0] sm:$0xff]
    %v266 = vld [vmem:[#allocation2 + $0x4d8] sm:$0xff]
    %v267 = vld [vmem:[#allocation2 + $0x4e0] sm:$0xff]
    %v268 = vld [vmem:[#allocation2 + $0x4e8] sm:$0xff]
    %v269 = vld [vmem:[#allocation2 + $0x4f0] sm:$0xff]
    %v270 = vld [vmem:[#allocation2 + $0x4f8] sm:$0xff]
    %v271 = vld [vmem:[#allocation2 + $0x500] sm:$0xff]
    %v272 = vld [vmem:[#allocation2 + $0x508] sm:$0xff]
    %v273 = vld [vmem:[#allocation2 + $0x510] sm:$0xff]
    %v274 = vld [vmem:[#allocation2 + $0x518] sm:$0xff]
    %v275 = vld [vmem:[#allocation2 + $0x520] sm:$0xff]
    %v276 = vld [vmem:[#allocation2 + $0x528] sm:$0xff]
    %v277 = vld [vmem:[#allocation2 + $0x530] sm:$0xff]
    %v278 = vld [vmem:[#allocation2 + $0x538] sm:$0xff]
    %v279 = vld [vmem:[#allocation2 + $0x540] sm:$0xff]
    %v280 = vld [vmem:[#allocation2 + $0x548] sm:$0xff]
    %v281 = vld [vmem:[#allocation2 + $0x550] sm:$0xff]
    %v282 = vld [vmem:[#allocation2 + $0x558] sm:$0xff]
    %v283 = vld [vmem:[#allocation2 + $0x560] sm:$0xff]
    %v284 = vld [vmem:[#allocation2 + $0x568] sm:$0xff]
    %v285 = vld [vmem:[#allocation2 + $0x570] sm:$0xff]
    %v286 = vld [vmem:[#allocation2 + $0x578] sm:$0xff]
    %v287 = vld [vmem:[#allocation2 + $0x580] sm:$0xff]
    %v288 = vld [vmem:[#allocation2 + $0x588] sm:$0xff]
    %v289 = vld [vmem:[#allocation2 + $0x590] sm:$0xff]
    %v290 = vld [vmem:[#allocation2 + $0x598] sm:$0xff]
    %v291 = vld [vmem:[#allocation2 + $0x5a0] sm:$0xff]
    %v292 = vld [vmem:[#allocation2 + $0x5a8] sm:$0xff]
    %v293 = vld [vmem:[#allocation2 + $0x5b0] sm:$0xff]
    %v294 = vld [vmem:[#allocation2 + $0x5b8] sm:$0xff]
    %v295 = vld [vmem:[#allocation2 + $0x5c0] sm:$0xff]
    %v296 = vld [vmem:[#allocation2 + $0x5c8] sm:$0xff]
    %v297 = vld [vmem:[#allocation2 + $0x5d0] sm:$0xff]
    %v298 = vld [vmem:[#allocation2 + $0x5d8] sm:$0xff]
    %v299 = vld [vmem:[#allocation2 + $0x5e0] sm:$0xff]
    %v300 = vld [vmem:[#allocation2 + $0x5e8] sm:$0xff]
    %v301 = vld [vmem:[#allocation2 + $0x5f0] sm:$0xff]
    %v302 = vld [vmem:[#allocation2 + $0x5f8] sm:$0xff]
    %v303 = vld [vmem:[#allocation2 + $0x600] sm:$0xff]
    %v304 = vld [vmem:[#allocation2 + $0x608] sm:$0xff]
    %v305 = vld [vmem:[#allocation2 + $0x610] sm:$0xff]
    %v306 = vld [vmem:[#allocation2 + $0x618] sm:$0xff]
    %v307 = vld [vmem:[#allocation2 + $0x620] sm:$0xff]
    %v308 = vld [vmem:[#allocation2 + $0x628] sm:$0xff]
    %v309 = vld [vmem:[#allocation2 + $0x630] sm:$0xff]
    %v310 = vld [vmem:[#allocation2 + $0x638] sm:$0xff]
    %v311 = vld [vmem:[#allocation2 + $0x640] sm:$0xff]
    %v312 = vld [vmem:[#allocation2 + $0x648] sm:$0xff]
    %v313 = vld [vmem:[#allocation2 + $0x650] sm:$0xff]
    %v314 = vld [vmem:[#allocation2 + $0x658] sm:$0xff]
    %v315 = vld [vmem:[#allocation2 + $0x660] sm:$0xff]
    %v316 = vld [vmem:[#allocation2 + $0x668] sm:$0xff]
    %v317 = vld [vmem:[#allocation2 + $0x670] sm:$0xff]
    %v318 = vld [vmem:[#allocation2 + $0x678] sm:$0xff]
    %v319 = vld [vmem:[#allocation2 + $0x680] sm:$0xff]
    %v320 = vld [vmem:[#allocation2 + $0x688] sm:$0xff]
    %v321 = vld [vmem:[#allocation2 + $0x690] sm:$0xff]
    %v322 = vld [vmem:[#allocation2 + $0x698] sm:$0xff]
    %v323 = vld [vmem:[#allocation2 + $0x6a0] sm:$0xff]
    %v324 = vld [vmem:[#allocation2 + $0x6a8] sm:$0xff]
    %v325 = vld [vmem:[#allocation2 + $0x6b0] sm:$0xff]
    %v326 = vld [vmem:[#allocation2 + $0x6b8] sm:$0xff]
    %v327 = vld [vmem:[#allocation2 + $0x6c0] sm:$0xff]
    %v328 = vld [vmem:[#allocation2 + $0x6c8] sm:$0xff]
    %v329 = vld [vmem:[#allocation2 + $0x6d0] sm:$0xff]
    %v330 = vld [vmem:[#allocation2 + $0x6d8] sm:$0xff]
    %v331 = vld [vmem:[#allocation2 + $0x6e0] sm:$0xff]
    %v332 = vld [vmem:[#allocation2 + $0x6e8] sm:$0xff]
    %v333 = vld [vmem:[#allocation2 + $0x6f0] sm:$0xff]
    %v334 = vld [vmem:[#allocation2 + $0x6f8] sm:$0xff]
    %v335 = vld [vmem:[#allocation2 + $0x700] sm:$0xff]
    %v336 = vld [vmem:[#allocation2 + $0x708] sm:$0xff]
    %v337 = vld [vmem:[#allocation2 + $0x710] sm:$0xff]
    %v338 = vld [vmem:[#allocation2 + $0x718] sm:$0xff]
    %v339 = vld [vmem:[#allocation2 + $0x720] sm:$0xff]
    %v340 = vld [vmem:[#allocation2 + $0x728] sm:$0xff]
    %v341 = vld [vmem:[#allocation2 + $0x730] sm:$0xff]
    %v342 = vld [vmem:[#allocation2 + $0x738] sm:$0xff]
    %v343 = vld [vmem:[#allocation2 + $0x740] sm:$0xff]
    %v344 = vld [vmem:[#allocation2 + $0x748] sm:$0xff]
    %v345 = vld [vmem:[#allocation2 + $0x750] sm:$0xff]
    %v346 = vld [vmem:[#allocation2 + $0x758] sm:$0xff]
    %v347 = vld [vmem:[#allocation2 + $0x760] sm:$0xff]
    %v348 = vld [vmem:[#allocation2 + $0x768] sm:$0xff]
    %v349 = vld [vmem:[#allocation2 + $0x770] sm:$0xff]
    %v350 = vld [vmem:[#allocation2 + $0x778] sm:$0xff]
    %v351 = vld [vmem:[#allocation2 + $0x780] sm:$0xff]
    %v352 = vld [vmem:[#allocation2 + $0x788] sm:$0xff]
    %v353 = vld [vmem:[#allocation2 + $0x790] sm:$0xff]
    %v354 = vld [vmem:[#allocation2 + $0x798] sm:$0xff]
    %v355 = vld [vmem:[#allocation2 + $0x7a0] sm:$0xff]
    %v356 = vld [vmem:[#allocation2 + $0x7a8] sm:$0xff]
    %v357 = vld [vmem:[#allocation2 + $0x7b0] sm:$0xff]
    %v358 = vld [vmem:[#allocation2 + $0x7b8] sm:$0xff]
    %v359 = vld [vmem:[#allocation2 + $0x7c0] sm:$0xff]
    %v360 = vld [vmem:[#allocation2 + $0x7c8] sm:$0xff]
    %v361 = vld [vmem:[#allocation2 + $0x7d0] sm:$0xff]
    %v362 = vld [vmem:[#allocation2 + $0x7d8] sm:$0xff]
    %v363 = vld [vmem:[#allocation2 + $0x7e0] sm:$0xff]
    %v364 = vld [vmem:[#allocation2 + $0x7e8] sm:$0xff]
    %v365 = vld [vmem:[#allocation2 + $0x7f0] sm:$0xff]
    %v366 = vld [vmem:[#allocation2 + $0x7f8] sm:$0xff]
    %v367 = vld [vmem:[#allocation2 + $0x800] sm:$0xff]
    %v368 = vld [vmem:[#allocation2 + $0x808] sm:$0xff]
    %v369 = vld [vmem:[#allocation2 + $0x810] sm:$0xff]
    %v370 = vld [vmem:[#allocation2 + $0x818] sm:$0xff]
    %v371 = vld [vmem:[#allocation2 + $0x820] sm:$0xff]
    %v372 = vld [vmem:[#allocation2 + $0x828] sm:$0xff]
    %v373 = vld [vmem:[#allocation2 + $0x830] sm:$0xff]
    %v374 = vld [vmem:[#allocation2 + $0x838] sm:$0xff]
    %v375 = vld [vmem:[#allocation2 + $0x840] sm:$0xff]
    %v376 = vld [vmem:[#allocation2 + $0x848] sm:$0xff]
    %v377 = vld [vmem:[#allocation2 + $0x850] sm:$0xff]
    %v378 = vld [vmem:[#allocation2 + $0x858] sm:$0xff]
    %v379 = vld [vmem:[#allocation2 + $0x860] sm:$0xff]
    %v380 = vld [vmem:[#allocation2 + $0x868] sm:$0xff]
    %v381 = vld [vmem:[#allocation2 + $0x870] sm:$0xff]
    %v382 = vld [vmem:[#allocation2 + $0x878] sm:$0xff]
    %v383 = vld [vmem:[#allocation2 + $0x880] sm:$0xff]
    %v384 = vld [vmem:[#allocation2 + $0x888] sm:$0xff]
    %v385 = vld [vmem:[#allocation2 + $0x890] sm:$0xff]
    %v386 = vld [vmem:[#allocation2 + $0x898] sm:$0xff]
    %v387 = vld [vmem:[#allocation2 + $0x8a0] sm:$0xff]
    %v388 = vld [vmem:[#allocation2 + $0x8a8] sm:$0xff]
    %v389 = vld [vmem:[#allocation2 + $0x8b0] sm:$0xff]
    %v390 = vld [vmem:[#allocation2 + $0x8b8] sm:$0xff]
    %v391 = vld [vmem:[#allocation2 + $0x8c0] sm:$0xff]
    %v392 = vld [vmem:[#allocation2 + $0x8c8] sm:$0xff]
    %v393 = vld [vmem:[#allocation2 + $0x8d0] sm:$0xff]
    %v394 = vld [vmem:[#allocation2 + $0x8d8] sm:$0xff]
    %v395 = vld [vmem:[#allocation2 + $0x8e0] sm:$0xff]
    %v396 = vld [vmem:[#allocation2 + $0x8e8] sm:$0xff]
    %v397 = vld [vmem:[#allocation2 + $0x8f0] sm:$0xff]
    %v398 = vld [vmem:[#allocation2 + $0x8f8] sm:$0xff]
    %v399 = vld [vmem:[#allocation2 + $0x900] sm:$0xff]
    %v400 = vld [vmem:[#allocation2 + $0x908] sm:$0xff]
    %v401 = vld [vmem:[#allocation2 + $0x910] sm:$0xff]
    %v402 = vld [vmem:[#allocation2 + $0x918] sm:$0xff]
    %v403 = vld [vmem:[#allocation2 + $0x920] sm:$0xff]
    %v404 = vld [vmem:[#allocation2 + $0x928] sm:$0xff]
    %v405 = vld [vmem:[#allocation2 + $0x930] sm:$0xff]
    %v406 = vld [vmem:[#allocation2 + $0x938] sm:$0xff]
    %v407 = vld [vmem:[#allocation2 + $0x940] sm:$0xff]
    %v408 = vld [vmem:[#allocation2 + $0x948] sm:$0xff]
    %v409 = vld [vmem:[#allocation2 + $0x950] sm:$0xff]
    %v410 = vld [vmem:[#allocation2 + $0x958] sm:$0xff]
    %v411 = vld [vmem:[#allocation2 + $0x960] sm:$0xff]
    %v412 = vld [vmem:[#allocation2 + $0x968] sm:$0xff]
    %v413 = vld [vmem:[#allocation2 + $0x970] sm:$0xff]
    %v414 = vld [vmem:[#allocation2 + $0x978] sm:$0xff]
    %v415 = vld [vmem:[#allocation2 + $0x980] sm:$0xff]
    %v416 = vld [vmem:[#allocation2 + $0x988] sm:$0xff]
    %v417 = vld [vmem:[#allocation2 + $0x990] sm:$0xff]
    %v418 = vld [vmem:[#allocation2 + $0x998] sm:$0xff]
    %v419 = vld [vmem:[#allocation2 + $0x9a0] sm:$0xff]
    %v420 = vld [vmem:[#allocation2 + $0x9a8] sm:$0xff]
    %v421 = vld [vmem:[#allocation2 + $0x9b0] sm:$0xff]
    %v422 = vld [vmem:[#allocation2 + $0x9b8] sm:$0xff]
    %v423 = vld [vmem:[#allocation2 + $0x9c0] sm:$0xff]
    %v424 = vld [vmem:[#allocation2 + $0x9c8] sm:$0xff]
    %v425 = vld [vmem:[#allocation2 + $0x9d0] sm:$0xff]
    %v426 = vld [vmem:[#allocation2 + $0x9d8] sm:$0xff]
    %v427 = vld [vmem:[#allocation2 + $0x9e0] sm:$0xff]
    %v428 = vld [vmem:[#allocation2 + $0x9e8] sm:$0xff]
    %v429 = vld [vmem:[#allocation2 + $0x9f0] sm:$0xff]
    %v430 = vld [vmem:[#allocation2 + $0x9f8] sm:$0xff]
    %v431 = vld [vmem:[#allocation2 + $0xa00] sm:$0xff]
    %v432 = vld [vmem:[#allocation2 + $0xa08] sm:$0xff]
    %v433 = vld [vmem:[#allocation2 + $0xa10] sm:$0xff]
    %v434 = vld [vmem:[#allocation2 + $0xa18] sm:$0xff]
    %v435 = vld [vmem:[#allocation2 + $0xa20] sm:$0xff]
    %v436 = vld [vmem:[#allocation2 + $0xa28] sm:$0xff]
    %v437 = vld [vmem:[#allocation2 + $0xa30] sm:$0xff]
    %v438 = vld [vmem:[#allocation2 + $0xa38] sm:$0xff]
    %v439 = vld [vmem:[#allocation2 + $0xa40] sm:$0xff]
    %v440 = vld [vmem:[#allocation2 + $0xa48] sm:$0xff]
    %v441 = vld [vmem:[#allocation2 + $0xa50] sm:$0xff]
    %v442 = vld [vmem:[#allocation2 + $0xa58] sm:$0xff]
    %v443 = vld [vmem:[#allocation2 + $0xa60] sm:$0xff]
    %v444 = vld [vmem:[#allocation2 + $0xa68] sm:$0xff]
    %v445 = vld [vmem:[#allocation2 + $0xa70] sm:$0xff]
    %v446 = vld [vmem:[#allocation2 + $0xa78] sm:$0xff]
    %v447 = vld [vmem:[#allocation2 + $0xa80] sm:$0xff]
    %v448 = vld [vmem:[#allocation2 + $0xa88] sm:$0xff]
    %v449 = vld [vmem:[#allocation2 + $0xa90] sm:$0xff]
    %v450 = vld [vmem:[#allocation2 + $0xa98] sm:$0xff]
    %v451 = vld [vmem:[#allocation2 + $0xaa0] sm:$0xff]
    %v452 = vld [vmem:[#allocation2 + $0xaa8] sm:$0xff]
    %v453 = vld [vmem:[#allocation2 + $0xab0] sm:$0xff]
    %v454 = vld [vmem:[#allocation2 + $0xab8] sm:$0xff]
    %v455 = vld [vmem:[#allocation2 + $0xac0] sm:$0xff]
    %v456 = vld [vmem:[#allocation2 + $0xac8] sm:$0xff]
    %v457 = vld [vmem:[#allocation2 + $0xad0] sm:$0xff]
    %v458 = vld [vmem:[#allocation2 + $0xad8] sm:$0xff]
    %v459 = vld [vmem:[#allocation2 + $0xae0] sm:$0xff]
    %v460 = vld [vmem:[#allocation2 + $0xae8] sm:$0xff]
    %v461 = vld [vmem:[#allocation2 + $0xaf0] sm:$0xff]
    %v462 = vld [vmem:[#allocation2 + $0xaf8] sm:$0xff]
    %v463 = vld [vmem:[#allocation2 + $0xb00] sm:$0xff]
    %v464 = vld [vmem:[#allocation2 + $0xb08] sm:$0xff]
    %v465 = vld [vmem:[#allocation2 + $0xb10] sm:$0xff]
    %v466 = vld [vmem:[#allocation2 + $0xb18] sm:$0xff]
    %v467 = vld [vmem:[#allocation2 + $0xb20] sm:$0xff]
    %v468 = vld [vmem:[#allocation2 + $0xb28] sm:$0xff]
    %v469 = vld [vmem:[#allocation2 + $0xb30] sm:$0xff]
    %v470 = vld [vmem:[#allocation2 + $0xb38] sm:$0xff]
    %v471 = vld [vmem:[#allocation2 + $0xb40] sm:$0xff]
    %v472 = vld [vmem:[#allocation2 + $0xb48] sm:$0xff]
    %v473 = vld [vmem:[#allocation2 + $0xb50] sm:$0xff]
    %v474 = vld [vmem:[#allocation2 + $0xb58] sm:$0xff]
    %v475 = vld [vmem:[#allocation2 + $0xb60] sm:$0xff]
    %v476 = vld [vmem:[#allocation2 + $0xb68] sm:$0xff]
    %v477 = vld [vmem:[#allocation2 + $0xb70] sm:$0xff]
    %v478 = vld [vmem:[#allocation2 + $0xb78] sm:$0xff]
    %v479 = vld [vmem:[#allocation2 + $0xb80] sm:$0xff]
    %v480 = vld [vmem:[#allocation2 + $0xb88] sm:$0xff]
    %v481 = vld [vmem:[#allocation2 + $0xb90] sm:$0xff]
    %v482 = vld [vmem:[#allocation2 + $0xb98] sm:$0xff]
    %v483 = vld [vmem:[#allocation2 + $0xba0] sm:$0xff]
    %v484 = vld [vmem:[#allocation2 + $0xba8] sm:$0xff]
    %v485 = vld [vmem:[#allocation2 + $0xbb0] sm:$0xff]
    %v486 = vld [vmem:[#allocation2 + $0xbb8] sm:$0xff]
    %v487 = vld [vmem:[#allocation2 + $0xbc0] sm:$0xff]
    %v488 = vld [vmem:[#allocation2 + $0xbc8] sm:$0xff]
    %v489 = vld [vmem:[#allocation2 + $0xbd0] sm:$0xff]
    %v490 = vld [vmem:[#allocation2 + $0xbd8] sm:$0xff]
    %v491 = vld [vmem:[#allocation2 + $0xbe0] sm:$0xff]
    %v492 = vld [vmem:[#allocation2 + $0xbe8] sm:$0xff]
    %v493 = vld [vmem:[#allocation2 + $0xbf0] sm:$0xff]
    %v494 = vld [vmem:[#allocation2 + $0xbf8] sm:$0xff]
    %v495 = vld [vmem:[#allocation2 + $0xc00] sm:$0xff]
    %v496 = vld [vmem:[#allocation2 + $0xc08] sm:$0xff]
    %v497 = vld [vmem:[#allocation2 + $0xc10] sm:$0xff]
    %v498 = vld [vmem:[#allocation2 + $0xc18] sm:$0xff]
    %v499 = vld [vmem:[#allocation2 + $0xc20] sm:$0xff]
    %v500 = vld [vmem:[#allocation2 + $0xc28] sm:$0xff]
    %v501 = vld [vmem:[#allocation2 + $0xc30] sm:$0xff]
    %v502 = vld [vmem:[#allocation2 + $0xc38] sm:$0xff]
    %v503 = vld [vmem:[#allocation2 + $0xc40] sm:$0xff]
    %v504 = vld [vmem:[#allocation2 + $0xc48] sm:$0xff]
    %v505 = vld [vmem:[#allocation2 + $0xc50] sm:$0xff]
    %v506 = vld [vmem:[#allocation2 + $0xc58] sm:$0xff]
    %v507 = vld [vmem:[#allocation2 + $0xc60] sm:$0xff]
    %v508 = vld [vmem:[#allocation2 + $0xc68] sm:$0xff]
    %v509 = vld [vmem:[#allocation2 + $0xc70] sm:$0xff]
    %v510 = vld [vmem:[#allocation2 + $0xc78] sm:$0xff]
    %v511 = vld [vmem:[#allocation2 + $0xc80] sm:$0xff]
    %v512 = vld [vmem:[#allocation2 + $0xc88] sm:$0xff]
    %v513 = vld [vmem:[#allocation2 + $0xc90] sm:$0xff]
    %v514 = vld [vmem:[#allocation2 + $0xc98] sm:$0xff]
    %v515 = vld [vmem:[#allocation2 + $0xca0] sm:$0xff]
    %v516 = vld [vmem:[#allocation2 + $0xca8] sm:$0xff]
    %v517 = vld [vmem:[#allocation2 + $0xcb0] sm:$0xff]
    %v518 = vld [vmem:[#allocation2 + $0xcb8] sm:$0xff]
    %v519 = vld [vmem:[#allocation2 + $0xcc0] sm:$0xff]
    %v520 = vld [vmem:[#allocation2 + $0xcc8] sm:$0xff]
    %v521 = vld [vmem:[#allocation2 + $0xcd0] sm:$0xff]
    %v522 = vld [vmem:[#allocation2 + $0xcd8] sm:$0xff]
    %v523 = vld [vmem:[#allocation2 + $0xce0] sm:$0xff]
    %v524 = vld [vmem:[#allocation2 + $0xce8] sm:$0xff]
    %v525 = vld [vmem:[#allocation2 + $0xcf0] sm:$0xff]
    %v526 = vld [vmem:[#allocation2 + $0xcf8] sm:$0xff]
    %v527 = vld [vmem:[#allocation2 + $0xd00] sm:$0xff]
    %v528 = vld [vmem:[#allocation2 + $0xd08] sm:$0xff]
    %v529 = vld [vmem:[#allocation2 + $0xd10] sm:$0xff]
    %v530 = vld [vmem:[#allocation2 + $0xd18] sm:$0xff]
    %v531 = vld [vmem:[#allocation2 + $0xd20] sm:$0xff]
    %v532 = vld [vmem:[#allocation2 + $0xd28] sm:$0xff]
    %v533 = vld [vmem:[#allocation2 + $0xd30] sm:$0xff]
    %v534 = vld [vmem:[#allocation2 + $0xd38] sm:$0xff]
    %v535 = vld [vmem:[#allocation2 + $0xd40] sm:$0xff]
    %v536 = vld [vmem:[#allocation2 + $0xd48] sm:$0xff]
    %v537 = vld [vmem:[#allocation2 + $0xd50] sm:$0xff]
    %v538 = vld [vmem:[#allocation2 + $0xd58] sm:$0xff]
    %v539 = vld [vmem:[#allocation2 + $0xd60] sm:$0xff]
    %v540 = vld [vmem:[#allocation2 + $0xd68] sm:$0xff]
    %v541 = vld [vmem:[#allocation2 + $0xd70] sm:$0xff]
    %v542 = vld [vmem:[#allocation2 + $0xd78] sm:$0xff]
    %v543 = vld [vmem:[#allocation2 + $0xd80] sm:$0xff]
    %v544 = vld [vmem:[#allocation2 + $0xd88] sm:$0xff]
    %v545 = vld [vmem:[#allocation2 + $0xd90] sm:$0xff]
    %v546 = vld [vmem:[#allocation2 + $0xd98] sm:$0xff]
    %v547 = vld [vmem:[#allocation2 + $0xda0] sm:$0xff]
    %v548 = vld [vmem:[#allocation2 + $0xda8] sm:$0xff]
    %v549 = vld [vmem:[#allocation2 + $0xdb0] sm:$0xff]
    %v550 = vld [vmem:[#allocation2 + $0xdb8] sm:$0xff]
    %v551 = vld [vmem:[#allocation2 + $0xdc0] sm:$0xff]
    %v552 = vld [vmem:[#allocation2 + $0xdc8] sm:$0xff]
    %v553 = vld [vmem:[#allocation2 + $0xdd0] sm:$0xff]
    %v554 = vld [vmem:[#allocation2 + $0xdd8] sm:$0xff]
    %v555 = vld [vmem:[#allocation2 + $0xde0] sm:$0xff]
    %v556 = vld [vmem:[#allocation2 + $0xde8] sm:$0xff]
    %v557 = vld [vmem:[#allocation2 + $0xdf0] sm:$0xff]
    %v558 = vld [vmem:[#allocation2 + $0xdf8] sm:$0xff]
    %v559 = vld [vmem:[#allocation4] sm:$0xff]
    %v561 = vlaneseq
    %v562 = vshrl.u32 %v561, 7
    %v563 = vsub.s32 0, %v562
    %v564 = vrot.slane %v559, %v563
    %v565 = vlaneseq
    %v566 = vshrl.u32 %v565, 7
    %v567 = vsub.s32 1, %v566
    %v568 = vrot.slane %v559, %v567
    %v569 = vlaneseq
    %v570 = vshrl.u32 %v569, 7
    %v571 = vsub.s32 2, %v570
    %v572 = vrot.slane %v559, %v571
    %v573 = vlaneseq
    %v574 = vshrl.u32 %v573, 7
    %v575 = vsub.s32 3, %v574
    %v576 = vrot.slane %v559, %v575
    %v577 = vlaneseq
    %v578 = vshrl.u32 %v577, 7
    %v579 = vsub.s32 4, %v578
    %v580 = vrot.slane %v559, %v579
    %v581 = vlaneseq
    %v582 = vshrl.u32 %v581, 7
    %v583 = vsub.s32 5, %v582
    %v584 = vrot.slane %v559, %v583
    %v585 = vlaneseq
    %v586 = vshrl.u32 %v585, 7
    %v587 = vsub.s32 6, %v586
    %v588 = vrot.slane %v559, %v587
    %v589 = vlaneseq
    %v590 = vshrl.u32 %v589, 7
    %v591 = vsub.s32 7, %v590
    %v592 = vrot.slane %v559, %v591
    %v609 = vunpack.c.l.b16 %v103
    %v610 = vunpack.c.h.b16 %v103
    %v611 = vunpack.c.l.b16 %v104
    %v612 = vunpack.c.h.b16 %v104
    %v613 = vunpack.c.l.b16 %v105
    %v614 = vunpack.c.h.b16 %v105
    %v615 = vunpack.c.l.b16 %v106
    %v616 = vunpack.c.l.b16 %v107
    %v617 = vunpack.c.h.b16 %v107
    %v618 = vunpack.c.l.b16 %v108
    %v619 = vunpack.c.h.b16 %v108
    %v620 = vunpack.c.l.b16 %v109
    %v621 = vunpack.c.h.b16 %v109
    %v622 = vunpack.c.l.b16 %v110
    %v623 = vpack.c.b16 %v616, %v609
    %v624 = vpack.c.b16 %v617, %v610
    %v625 = vpack.c.b16 %v618, %v611
    %v626 = vpack.c.b16 %v619, %v612
    %v627 = vpack.c.b16 %v620, %v613
    %v628 = vpack.c.b16 %v621, %v614
    %v629 = vpack.c.b16 %v622, %v615
    %v1085 = vunpack.c.l.b16 %v111
    %v1086 = vunpack.c.h.b16 %v111
    %v1087 = vunpack.c.l.b16 %v112
    %v1088 = vunpack.c.h.b16 %v112
    %v1089 = vunpack.c.l.b16 %v113
    %v1090 = vunpack.c.h.b16 %v113
    %v1091 = vunpack.c.l.b16 %v114
    %v1092 = vunpack.c.h.b16 %v114
    %v1093 = vunpack.c.l.b16 %v115
    %v1094 = vunpack.c.h.b16 %v115
    %v1095 = vunpack.c.l.b16 %v116
    %v1096 = vunpack.c.h.b16 %v116
    %v1097 = vunpack.c.l.b16 %v117
    %v1098 = vunpack.c.h.b16 %v117
    %v1099 = vunpack.c.l.b16 %v118
    %v1100 = vunpack.c.h.b16 %v118
    %v1101 = vunpack.c.l.b16 %v119
    %v1102 = vunpack.c.h.b16 %v119
    %v1103 = vunpack.c.l.b16 %v120
    %v1104 = vunpack.c.h.b16 %v120
    %v1105 = vunpack.c.l.b16 %v121
    %v1106 = vunpack.c.h.b16 %v121
    %v1107 = vunpack.c.l.b16 %v122
    %v1108 = vunpack.c.h.b16 %v122
    %v1109 = vunpack.c.l.b16 %v123
    %v1110 = vunpack.c.h.b16 %v123
    %v1111 = vunpack.c.l.b16 %v124
    %v1112 = vunpack.c.h.b16 %v124
    %v1113 = vunpack.c.l.b16 %v125
    %v1114 = vunpack.c.h.b16 %v125
    %v1115 = vunpack.c.l.b16 %v126
    %v1116 = vunpack.c.h.b16 %v126
    %v1117 = vunpack.c.l.b16 %v127
    %v1118 = vunpack.c.h.b16 %v127
    %v1119 = vunpack.c.l.b16 %v128
    %v1120 = vunpack.c.h.b16 %v128
    %v1121 = vunpack.c.l.b16 %v129
    %v1122 = vunpack.c.h.b16 %v129
    %v1123 = vunpack.c.l.b16 %v130
    %v1124 = vunpack.c.h.b16 %v130
    %v1125 = vunpack.c.l.b16 %v131
    %v1126 = vunpack.c.h.b16 %v131
    %v1127 = vunpack.c.l.b16 %v132
    %v1128 = vunpack.c.h.b16 %v132
    %v1129 = vunpack.c.l.b16 %v133
    %v1130 = vunpack.c.h.b16 %v133
    %v1131 = vunpack.c.l.b16 %v134
    %v1132 = vunpack.c.h.b16 %v134
    %v1133 = vunpack.c.l.b16 %v135
    %v1134 = vunpack.c.h.b16 %v135
    %v1135 = vunpack.c.l.b16 %v136
    %v1136 = vunpack.c.h.b16 %v136
    %v1137 = vunpack.c.l.b16 %v137
    %v1138 = vunpack.c.h.b16 %v137
    %v1139 = vunpack.c.l.b16 %v138
    %v1140 = vunpack.c.h.b16 %v138
    %v1141 = vunpack.c.l.b16 %v139
    %v1142 = vunpack.c.h.b16 %v139
    %v1143 = vunpack.c.l.b16 %v140
    %v1144 = vunpack.c.h.b16 %v140
    %v1145 = vunpack.c.l.b16 %v141
    %v1146 = vunpack.c.h.b16 %v141
    %v1147 = vunpack.c.l.b16 %v142
    %v1148 = vunpack.c.h.b16 %v142
    %v1149 = vunpack.c.l.b16 %v143
    %v1150 = vunpack.c.h.b16 %v143
    %v1151 = vunpack.c.l.b16 %v144
    %v1152 = vunpack.c.h.b16 %v144
    %v1153 = vunpack.c.l.b16 %v145
    %v1154 = vunpack.c.h.b16 %v145
    %v1155 = vunpack.c.l.b16 %v146
    %v1156 = vunpack.c.h.b16 %v146
    %v1157 = vunpack.c.l.b16 %v147
    %v1158 = vunpack.c.h.b16 %v147
    %v1159 = vunpack.c.l.b16 %v148
    %v1160 = vunpack.c.h.b16 %v148
    %v1161 = vunpack.c.l.b16 %v149
    %v1162 = vunpack.c.h.b16 %v149
    %v1163 = vunpack.c.l.b16 %v150
    %v1164 = vunpack.c.h.b16 %v150
    %v1165 = vunpack.c.l.b16 %v151
    %v1166 = vunpack.c.h.b16 %v151
    %v1167 = vunpack.c.l.b16 %v152
    %v1168 = vunpack.c.h.b16 %v152
    %v1169 = vunpack.c.l.b16 %v153
    %v1170 = vunpack.c.h.b16 %v153
    %v1171 = vunpack.c.l.b16 %v154
    %v1172 = vunpack.c.h.b16 %v154
    %v1173 = vunpack.c.l.b16 %v155
    %v1174 = vunpack.c.h.b16 %v155
    %v1175 = vunpack.c.l.b16 %v156
    %v1176 = vunpack.c.h.b16 %v156
    %v1177 = vunpack.c.l.b16 %v157
    %v1178 = vunpack.c.h.b16 %v157
    %v1179 = vunpack.c.l.b16 %v158
    %v1180 = vunpack.c.h.b16 %v158
    %v1181 = vunpack.c.l.b16 %v159
    %v1182 = vunpack.c.h.b16 %v159
    %v1183 = vunpack.c.l.b16 %v160
    %v1184 = vunpack.c.h.b16 %v160
    %v1185 = vunpack.c.l.b16 %v161
    %v1186 = vunpack.c.h.b16 %v161
    %v1187 = vunpack.c.l.b16 %v162
    %v1188 = vunpack.c.h.b16 %v162
    %v1189 = vunpack.c.l.b16 %v163
    %v1190 = vunpack.c.h.b16 %v163
    %v1191 = vunpack.c.l.b16 %v164
    %v1192 = vunpack.c.h.b16 %v164
    %v1193 = vunpack.c.l.b16 %v165
    %v1194 = vunpack.c.h.b16 %v165
    %v1195 = vunpack.c.l.b16 %v166
    %v1196 = vunpack.c.h.b16 %v166
    %v1197 = vunpack.c.l.b16 %v167
    %v1198 = vunpack.c.h.b16 %v167
    %v1199 = vunpack.c.l.b16 %v168
    %v1200 = vunpack.c.h.b16 %v168
    %v1201 = vunpack.c.l.b16 %v169
    %v1202 = vunpack.c.h.b16 %v169
    %v1203 = vunpack.c.l.b16 %v170
    %v1204 = vunpack.c.h.b16 %v170
    %v1205 = vunpack.c.l.b16 %v171
    %v1206 = vunpack.c.h.b16 %v171
    %v1207 = vunpack.c.l.b16 %v172
    %v1208 = vunpack.c.h.b16 %v172
    %v1209 = vunpack.c.l.b16 %v173
    %v1210 = vunpack.c.h.b16 %v173
    %v1211 = vunpack.c.l.b16 %v174
    %v1212 = vunpack.c.h.b16 %v174
    %v1213 = vunpack.c.l.b16 %v175
    %v1214 = vunpack.c.h.b16 %v175
    %v1215 = vunpack.c.l.b16 %v176
    %v1216 = vunpack.c.h.b16 %v176
    %v1217 = vunpack.c.l.b16 %v177
    %v1218 = vunpack.c.h.b16 %v177
    %v1219 = vunpack.c.l.b16 %v178
    %v1220 = vunpack.c.h.b16 %v178
    %v1221 = vunpack.c.l.b16 %v179
    %v1222 = vunpack.c.h.b16 %v179
    %v1223 = vunpack.c.l.b16 %v180
    %v1224 = vunpack.c.h.b16 %v180
    %v1225 = vunpack.c.l.b16 %v181
    %v1226 = vunpack.c.h.b16 %v181
    %v1227 = vunpack.c.l.b16 %v182
    %v1228 = vunpack.c.h.b16 %v182
    %v1229 = vunpack.c.l.b16 %v183
    %v1230 = vunpack.c.h.b16 %v183
    %v1231 = vunpack.c.l.b16 %v184
    %v1232 = vunpack.c.h.b16 %v184
    %v1233 = vunpack.c.l.b16 %v185
    %v1234 = vunpack.c.h.b16 %v185
    %v1235 = vunpack.c.l.b16 %v186
    %v1236 = vunpack.c.h.b16 %v186
    %v1237 = vunpack.c.l.b16 %v187
    %v1238 = vunpack.c.h.b16 %v187
    %v1239 = vunpack.c.l.b16 %v188
    %v1240 = vunpack.c.h.b16 %v188
    %v1241 = vunpack.c.l.b16 %v189
    %v1242 = vunpack.c.h.b16 %v189
    %v1243 = vunpack.c.l.b16 %v190
    %v1244 = vunpack.c.h.b16 %v190
    %v1245 = vunpack.c.l.b16 %v191
    %v1246 = vunpack.c.h.b16 %v191
    %v1247 = vunpack.c.l.b16 %v192
    %v1248 = vunpack.c.h.b16 %v192
    %v1249 = vunpack.c.l.b16 %v193
    %v1250 = vunpack.c.h.b16 %v193
    %v1251 = vunpack.c.l.b16 %v194
    %v1252 = vunpack.c.h.b16 %v194
    %v1253 = vunpack.c.l.b16 %v195
    %v1254 = vunpack.c.h.b16 %v195
    %v1255 = vunpack.c.l.b16 %v196
    %v1256 = vunpack.c.h.b16 %v196
    %v1257 = vunpack.c.l.b16 %v197
    %v1258 = vunpack.c.h.b16 %v197
    %v1259 = vunpack.c.l.b16 %v198
    %v1260 = vunpack.c.h.b16 %v198
    %v1261 = vunpack.c.l.b16 %v199
    %v1262 = vunpack.c.h.b16 %v199
    %v1263 = vunpack.c.l.b16 %v200
    %v1264 = vunpack.c.h.b16 %v200
    %v1265 = vunpack.c.l.b16 %v201
    %v1266 = vunpack.c.h.b16 %v201
    %v1267 = vunpack.c.l.b16 %v202
    %v1268 = vunpack.c.h.b16 %v202
    %v1269 = vunpack.c.l.b16 %v203
    %v1270 = vunpack.c.h.b16 %v203
    %v1271 = vunpack.c.l.b16 %v204
    %v1272 = vunpack.c.h.b16 %v204
    %v1273 = vunpack.c.l.b16 %v205
    %v1274 = vunpack.c.h.b16 %v205
    %v1275 = vunpack.c.l.b16 %v206
    %v1276 = vunpack.c.h.b16 %v206
    %v1277 = vunpack.c.l.b16 %v207
    %v1278 = vunpack.c.h.b16 %v207
    %v1279 = vunpack.c.l.b16 %v208
    %v1280 = vunpack.c.h.b16 %v208
    %v1281 = vunpack.c.l.b16 %v209
    %v1282 = vunpack.c.h.b16 %v209
    %v1283 = vunpack.c.l.b16 %v210
    %v1284 = vunpack.c.h.b16 %v210
    %v1285 = vunpack.c.l.b16 %v211
    %v1286 = vunpack.c.h.b16 %v211
    %v1287 = vunpack.c.l.b16 %v212
    %v1288 = vunpack.c.h.b16 %v212
    %v1289 = vunpack.c.l.b16 %v213
    %v1290 = vunpack.c.h.b16 %v213
    %v1291 = vunpack.c.l.b16 %v214
    %v1292 = vunpack.c.h.b16 %v214
    %v1293 = vunpack.c.l.b16 %v215
    %v1294 = vunpack.c.h.b16 %v215
    %v1295 = vunpack.c.l.b16 %v216
    %v1296 = vunpack.c.h.b16 %v216
    %v1297 = vunpack.c.l.b16 %v217
    %v1298 = vunpack.c.h.b16 %v217
    %v1299 = vunpack.c.l.b16 %v218
    %v1300 = vunpack.c.h.b16 %v218
    %v1301 = vunpack.c.l.b16 %v219
    %v1302 = vunpack.c.h.b16 %v219
    %v1303 = vunpack.c.l.b16 %v220
    %v1304 = vunpack.c.h.b16 %v220
    %v1305 = vunpack.c.l.b16 %v221
    %v1306 = vunpack.c.h.b16 %v221
    %v1307 = vunpack.c.l.b16 %v222
    %v1308 = vunpack.c.h.b16 %v222
    %v1309 = vunpack.c.l.b16 %v223
    %v1310 = vunpack.c.h.b16 %v223
    %v1311 = vunpack.c.l.b16 %v224
    %v1312 = vunpack.c.h.b16 %v224
    %v1313 = vunpack.c.l.b16 %v225
    %v1314 = vunpack.c.h.b16 %v225
    %v1315 = vunpack.c.l.b16 %v226
    %v1316 = vunpack.c.h.b16 %v226
    %v1317 = vunpack.c.l.b16 %v227
    %v1318 = vunpack.c.h.b16 %v227
    %v1319 = vunpack.c.l.b16 %v228
    %v1320 = vunpack.c.h.b16 %v228
    %v1321 = vunpack.c.l.b16 %v229
    %v1322 = vunpack.c.h.b16 %v229
    %v1323 = vunpack.c.l.b16 %v230
    %v1324 = vunpack.c.h.b16 %v230
    %v1325 = vunpack.c.l.b16 %v231
    %v1326 = vunpack.c.h.b16 %v231
    %v1327 = vunpack.c.l.b16 %v232
    %v1328 = vunpack.c.h.b16 %v232
    %v1329 = vunpack.c.l.b16 %v233
    %v1330 = vunpack.c.h.b16 %v233
    %v1331 = vunpack.c.l.b16 %v234
    %v1332 = vunpack.c.h.b16 %v234
    %v1333 = vunpack.c.l.b16 %v235
    %v1334 = vunpack.c.h.b16 %v235
    %v1335 = vunpack.c.l.b16 %v236
    %v1336 = vunpack.c.h.b16 %v236
    %v1337 = vunpack.c.l.b16 %v237
    %v1338 = vunpack.c.h.b16 %v237
    %v1339 = vunpack.c.l.b16 %v238
    %v1340 = vunpack.c.h.b16 %v238
    %v1341 = vunpack.c.l.b16 %v239
    %v1342 = vunpack.c.h.b16 %v239
    %v1343 = vunpack.c.l.b16 %v240
    %v1344 = vunpack.c.h.b16 %v240
    %v1345 = vunpack.c.l.b16 %v241
    %v1346 = vunpack.c.h.b16 %v241
    %v1347 = vunpack.c.l.b16 %v242
    %v1348 = vunpack.c.h.b16 %v242
    %v1349 = vunpack.c.l.b16 %v243
    %v1350 = vunpack.c.h.b16 %v243
    %v1351 = vunpack.c.l.b16 %v244
    %v1352 = vunpack.c.h.b16 %v244
    %v1353 = vunpack.c.l.b16 %v245
    %v1354 = vunpack.c.h.b16 %v245
    %v1355 = vunpack.c.l.b16 %v246
    %v1356 = vunpack.c.h.b16 %v246
    %v1357 = vunpack.c.l.b16 %v247
    %v1358 = vunpack.c.h.b16 %v247
    %v1359 = vunpack.c.l.b16 %v248
    %v1360 = vunpack.c.h.b16 %v248
    %v1361 = vunpack.c.l.b16 %v249
    %v1362 = vunpack.c.h.b16 %v249
    %v1363 = vunpack.c.l.b16 %v250
    %v1364 = vunpack.c.h.b16 %v250
    %v1365 = vunpack.c.l.b16 %v251
    %v1366 = vunpack.c.h.b16 %v251
    %v1367 = vunpack.c.l.b16 %v252
    %v1368 = vunpack.c.h.b16 %v252
    %v1369 = vunpack.c.l.b16 %v253
    %v1370 = vunpack.c.h.b16 %v253
    %v1371 = vunpack.c.l.b16 %v254
    %v1372 = vunpack.c.h.b16 %v254
    %v1373 = vunpack.c.l.b16 %v255
    %v1374 = vunpack.c.h.b16 %v255
    %v1375 = vunpack.c.l.b16 %v256
    %v1376 = vunpack.c.h.b16 %v256
    %v1377 = vunpack.c.l.b16 %v257
    %v1378 = vunpack.c.h.b16 %v257
    %v1379 = vunpack.c.l.b16 %v258
    %v1380 = vunpack.c.h.b16 %v258
    %v1381 = vunpack.c.l.b16 %v259
    %v1382 = vunpack.c.h.b16 %v259
    %v1383 = vunpack.c.l.b16 %v260
    %v1384 = vunpack.c.h.b16 %v260
    %v1385 = vunpack.c.l.b16 %v261
    %v1386 = vunpack.c.h.b16 %v261
    %v1387 = vunpack.c.l.b16 %v262
    %v1388 = vunpack.c.h.b16 %v262
    %v1389 = vunpack.c.l.b16 %v263
    %v1390 = vunpack.c.h.b16 %v263
    %v1391 = vunpack.c.l.b16 %v264
    %v1392 = vunpack.c.h.b16 %v264
    %v1393 = vunpack.c.l.b16 %v265
    %v1394 = vunpack.c.h.b16 %v265
    %v1395 = vunpack.c.l.b16 %v266
    %v1396 = vunpack.c.h.b16 %v266
    %v1397 = vunpack.c.l.b16 %v267
    %v1398 = vunpack.c.h.b16 %v267
    %v1399 = vunpack.c.l.b16 %v268
    %v1400 = vunpack.c.h.b16 %v268
    %v1401 = vunpack.c.l.b16 %v269
    %v1402 = vunpack.c.h.b16 %v269
    %v1403 = vunpack.c.l.b16 %v270
    %v1404 = vunpack.c.h.b16 %v270
    %v1405 = vunpack.c.l.b16 %v271
    %v1406 = vunpack.c.h.b16 %v271
    %v1407 = vunpack.c.l.b16 %v272
    %v1408 = vunpack.c.h.b16 %v272
    %v1409 = vunpack.c.l.b16 %v273
    %v1410 = vunpack.c.h.b16 %v273
    %v1411 = vunpack.c.l.b16 %v274
    %v1412 = vunpack.c.h.b16 %v274
    %v1413 = vunpack.c.l.b16 %v275
    %v1414 = vunpack.c.h.b16 %v275
    %v1415 = vunpack.c.l.b16 %v276
    %v1416 = vunpack.c.h.b16 %v276
    %v1417 = vunpack.c.l.b16 %v277
    %v1418 = vunpack.c.h.b16 %v277
    %v1419 = vunpack.c.l.b16 %v278
    %v1420 = vunpack.c.h.b16 %v278
    %v1421 = vunpack.c.l.b16 %v279
    %v1422 = vunpack.c.h.b16 %v279
    %v1423 = vunpack.c.l.b16 %v280
    %v1424 = vunpack.c.h.b16 %v280
    %v1425 = vunpack.c.l.b16 %v281
    %v1426 = vunpack.c.h.b16 %v281
    %v1427 = vunpack.c.l.b16 %v282
    %v1428 = vunpack.c.h.b16 %v282
    %v1429 = vunpack.c.l.b16 %v283
    %v1430 = vunpack.c.h.b16 %v283
    %v1431 = vunpack.c.l.b16 %v284
    %v1432 = vunpack.c.h.b16 %v284
    %v1433 = vunpack.c.l.b16 %v285
    %v1434 = vunpack.c.h.b16 %v285
    %v1435 = vunpack.c.l.b16 %v286
    %v1436 = vunpack.c.h.b16 %v286
    %v1437 = vunpack.c.l.b16 %v287
    %v1438 = vunpack.c.h.b16 %v287
    %v1439 = vunpack.c.l.b16 %v288
    %v1440 = vunpack.c.h.b16 %v288
    %v1441 = vunpack.c.l.b16 %v289
    %v1442 = vunpack.c.h.b16 %v289
    %v1443 = vunpack.c.l.b16 %v290
    %v1444 = vunpack.c.h.b16 %v290
    %v1445 = vunpack.c.l.b16 %v291
    %v1446 = vunpack.c.h.b16 %v291
    %v1447 = vunpack.c.l.b16 %v292
    %v1448 = vunpack.c.h.b16 %v292
    %v1449 = vunpack.c.l.b16 %v293
    %v1450 = vunpack.c.h.b16 %v293
    %v1451 = vunpack.c.l.b16 %v294
    %v1452 = vunpack.c.h.b16 %v294
    %v1453 = vunpack.c.l.b16 %v295
    %v1454 = vunpack.c.h.b16 %v295
    %v1455 = vunpack.c.l.b16 %v296
    %v1456 = vunpack.c.h.b16 %v296
    %v1457 = vunpack.c.l.b16 %v297
    %v1458 = vunpack.c.h.b16 %v297
    %v1459 = vunpack.c.l.b16 %v298
    %v1460 = vunpack.c.h.b16 %v298
    %v1461 = vunpack.c.l.b16 %v299
    %v1462 = vunpack.c.h.b16 %v299
    %v1463 = vunpack.c.l.b16 %v300
    %v1464 = vunpack.c.h.b16 %v300
    %v1465 = vunpack.c.l.b16 %v301
    %v1466 = vunpack.c.h.b16 %v301
    %v1467 = vunpack.c.l.b16 %v302
    %v1468 = vunpack.c.h.b16 %v302
    %v1469 = vunpack.c.l.b16 %v303
    %v1470 = vunpack.c.h.b16 %v303
    %v1471 = vunpack.c.l.b16 %v304
    %v1472 = vunpack.c.h.b16 %v304
    %v1473 = vunpack.c.l.b16 %v305
    %v1474 = vunpack.c.h.b16 %v305
    %v1475 = vunpack.c.l.b16 %v306
    %v1476 = vunpack.c.h.b16 %v306
    %v1477 = vunpack.c.l.b16 %v307
    %v1478 = vunpack.c.h.b16 %v307
    %v1479 = vunpack.c.l.b16 %v308
    %v1480 = vunpack.c.h.b16 %v308
    %v1481 = vunpack.c.l.b16 %v309
    %v1482 = vunpack.c.h.b16 %v309
    %v1483 = vunpack.c.l.b16 %v310
    %v1484 = vunpack.c.h.b16 %v310
    %v1485 = vunpack.c.l.b16 %v311
    %v1486 = vunpack.c.h.b16 %v311
    %v1487 = vunpack.c.l.b16 %v312
    %v1488 = vunpack.c.h.b16 %v312
    %v1489 = vunpack.c.l.b16 %v313
    %v1490 = vunpack.c.h.b16 %v313
    %v1491 = vunpack.c.l.b16 %v314
    %v1492 = vunpack.c.h.b16 %v314
    %v1493 = vunpack.c.l.b16 %v315
    %v1494 = vunpack.c.h.b16 %v315
    %v1495 = vunpack.c.l.b16 %v316
    %v1496 = vunpack.c.h.b16 %v316
    %v1497 = vunpack.c.l.b16 %v317
    %v1498 = vunpack.c.h.b16 %v317
    %v1499 = vunpack.c.l.b16 %v318
    %v1500 = vunpack.c.h.b16 %v318
    %v1501 = vunpack.c.l.b16 %v319
    %v1502 = vunpack.c.h.b16 %v319
    %v1503 = vunpack.c.l.b16 %v320
    %v1504 = vunpack.c.h.b16 %v320
    %v1505 = vunpack.c.l.b16 %v321
    %v1506 = vunpack.c.h.b16 %v321
    %v1507 = vunpack.c.l.b16 %v322
    %v1508 = vunpack.c.h.b16 %v322
    %v1509 = vunpack.c.l.b16 %v323
    %v1510 = vunpack.c.h.b16 %v323
    %v1511 = vunpack.c.l.b16 %v324
    %v1512 = vunpack.c.h.b16 %v324
    %v1513 = vunpack.c.l.b16 %v325
    %v1514 = vunpack.c.h.b16 %v325
    %v1515 = vunpack.c.l.b16 %v326
    %v1516 = vunpack.c.h.b16 %v326
    %v1517 = vunpack.c.l.b16 %v327
    %v1518 = vunpack.c.h.b16 %v327
    %v1519 = vunpack.c.l.b16 %v328
    %v1520 = vunpack.c.h.b16 %v328
    %v1521 = vunpack.c.l.b16 %v329
    %v1522 = vunpack.c.h.b16 %v329
    %v1523 = vunpack.c.l.b16 %v330
    %v1524 = vunpack.c.h.b16 %v330
    %v1525 = vunpack.c.l.b16 %v331
    %v1526 = vunpack.c.h.b16 %v331
    %v1527 = vunpack.c.l.b16 %v332
    %v1528 = vunpack.c.h.b16 %v332
    %v1529 = vunpack.c.l.b16 %v333
    %v1530 = vunpack.c.h.b16 %v333
    %v1531 = vunpack.c.l.b16 %v334
    %v1532 = vunpack.c.h.b16 %v334
    %v1533 = vunpack.c.l.b16 %v335
    %v1534 = vunpack.c.h.b16 %v335
    %v1535 = vunpack.c.l.b16 %v336
    %v1536 = vunpack.c.h.b16 %v336
    %v1537 = vunpack.c.l.b16 %v337
    %v1538 = vunpack.c.h.b16 %v337
    %v1539 = vunpack.c.l.b16 %v338
    %v1540 = vunpack.c.h.b16 %v338
    %v1541 = vunpack.c.l.b16 %v339
    %v1542 = vunpack.c.h.b16 %v339
    %v1543 = vunpack.c.l.b16 %v340
    %v1544 = vunpack.c.h.b16 %v340
    %v1545 = vunpack.c.l.b16 %v341
    %v1546 = vunpack.c.h.b16 %v341
    %v1547 = vunpack.c.l.b16 %v342
    %v1548 = vunpack.c.h.b16 %v342
    %v1549 = vunpack.c.l.b16 %v343
    %v1550 = vunpack.c.h.b16 %v343
    %v1551 = vunpack.c.l.b16 %v344
    %v1552 = vunpack.c.h.b16 %v344
    %v1553 = vunpack.c.l.b16 %v345
    %v1554 = vunpack.c.h.b16 %v345
    %v1555 = vunpack.c.l.b16 %v346
    %v1556 = vunpack.c.h.b16 %v346
    %v1557 = vunpack.c.l.b16 %v347
    %v1558 = vunpack.c.h.b16 %v347
    %v1559 = vunpack.c.l.b16 %v348
    %v1560 = vunpack.c.h.b16 %v348
    %v1561 = vunpack.c.l.b16 %v349
    %v1562 = vunpack.c.h.b16 %v349
    %v1563 = vunpack.c.l.b16 %v350
    %v1564 = vunpack.c.h.b16 %v350
    %v1565 = vunpack.c.l.b16 %v351
    %v1566 = vunpack.c.h.b16 %v351
    %v1567 = vunpack.c.l.b16 %v352
    %v1568 = vunpack.c.h.b16 %v352
    %v1569 = vunpack.c.l.b16 %v353
    %v1570 = vunpack.c.h.b16 %v353
    %v1571 = vunpack.c.l.b16 %v354
    %v1572 = vunpack.c.h.b16 %v354
    %v1573 = vunpack.c.l.b16 %v355
    %v1574 = vunpack.c.h.b16 %v355
    %v1575 = vunpack.c.l.b16 %v356
    %v1576 = vunpack.c.h.b16 %v356
    %v1577 = vunpack.c.l.b16 %v357
    %v1578 = vunpack.c.h.b16 %v357
    %v1579 = vunpack.c.l.b16 %v358
    %v1580 = vunpack.c.h.b16 %v358
    %v1581 = vunpack.c.l.b16 %v359
    %v1582 = vunpack.c.h.b16 %v359
    %v1583 = vunpack.c.l.b16 %v360
    %v1584 = vunpack.c.h.b16 %v360
    %v1585 = vunpack.c.l.b16 %v361
    %v1586 = vunpack.c.h.b16 %v361
    %v1587 = vunpack.c.l.b16 %v362
    %v1588 = vunpack.c.h.b16 %v362
    %v1589 = vunpack.c.l.b16 %v363
    %v1590 = vunpack.c.h.b16 %v363
    %v1591 = vunpack.c.l.b16 %v364
    %v1592 = vunpack.c.h.b16 %v364
    %v1593 = vunpack.c.l.b16 %v365
    %v1594 = vunpack.c.h.b16 %v365
    %v1595 = vunpack.c.l.b16 %v366
    %v1596 = vunpack.c.h.b16 %v366
    %v1597 = vunpack.c.l.b16 %v367
    %v1598 = vunpack.c.h.b16 %v367
    %v1599 = vunpack.c.l.b16 %v368
    %v1600 = vunpack.c.h.b16 %v368
    %v1601 = vunpack.c.l.b16 %v369
    %v1602 = vunpack.c.h.b16 %v369
    %v1603 = vunpack.c.l.b16 %v370
    %v1604 = vunpack.c.h.b16 %v370
    %v1605 = vunpack.c.l.b16 %v371
    %v1606 = vunpack.c.h.b16 %v371
    %v1607 = vunpack.c.l.b16 %v372
    %v1608 = vunpack.c.h.b16 %v372
    %v1609 = vunpack.c.l.b16 %v373
    %v1610 = vunpack.c.h.b16 %v373
    %v1611 = vunpack.c.l.b16 %v374
    %v1612 = vunpack.c.h.b16 %v374
    %v1613 = vunpack.c.l.b16 %v375
    %v1614 = vunpack.c.h.b16 %v375
    %v1615 = vunpack.c.l.b16 %v376
    %v1616 = vunpack.c.h.b16 %v376
    %v1617 = vunpack.c.l.b16 %v377
    %v1618 = vunpack.c.h.b16 %v377
    %v1619 = vunpack.c.l.b16 %v378
    %v1620 = vunpack.c.h.b16 %v378
    %v1621 = vunpack.c.l.b16 %v379
    %v1622 = vunpack.c.h.b16 %v379
    %v1623 = vunpack.c.l.b16 %v380
    %v1624 = vunpack.c.h.b16 %v380
    %v1625 = vunpack.c.l.b16 %v381
    %v1626 = vunpack.c.h.b16 %v381
    %v1627 = vunpack.c.l.b16 %v382
    %v1628 = vunpack.c.h.b16 %v382
    %v1629 = vunpack.c.l.b16 %v383
    %v1630 = vunpack.c.h.b16 %v383
    %v1631 = vunpack.c.l.b16 %v384
    %v1632 = vunpack.c.h.b16 %v384
    %v1633 = vunpack.c.l.b16 %v385
    %v1634 = vunpack.c.h.b16 %v385
    %v1635 = vunpack.c.l.b16 %v386
    %v1636 = vunpack.c.h.b16 %v386
    %v1637 = vunpack.c.l.b16 %v387
    %v1638 = vunpack.c.h.b16 %v387
    %v1639 = vunpack.c.l.b16 %v388
    %v1640 = vunpack.c.h.b16 %v388
    %v1641 = vunpack.c.l.b16 %v389
    %v1642 = vunpack.c.h.b16 %v389
    %v1643 = vunpack.c.l.b16 %v390
    %v1644 = vunpack.c.h.b16 %v390
    %v1645 = vunpack.c.l.b16 %v391
    %v1646 = vunpack.c.h.b16 %v391
    %v1647 = vunpack.c.l.b16 %v392
    %v1648 = vunpack.c.h.b16 %v392
    %v1649 = vunpack.c.l.b16 %v393
    %v1650 = vunpack.c.h.b16 %v393
    %v1651 = vunpack.c.l.b16 %v394
    %v1652 = vunpack.c.h.b16 %v394
    %v1653 = vunpack.c.l.b16 %v395
    %v1654 = vunpack.c.h.b16 %v395
    %v1655 = vunpack.c.l.b16 %v396
    %v1656 = vunpack.c.h.b16 %v396
    %v1657 = vunpack.c.l.b16 %v397
    %v1658 = vunpack.c.h.b16 %v397
    %v1659 = vunpack.c.l.b16 %v398
    %v1660 = vunpack.c.h.b16 %v398
    %v1661 = vunpack.c.l.b16 %v399
    %v1662 = vunpack.c.h.b16 %v399
    %v1663 = vunpack.c.l.b16 %v400
    %v1664 = vunpack.c.h.b16 %v400
    %v1665 = vunpack.c.l.b16 %v401
    %v1666 = vunpack.c.h.b16 %v401
    %v1667 = vunpack.c.l.b16 %v402
    %v1668 = vunpack.c.h.b16 %v402
    %v1669 = vunpack.c.l.b16 %v403
    %v1670 = vunpack.c.h.b16 %v403
    %v1671 = vunpack.c.l.b16 %v404
    %v1672 = vunpack.c.h.b16 %v404
    %v1673 = vunpack.c.l.b16 %v405
    %v1674 = vunpack.c.h.b16 %v405
    %v1675 = vunpack.c.l.b16 %v406
    %v1676 = vunpack.c.h.b16 %v406
    %v1677 = vunpack.c.l.b16 %v407
    %v1678 = vunpack.c.h.b16 %v407
    %v1679 = vunpack.c.l.b16 %v408
    %v1680 = vunpack.c.h.b16 %v408
    %v1681 = vunpack.c.l.b16 %v409
    %v1682 = vunpack.c.h.b16 %v409
    %v1683 = vunpack.c.l.b16 %v410
    %v1684 = vunpack.c.h.b16 %v410
    %v1685 = vunpack.c.l.b16 %v411
    %v1686 = vunpack.c.h.b16 %v411
    %v1687 = vunpack.c.l.b16 %v412
    %v1688 = vunpack.c.h.b16 %v412
    %v1689 = vunpack.c.l.b16 %v413
    %v1690 = vunpack.c.h.b16 %v413
    %v1691 = vunpack.c.l.b16 %v414
    %v1692 = vunpack.c.h.b16 %v414
    %v1693 = vunpack.c.l.b16 %v415
    %v1694 = vunpack.c.h.b16 %v415
    %v1695 = vunpack.c.l.b16 %v416
    %v1696 = vunpack.c.h.b16 %v416
    %v1697 = vunpack.c.l.b16 %v417
    %v1698 = vunpack.c.h.b16 %v417
    %v1699 = vunpack.c.l.b16 %v418
    %v1700 = vunpack.c.h.b16 %v418
    %v1701 = vunpack.c.l.b16 %v419
    %v1702 = vunpack.c.h.b16 %v419
    %v1703 = vunpack.c.l.b16 %v420
    %v1704 = vunpack.c.h.b16 %v420
    %v1705 = vunpack.c.l.b16 %v421
    %v1706 = vunpack.c.h.b16 %v421
    %v1707 = vunpack.c.l.b16 %v422
    %v1708 = vunpack.c.h.b16 %v422
    %v1709 = vunpack.c.l.b16 %v423
    %v1710 = vunpack.c.h.b16 %v423
    %v1711 = vunpack.c.l.b16 %v424
    %v1712 = vunpack.c.h.b16 %v424
    %v1713 = vunpack.c.l.b16 %v425
    %v1714 = vunpack.c.h.b16 %v425
    %v1715 = vunpack.c.l.b16 %v426
    %v1716 = vunpack.c.h.b16 %v426
    %v1717 = vunpack.c.l.b16 %v427
    %v1718 = vunpack.c.h.b16 %v427
    %v1719 = vunpack.c.l.b16 %v428
    %v1720 = vunpack.c.h.b16 %v428
    %v1721 = vunpack.c.l.b16 %v429
    %v1722 = vunpack.c.h.b16 %v429
    %v1723 = vunpack.c.l.b16 %v430
    %v1724 = vunpack.c.h.b16 %v430
    %v1725 = vunpack.c.l.b16 %v431
    %v1726 = vunpack.c.h.b16 %v431
    %v1727 = vunpack.c.l.b16 %v432
    %v1728 = vunpack.c.h.b16 %v432
    %v1729 = vunpack.c.l.b16 %v433
    %v1730 = vunpack.c.h.b16 %v433
    %v1731 = vunpack.c.l.b16 %v434
    %v1732 = vunpack.c.h.b16 %v434
    %v1733 = vunpack.c.l.b16 %v435
    %v1734 = vunpack.c.h.b16 %v435
    %v1735 = vunpack.c.l.b16 %v436
    %v1736 = vunpack.c.h.b16 %v436
    %v1737 = vunpack.c.l.b16 %v437
    %v1738 = vunpack.c.h.b16 %v437
    %v1739 = vunpack.c.l.b16 %v438
    %v1740 = vunpack.c.h.b16 %v438
    %v1741 = vunpack.c.l.b16 %v439
    %v1742 = vunpack.c.h.b16 %v439
    %v1743 = vunpack.c.l.b16 %v440
    %v1744 = vunpack.c.h.b16 %v440
    %v1745 = vunpack.c.l.b16 %v441
    %v1746 = vunpack.c.h.b16 %v441
    %v1747 = vunpack.c.l.b16 %v442
    %v1748 = vunpack.c.h.b16 %v442
    %v1749 = vunpack.c.l.b16 %v443
    %v1750 = vunpack.c.h.b16 %v443
    %v1751 = vunpack.c.l.b16 %v444
    %v1752 = vunpack.c.h.b16 %v444
    %v1753 = vunpack.c.l.b16 %v445
    %v1754 = vunpack.c.h.b16 %v445
    %v1755 = vunpack.c.l.b16 %v446
    %v1756 = vunpack.c.h.b16 %v446
    %v1757 = vunpack.c.l.b16 %v447
    %v1758 = vunpack.c.h.b16 %v447
    %v1759 = vunpack.c.l.b16 %v448
    %v1760 = vunpack.c.h.b16 %v448
    %v1761 = vunpack.c.l.b16 %v449
    %v1762 = vunpack.c.h.b16 %v449
    %v1763 = vunpack.c.l.b16 %v450
    %v1764 = vunpack.c.h.b16 %v450
    %v1765 = vunpack.c.l.b16 %v451
    %v1766 = vunpack.c.h.b16 %v451
    %v1767 = vunpack.c.l.b16 %v452
    %v1768 = vunpack.c.h.b16 %v452
    %v1769 = vunpack.c.l.b16 %v453
    %v1770 = vunpack.c.h.b16 %v453
    %v1771 = vunpack.c.l.b16 %v454
    %v1772 = vunpack.c.h.b16 %v454
    %v1773 = vunpack.c.l.b16 %v455
    %v1774 = vunpack.c.h.b16 %v455
    %v1775 = vunpack.c.l.b16 %v456
    %v1776 = vunpack.c.h.b16 %v456
    %v1777 = vunpack.c.l.b16 %v457
    %v1778 = vunpack.c.h.b16 %v457
    %v1779 = vunpack.c.l.b16 %v458
    %v1780 = vunpack.c.h.b16 %v458
    %v1781 = vunpack.c.l.b16 %v459
    %v1782 = vunpack.c.h.b16 %v459
    %v1783 = vunpack.c.l.b16 %v460
    %v1784 = vunpack.c.h.b16 %v460
    %v1785 = vunpack.c.l.b16 %v461
    %v1786 = vunpack.c.h.b16 %v461
    %v1787 = vunpack.c.l.b16 %v462
    %v1788 = vunpack.c.h.b16 %v462
    %v1789 = vunpack.c.l.b16 %v463
    %v1790 = vunpack.c.h.b16 %v463
    %v1791 = vunpack.c.l.b16 %v464
    %v1792 = vunpack.c.h.b16 %v464
    %v1793 = vunpack.c.l.b16 %v465
    %v1794 = vunpack.c.h.b16 %v465
    %v1795 = vunpack.c.l.b16 %v466
    %v1796 = vunpack.c.h.b16 %v466
    %v1797 = vunpack.c.l.b16 %v467
    %v1798 = vunpack.c.h.b16 %v467
    %v1799 = vunpack.c.l.b16 %v468
    %v1800 = vunpack.c.h.b16 %v468
    %v1801 = vunpack.c.l.b16 %v469
    %v1802 = vunpack.c.h.b16 %v469
    %v1803 = vunpack.c.l.b16 %v470
    %v1804 = vunpack.c.h.b16 %v470
    %v1805 = vunpack.c.l.b16 %v471
    %v1806 = vunpack.c.h.b16 %v471
    %v1807 = vunpack.c.l.b16 %v472
    %v1808 = vunpack.c.h.b16 %v472
    %v1809 = vunpack.c.l.b16 %v473
    %v1810 = vunpack.c.h.b16 %v473
    %v1811 = vunpack.c.l.b16 %v474
    %v1812 = vunpack.c.h.b16 %v474
    %v1813 = vunpack.c.l.b16 %v475
    %v1814 = vunpack.c.h.b16 %v475
    %v1815 = vunpack.c.l.b16 %v476
    %v1816 = vunpack.c.h.b16 %v476
    %v1817 = vunpack.c.l.b16 %v477
    %v1818 = vunpack.c.h.b16 %v477
    %v1819 = vunpack.c.l.b16 %v478
    %v1820 = vunpack.c.h.b16 %v478
    %v1821 = vunpack.c.l.b16 %v479
    %v1822 = vunpack.c.h.b16 %v479
    %v1823 = vunpack.c.l.b16 %v480
    %v1824 = vunpack.c.h.b16 %v480
    %v1825 = vunpack.c.l.b16 %v481
    %v1826 = vunpack.c.h.b16 %v481
    %v1827 = vunpack.c.l.b16 %v482
    %v1828 = vunpack.c.h.b16 %v482
    %v1829 = vunpack.c.l.b16 %v483
    %v1830 = vunpack.c.h.b16 %v483
    %v1831 = vunpack.c.l.b16 %v484
    %v1832 = vunpack.c.h.b16 %v484
    %v1833 = vunpack.c.l.b16 %v485
    %v1834 = vunpack.c.h.b16 %v485
    %v1835 = vunpack.c.l.b16 %v486
    %v1836 = vunpack.c.h.b16 %v486
    %v1837 = vunpack.c.l.b16 %v487
    %v1838 = vunpack.c.h.b16 %v487
    %v1839 = vunpack.c.l.b16 %v488
    %v1840 = vunpack.c.h.b16 %v488
    %v1841 = vunpack.c.l.b16 %v489
    %v1842 = vunpack.c.h.b16 %v489
    %v1843 = vunpack.c.l.b16 %v490
    %v1844 = vunpack.c.h.b16 %v490
    %v1845 = vunpack.c.l.b16 %v491
    %v1846 = vunpack.c.h.b16 %v491
    %v1847 = vunpack.c.l.b16 %v492
    %v1848 = vunpack.c.h.b16 %v492
    %v1849 = vunpack.c.l.b16 %v493
    %v1850 = vunpack.c.h.b16 %v493
    %v1851 = vunpack.c.l.b16 %v494
    %v1852 = vunpack.c.h.b16 %v494
    %v1853 = vunpack.c.l.b16 %v495
    %v1854 = vunpack.c.h.b16 %v495
    %v1855 = vunpack.c.l.b16 %v496
    %v1856 = vunpack.c.h.b16 %v496
    %v1857 = vunpack.c.l.b16 %v497
    %v1858 = vunpack.c.h.b16 %v497
    %v1859 = vunpack.c.l.b16 %v498
    %v1860 = vunpack.c.h.b16 %v498
    %v1861 = vunpack.c.l.b16 %v499
    %v1862 = vunpack.c.h.b16 %v499
    %v1863 = vunpack.c.l.b16 %v500
    %v1864 = vunpack.c.h.b16 %v500
    %v1865 = vunpack.c.l.b16 %v501
    %v1866 = vunpack.c.h.b16 %v501
    %v1867 = vunpack.c.l.b16 %v502
    %v1868 = vunpack.c.h.b16 %v502
    %v1869 = vunpack.c.l.b16 %v503
    %v1870 = vunpack.c.h.b16 %v503
    %v1871 = vunpack.c.l.b16 %v504
    %v1872 = vunpack.c.h.b16 %v504
    %v1873 = vunpack.c.l.b16 %v505
    %v1874 = vunpack.c.h.b16 %v505
    %v1875 = vunpack.c.l.b16 %v506
    %v1876 = vunpack.c.h.b16 %v506
    %v1877 = vunpack.c.l.b16 %v507
    %v1878 = vunpack.c.h.b16 %v507
    %v1879 = vunpack.c.l.b16 %v508
    %v1880 = vunpack.c.h.b16 %v508
    %v1881 = vunpack.c.l.b16 %v509
    %v1882 = vunpack.c.h.b16 %v509
    %v1883 = vunpack.c.l.b16 %v510
    %v1884 = vunpack.c.h.b16 %v510
    %v1885 = vunpack.c.l.b16 %v511
    %v1886 = vunpack.c.h.b16 %v511
    %v1887 = vunpack.c.l.b16 %v512
    %v1888 = vunpack.c.h.b16 %v512
    %v1889 = vunpack.c.l.b16 %v513
    %v1890 = vunpack.c.h.b16 %v513
    %v1891 = vunpack.c.l.b16 %v514
    %v1892 = vunpack.c.h.b16 %v514
    %v1893 = vunpack.c.l.b16 %v515
    %v1894 = vunpack.c.h.b16 %v515
    %v1895 = vunpack.c.l.b16 %v516
    %v1896 = vunpack.c.h.b16 %v516
    %v1897 = vunpack.c.l.b16 %v517
    %v1898 = vunpack.c.h.b16 %v517
    %v1899 = vunpack.c.l.b16 %v518
    %v1900 = vunpack.c.h.b16 %v518
    %v1901 = vunpack.c.l.b16 %v519
    %v1902 = vunpack.c.h.b16 %v519
    %v1903 = vunpack.c.l.b16 %v520
    %v1904 = vunpack.c.h.b16 %v520
    %v1905 = vunpack.c.l.b16 %v521
    %v1906 = vunpack.c.h.b16 %v521
    %v1907 = vunpack.c.l.b16 %v522
    %v1908 = vunpack.c.h.b16 %v522
    %v1909 = vunpack.c.l.b16 %v523
    %v1910 = vunpack.c.h.b16 %v523
    %v1911 = vunpack.c.l.b16 %v524
    %v1912 = vunpack.c.h.b16 %v524
    %v1913 = vunpack.c.l.b16 %v525
    %v1914 = vunpack.c.h.b16 %v525
    %v1915 = vunpack.c.l.b16 %v526
    %v1916 = vunpack.c.h.b16 %v526
    %v1917 = vunpack.c.l.b16 %v527
    %v1918 = vunpack.c.h.b16 %v527
    %v1919 = vunpack.c.l.b16 %v528
    %v1920 = vunpack.c.h.b16 %v528
    %v1921 = vunpack.c.l.b16 %v529
    %v1922 = vunpack.c.h.b16 %v529
    %v1923 = vunpack.c.l.b16 %v530
    %v1924 = vunpack.c.h.b16 %v530
    %v1925 = vunpack.c.l.b16 %v531
    %v1926 = vunpack.c.h.b16 %v531
    %v1927 = vunpack.c.l.b16 %v532
    %v1928 = vunpack.c.h.b16 %v532
    %v1929 = vunpack.c.l.b16 %v533
    %v1930 = vunpack.c.h.b16 %v533
    %v1931 = vunpack.c.l.b16 %v534
    %v1932 = vunpack.c.h.b16 %v534
    %v1933 = vunpack.c.l.b16 %v535
    %v1934 = vunpack.c.h.b16 %v535
    %v1935 = vunpack.c.l.b16 %v536
    %v1936 = vunpack.c.h.b16 %v536
    %v1937 = vunpack.c.l.b16 %v537
    %v1938 = vunpack.c.h.b16 %v537
    %v1939 = vunpack.c.l.b16 %v538
    %v1940 = vunpack.c.h.b16 %v538
    %v1941 = vunpack.c.l.b16 %v539
    %v1942 = vunpack.c.h.b16 %v539
    %v1943 = vunpack.c.l.b16 %v540
    %v1944 = vunpack.c.h.b16 %v540
    %v1945 = vunpack.c.l.b16 %v541
    %v1946 = vunpack.c.h.b16 %v541
    %v1947 = vunpack.c.l.b16 %v542
    %v1948 = vunpack.c.h.b16 %v542
    %v1949 = vunpack.c.l.b16 %v543
    %v1950 = vunpack.c.h.b16 %v543
    %v1951 = vunpack.c.l.b16 %v544
    %v1952 = vunpack.c.h.b16 %v544
    %v1953 = vunpack.c.l.b16 %v545
    %v1954 = vunpack.c.h.b16 %v545
    %v1955 = vunpack.c.l.b16 %v546
    %v1956 = vunpack.c.h.b16 %v546
    %v1957 = vunpack.c.l.b16 %v547
    %v1958 = vunpack.c.h.b16 %v547
    %v1959 = vunpack.c.l.b16 %v548
    %v1960 = vunpack.c.h.b16 %v548
    %v1961 = vunpack.c.l.b16 %v549
    %v1962 = vunpack.c.h.b16 %v549
    %v1963 = vunpack.c.l.b16 %v550
    %v1964 = vunpack.c.h.b16 %v550
    %v1965 = vunpack.c.l.b16 %v551
    %v1966 = vunpack.c.h.b16 %v551
    %v1967 = vunpack.c.l.b16 %v552
    %v1968 = vunpack.c.h.b16 %v552
    %v1969 = vunpack.c.l.b16 %v553
    %v1970 = vunpack.c.h.b16 %v553
    %v1971 = vunpack.c.l.b16 %v554
    %v1972 = vunpack.c.h.b16 %v554
    %v1973 = vunpack.c.l.b16 %v555
    %v1974 = vunpack.c.h.b16 %v555
    %v1975 = vunpack.c.l.b16 %v556
    %v1976 = vunpack.c.h.b16 %v556
    %v1977 = vunpack.c.l.b16 %v557
    %v1978 = vunpack.c.h.b16 %v557
    %v1979 = vunpack.c.l.b16 %v558
    %v1980 = vunpack.c.h.b16 %v558
    %v1981 = vpack.c.b16 %v1093, %v1085
    %v1982 = vpack.c.b16 %v1094, %v1086
    %v1983 = vpack.c.b16 %v1095, %v1087
    %v1984 = vpack.c.b16 %v1096, %v1088
    %v1985 = vpack.c.b16 %v1097, %v1089
    %v1986 = vpack.c.b16 %v1098, %v1090
    %v1987 = vpack.c.b16 %v1099, %v1091
    %v1988 = vpack.c.b16 %v1100, %v1092
    %v1989 = vpack.c.b16 %v1109, %v1101
    %v1990 = vpack.c.b16 %v1110, %v1102
    %v1991 = vpack.c.b16 %v1111, %v1103
    %v1992 = vpack.c.b16 %v1112, %v1104
    %v1993 = vpack.c.b16 %v1113, %v1105
    %v1994 = vpack.c.b16 %v1114, %v1106
    %v1995 = vpack.c.b16 %v1115, %v1107
    %v1996 = vpack.c.b16 %v1116, %v1108
    %v1997 = vpack.c.b16 %v1125, %v1117
    %v1998 = vpack.c.b16 %v1126, %v1118
    %v1999 = vpack.c.b16 %v1127, %v1119
    %v2000 = vpack.c.b16 %v1128, %v1120
    %v2001 = vpack.c.b16 %v1129, %v1121
    %v2002 = vpack.c.b16 %v1130, %v1122
    %v2003 = vpack.c.b16 %v1131, %v1123
    %v2004 = vpack.c.b16 %v1132, %v1124
    %v2005 = vpack.c.b16 %v1141, %v1133
    %v2006 = vpack.c.b16 %v1142, %v1134
    %v2007 = vpack.c.b16 %v1143, %v1135
    %v2008 = vpack.c.b16 %v1144, %v1136
    %v2009 = vpack.c.b16 %v1145, %v1137
    %v2010 = vpack.c.b16 %v1146, %v1138
    %v2011 = vpack.c.b16 %v1147, %v1139
    %v2012 = vpack.c.b16 %v1148, %v1140
    %v2013 = vpack.c.b16 %v1157, %v1149
    %v2014 = vpack.c.b16 %v1158, %v1150
    %v2015 = vpack.c.b16 %v1159, %v1151
    %v2016 = vpack.c.b16 %v1160, %v1152
    %v2017 = vpack.c.b16 %v1161, %v1153
    %v2018 = vpack.c.b16 %v1162, %v1154
    %v2019 = vpack.c.b16 %v1163, %v1155
    %v2020 = vpack.c.b16 %v1164, %v1156
    %v2021 = vpack.c.b16 %v1173, %v1165
    %v2022 = vpack.c.b16 %v1174, %v1166
    %v2023 = vpack.c.b16 %v1175, %v1167
    %v2024 = vpack.c.b16 %v1176, %v1168
    %v2025 = vpack.c.b16 %v1177, %v1169
    %v2026 = vpack.c.b16 %v1178, %v1170
    %v2027 = vpack.c.b16 %v1179, %v1171
    %v2028 = vpack.c.b16 %v1180, %v1172
    %v2029 = vpack.c.b16 %v1189, %v1181
    %v2030 = vpack.c.b16 %v1190, %v1182
    %v2031 = vpack.c.b16 %v1191, %v1183
    %v2032 = vpack.c.b16 %v1192, %v1184
    %v2033 = vpack.c.b16 %v1193, %v1185
    %v2034 = vpack.c.b16 %v1194, %v1186
    %v2035 = vpack.c.b16 %v1195, %v1187
    %v2036 = vpack.c.b16 %v1196, %v1188
    %v2037 = vpack.c.b16 %v1205, %v1197
    %v2038 = vpack.c.b16 %v1206, %v1198
    %v2039 = vpack.c.b16 %v1207, %v1199
    %v2040 = vpack.c.b16 %v1208, %v1200
    %v2041 = vpack.c.b16 %v1209, %v1201
    %v2042 = vpack.c.b16 %v1210, %v1202
    %v2043 = vpack.c.b16 %v1211, %v1203
    %v2044 = vpack.c.b16 %v1212, %v1204
    %v2045 = vpack.c.b16 %v1221, %v1213
    %v2046 = vpack.c.b16 %v1222, %v1214
    %v2047 = vpack.c.b16 %v1223, %v1215
    %v2048 = vpack.c.b16 %v1224, %v1216
    %v2049 = vpack.c.b16 %v1225, %v1217
    %v2050 = vpack.c.b16 %v1226, %v1218
    %v2051 = vpack.c.b16 %v1227, %v1219
    %v2052 = vpack.c.b16 %v1228, %v1220
    %v2053 = vpack.c.b16 %v1237, %v1229
    %v2054 = vpack.c.b16 %v1238, %v1230
    %v2055 = vpack.c.b16 %v1239, %v1231
    %v2056 = vpack.c.b16 %v1240, %v1232
    %v2057 = vpack.c.b16 %v1241, %v1233
    %v2058 = vpack.c.b16 %v1242, %v1234
    %v2059 = vpack.c.b16 %v1243, %v1235
    %v2060 = vpack.c.b16 %v1244, %v1236
    %v2061 = vpack.c.b16 %v1253, %v1245
    %v2062 = vpack.c.b16 %v1254, %v1246
    %v2063 = vpack.c.b16 %v1255, %v1247
    %v2064 = vpack.c.b16 %v1256, %v1248
    %v2065 = vpack.c.b16 %v1257, %v1249
    %v2066 = vpack.c.b16 %v1258, %v1250
    %v2067 = vpack.c.b16 %v1259, %v1251
    %v2068 = vpack.c.b16 %v1260, %v1252
    %v2069 = vpack.c.b16 %v1269, %v1261
    %v2070 = vpack.c.b16 %v1270, %v1262
    %v2071 = vpack.c.b16 %v1271, %v1263
    %v2072 = vpack.c.b16 %v1272, %v1264
    %v2073 = vpack.c.b16 %v1273, %v1265
    %v2074 = vpack.c.b16 %v1274, %v1266
    %v2075 = vpack.c.b16 %v1275, %v1267
    %v2076 = vpack.c.b16 %v1276, %v1268
    %v2077 = vpack.c.b16 %v1285, %v1277
    %v2078 = vpack.c.b16 %v1286, %v1278
    %v2079 = vpack.c.b16 %v1287, %v1279
    %v2080 = vpack.c.b16 %v1288, %v1280
    %v2081 = vpack.c.b16 %v1289, %v1281
    %v2082 = vpack.c.b16 %v1290, %v1282
    %v2083 = vpack.c.b16 %v1291, %v1283
    %v2084 = vpack.c.b16 %v1292, %v1284
    %v2085 = vpack.c.b16 %v1301, %v1293
    %v2086 = vpack.c.b16 %v1302, %v1294
    %v2087 = vpack.c.b16 %v1303, %v1295
    %v2088 = vpack.c.b16 %v1304, %v1296
    %v2089 = vpack.c.b16 %v1305, %v1297
    %v2090 = vpack.c.b16 %v1306, %v1298
    %v2091 = vpack.c.b16 %v1307, %v1299
    %v2092 = vpack.c.b16 %v1308, %v1300
    %v2093 = vpack.c.b16 %v1317, %v1309
    %v2094 = vpack.c.b16 %v1318, %v1310
    %v2095 = vpack.c.b16 %v1319, %v1311
    %v2096 = vpack.c.b16 %v1320, %v1312
    %v2097 = vpack.c.b16 %v1321, %v1313
    %v2098 = vpack.c.b16 %v1322, %v1314
    %v2099 = vpack.c.b16 %v1323, %v1315
    %v2100 = vpack.c.b16 %v1324, %v1316
    %v2101 = vpack.c.b16 %v1333, %v1325
    %v2102 = vpack.c.b16 %v1334, %v1326
    %v2103 = vpack.c.b16 %v1335, %v1327
    %v2104 = vpack.c.b16 %v1336, %v1328
    %v2105 = vpack.c.b16 %v1337, %v1329
    %v2106 = vpack.c.b16 %v1338, %v1330
    %v2107 = vpack.c.b16 %v1339, %v1331
    %v2108 = vpack.c.b16 %v1340, %v1332
    %v2109 = vpack.c.b16 %v1349, %v1341
    %v2110 = vpack.c.b16 %v1350, %v1342
    %v2111 = vpack.c.b16 %v1351, %v1343
    %v2112 = vpack.c.b16 %v1352, %v1344
    %v2113 = vpack.c.b16 %v1353, %v1345
    %v2114 = vpack.c.b16 %v1354, %v1346
    %v2115 = vpack.c.b16 %v1355, %v1347
    %v2116 = vpack.c.b16 %v1356, %v1348
    %v2117 = vpack.c.b16 %v1365, %v1357
    %v2118 = vpack.c.b16 %v1366, %v1358
    %v2119 = vpack.c.b16 %v1367, %v1359
    %v2120 = vpack.c.b16 %v1368, %v1360
    %v2121 = vpack.c.b16 %v1369, %v1361
    %v2122 = vpack.c.b16 %v1370, %v1362
    %v2123 = vpack.c.b16 %v1371, %v1363
    %v2124 = vpack.c.b16 %v1372, %v1364
    %v2125 = vpack.c.b16 %v1381, %v1373
    %v2126 = vpack.c.b16 %v1382, %v1374
    %v2127 = vpack.c.b16 %v1383, %v1375
    %v2128 = vpack.c.b16 %v1384, %v1376
    %v2129 = vpack.c.b16 %v1385, %v1377
    %v2130 = vpack.c.b16 %v1386, %v1378
    %v2131 = vpack.c.b16 %v1387, %v1379
    %v2132 = vpack.c.b16 %v1388, %v1380
    %v2133 = vpack.c.b16 %v1397, %v1389
    %v2134 = vpack.c.b16 %v1398, %v1390
    %v2135 = vpack.c.b16 %v1399, %v1391
    %v2136 = vpack.c.b16 %v1400, %v1392
    %v2137 = vpack.c.b16 %v1401, %v1393
    %v2138 = vpack.c.b16 %v1402, %v1394
    %v2139 = vpack.c.b16 %v1403, %v1395
    %v2140 = vpack.c.b16 %v1404, %v1396
    %v2141 = vpack.c.b16 %v1413, %v1405
    %v2142 = vpack.c.b16 %v1414, %v1406
    %v2143 = vpack.c.b16 %v1415, %v1407
    %v2144 = vpack.c.b16 %v1416, %v1408
    %v2145 = vpack.c.b16 %v1417, %v1409
    %v2146 = vpack.c.b16 %v1418, %v1410
    %v2147 = vpack.c.b16 %v1419, %v1411
    %v2148 = vpack.c.b16 %v1420, %v1412
    %v2149 = vpack.c.b16 %v1429, %v1421
    %v2150 = vpack.c.b16 %v1430, %v1422
    %v2151 = vpack.c.b16 %v1431, %v1423
    %v2152 = vpack.c.b16 %v1432, %v1424
    %v2153 = vpack.c.b16 %v1433, %v1425
    %v2154 = vpack.c.b16 %v1434, %v1426
    %v2155 = vpack.c.b16 %v1435, %v1427
    %v2156 = vpack.c.b16 %v1436, %v1428
    %v2157 = vpack.c.b16 %v1445, %v1437
    %v2158 = vpack.c.b16 %v1446, %v1438
    %v2159 = vpack.c.b16 %v1447, %v1439
    %v2160 = vpack.c.b16 %v1448, %v1440
    %v2161 = vpack.c.b16 %v1449, %v1441
    %v2162 = vpack.c.b16 %v1450, %v1442
    %v2163 = vpack.c.b16 %v1451, %v1443
    %v2164 = vpack.c.b16 %v1452, %v1444
    %v2165 = vpack.c.b16 %v1461, %v1453
    %v2166 = vpack.c.b16 %v1462, %v1454
    %v2167 = vpack.c.b16 %v1463, %v1455
    %v2168 = vpack.c.b16 %v1464, %v1456
    %v2169 = vpack.c.b16 %v1465, %v1457
    %v2170 = vpack.c.b16 %v1466, %v1458
    %v2171 = vpack.c.b16 %v1467, %v1459
    %v2172 = vpack.c.b16 %v1468, %v1460
    %v2173 = vpack.c.b16 %v1477, %v1469
    %v2174 = vpack.c.b16 %v1478, %v1470
    %v2175 = vpack.c.b16 %v1479, %v1471
    %v2176 = vpack.c.b16 %v1480, %v1472
    %v2177 = vpack.c.b16 %v1481, %v1473
    %v2178 = vpack.c.b16 %v1482, %v1474
    %v2179 = vpack.c.b16 %v1483, %v1475
    %v2180 = vpack.c.b16 %v1484, %v1476
    %v2181 = vpack.c.b16 %v1493, %v1485
    %v2182 = vpack.c.b16 %v1494, %v1486
    %v2183 = vpack.c.b16 %v1495, %v1487
    %v2184 = vpack.c.b16 %v1496, %v1488
    %v2185 = vpack.c.b16 %v1497, %v1489
    %v2186 = vpack.c.b16 %v1498, %v1490
    %v2187 = vpack.c.b16 %v1499, %v1491
    %v2188 = vpack.c.b16 %v1500, %v1492
    %v2189 = vpack.c.b16 %v1509, %v1501
    %v2190 = vpack.c.b16 %v1510, %v1502
    %v2191 = vpack.c.b16 %v1511, %v1503
    %v2192 = vpack.c.b16 %v1512, %v1504
    %v2193 = vpack.c.b16 %v1513, %v1505
    %v2194 = vpack.c.b16 %v1514, %v1506
    %v2195 = vpack.c.b16 %v1515, %v1507
    %v2196 = vpack.c.b16 %v1516, %v1508
    %v2197 = vpack.c.b16 %v1525, %v1517
    %v2198 = vpack.c.b16 %v1526, %v1518
    %v2199 = vpack.c.b16 %v1527, %v1519
    %v2200 = vpack.c.b16 %v1528, %v1520
    %v2201 = vpack.c.b16 %v1529, %v1521
    %v2202 = vpack.c.b16 %v1530, %v1522
    %v2203 = vpack.c.b16 %v1531, %v1523
    %v2204 = vpack.c.b16 %v1532, %v1524
    %v2205 = vpack.c.b16 %v1541, %v1533
    %v2206 = vpack.c.b16 %v1542, %v1534
    %v2207 = vpack.c.b16 %v1543, %v1535
    %v2208 = vpack.c.b16 %v1544, %v1536
    %v2209 = vpack.c.b16 %v1545, %v1537
    %v2210 = vpack.c.b16 %v1546, %v1538
    %v2211 = vpack.c.b16 %v1547, %v1539
    %v2212 = vpack.c.b16 %v1548, %v1540
    %v2213 = vpack.c.b16 %v1557, %v1549
    %v2214 = vpack.c.b16 %v1558, %v1550
    %v2215 = vpack.c.b16 %v1559, %v1551
    %v2216 = vpack.c.b16 %v1560, %v1552
    %v2217 = vpack.c.b16 %v1561, %v1553
    %v2218 = vpack.c.b16 %v1562, %v1554
    %v2219 = vpack.c.b16 %v1563, %v1555
    %v2220 = vpack.c.b16 %v1564, %v1556
    %v2221 = vpack.c.b16 %v1573, %v1565
    %v2222 = vpack.c.b16 %v1574, %v1566
    %v2223 = vpack.c.b16 %v1575, %v1567
    %v2224 = vpack.c.b16 %v1576, %v1568
    %v2225 = vpack.c.b16 %v1577, %v1569
    %v2226 = vpack.c.b16 %v1578, %v1570
    %v2227 = vpack.c.b16 %v1579, %v1571
    %v2228 = vpack.c.b16 %v1580, %v1572
    %v2229 = vpack.c.b16 %v1589, %v1581
    %v2230 = vpack.c.b16 %v1590, %v1582
    %v2231 = vpack.c.b16 %v1591, %v1583
    %v2232 = vpack.c.b16 %v1592, %v1584
    %v2233 = vpack.c.b16 %v1593, %v1585
    %v2234 = vpack.c.b16 %v1594, %v1586
    %v2235 = vpack.c.b16 %v1595, %v1587
    %v2236 = vpack.c.b16 %v1596, %v1588
    %v2237 = vpack.c.b16 %v1605, %v1597
    %v2238 = vpack.c.b16 %v1606, %v1598
    %v2239 = vpack.c.b16 %v1607, %v1599
    %v2240 = vpack.c.b16 %v1608, %v1600
    %v2241 = vpack.c.b16 %v1609, %v1601
    %v2242 = vpack.c.b16 %v1610, %v1602
    %v2243 = vpack.c.b16 %v1611, %v1603
    %v2244 = vpack.c.b16 %v1612, %v1604
    %v2245 = vpack.c.b16 %v1621, %v1613
    %v2246 = vpack.c.b16 %v1622, %v1614
    %v2247 = vpack.c.b16 %v1623, %v1615
    %v2248 = vpack.c.b16 %v1624, %v1616
    %v2249 = vpack.c.b16 %v1625, %v1617
    %v2250 = vpack.c.b16 %v1626, %v1618
    %v2251 = vpack.c.b16 %v1627, %v1619
    %v2252 = vpack.c.b16 %v1628, %v1620
    %v2253 = vpack.c.b16 %v1637, %v1629
    %v2254 = vpack.c.b16 %v1638, %v1630
    %v2255 = vpack.c.b16 %v1639, %v1631
    %v2256 = vpack.c.b16 %v1640, %v1632
    %v2257 = vpack.c.b16 %v1641, %v1633
    %v2258 = vpack.c.b16 %v1642, %v1634
    %v2259 = vpack.c.b16 %v1643, %v1635
    %v2260 = vpack.c.b16 %v1644, %v1636
    %v2261 = vpack.c.b16 %v1653, %v1645
    %v2262 = vpack.c.b16 %v1654, %v1646
    %v2263 = vpack.c.b16 %v1655, %v1647
    %v2264 = vpack.c.b16 %v1656, %v1648
    %v2265 = vpack.c.b16 %v1657, %v1649
    %v2266 = vpack.c.b16 %v1658, %v1650
    %v2267 = vpack.c.b16 %v1659, %v1651
    %v2268 = vpack.c.b16 %v1660, %v1652
    %v2269 = vpack.c.b16 %v1669, %v1661
    %v2270 = vpack.c.b16 %v1670, %v1662
    %v2271 = vpack.c.b16 %v1671, %v1663
    %v2272 = vpack.c.b16 %v1672, %v1664
    %v2273 = vpack.c.b16 %v1673, %v1665
    %v2274 = vpack.c.b16 %v1674, %v1666
    %v2275 = vpack.c.b16 %v1675, %v1667
    %v2276 = vpack.c.b16 %v1676, %v1668
    %v2277 = vpack.c.b16 %v1685, %v1677
    %v2278 = vpack.c.b16 %v1686, %v1678
    %v2279 = vpack.c.b16 %v1687, %v1679
    %v2280 = vpack.c.b16 %v1688, %v1680
    %v2281 = vpack.c.b16 %v1689, %v1681
    %v2282 = vpack.c.b16 %v1690, %v1682
    %v2283 = vpack.c.b16 %v1691, %v1683
    %v2284 = vpack.c.b16 %v1692, %v1684
    %v2285 = vpack.c.b16 %v1701, %v1693
    %v2286 = vpack.c.b16 %v1702, %v1694
    %v2287 = vpack.c.b16 %v1703, %v1695
    %v2288 = vpack.c.b16 %v1704, %v1696
    %v2289 = vpack.c.b16 %v1705, %v1697
    %v2290 = vpack.c.b16 %v1706, %v1698
    %v2291 = vpack.c.b16 %v1707, %v1699
    %v2292 = vpack.c.b16 %v1708, %v1700
    %v2293 = vpack.c.b16 %v1717, %v1709
    %v2294 = vpack.c.b16 %v1718, %v1710
    %v2295 = vpack.c.b16 %v1719, %v1711
    %v2296 = vpack.c.b16 %v1720, %v1712
    %v2297 = vpack.c.b16 %v1721, %v1713
    %v2298 = vpack.c.b16 %v1722, %v1714
    %v2299 = vpack.c.b16 %v1723, %v1715
    %v2300 = vpack.c.b16 %v1724, %v1716
    %v2301 = vpack.c.b16 %v1733, %v1725
    %v2302 = vpack.c.b16 %v1734, %v1726
    %v2303 = vpack.c.b16 %v1735, %v1727
    %v2304 = vpack.c.b16 %v1736, %v1728
    %v2305 = vpack.c.b16 %v1737, %v1729
    %v2306 = vpack.c.b16 %v1738, %v1730
    %v2307 = vpack.c.b16 %v1739, %v1731
    %v2308 = vpack.c.b16 %v1740, %v1732
    %v2309 = vpack.c.b16 %v1749, %v1741
    %v2310 = vpack.c.b16 %v1750, %v1742
    %v2311 = vpack.c.b16 %v1751, %v1743
    %v2312 = vpack.c.b16 %v1752, %v1744
    %v2313 = vpack.c.b16 %v1753, %v1745
    %v2314 = vpack.c.b16 %v1754, %v1746
    %v2315 = vpack.c.b16 %v1755, %v1747
    %v2316 = vpack.c.b16 %v1756, %v1748
    %v2317 = vpack.c.b16 %v1765, %v1757
    %v2318 = vpack.c.b16 %v1766, %v1758
    %v2319 = vpack.c.b16 %v1767, %v1759
    %v2320 = vpack.c.b16 %v1768, %v1760
    %v2321 = vpack.c.b16 %v1769, %v1761
    %v2322 = vpack.c.b16 %v1770, %v1762
    %v2323 = vpack.c.b16 %v1771, %v1763
    %v2324 = vpack.c.b16 %v1772, %v1764
    %v2325 = vpack.c.b16 %v1781, %v1773
    %v2326 = vpack.c.b16 %v1782, %v1774
    %v2327 = vpack.c.b16 %v1783, %v1775
    %v2328 = vpack.c.b16 %v1784, %v1776
    %v2329 = vpack.c.b16 %v1785, %v1777
    %v2330 = vpack.c.b16 %v1786, %v1778
    %v2331 = vpack.c.b16 %v1787, %v1779
    %v2332 = vpack.c.b16 %v1788, %v1780
    %v2333 = vpack.c.b16 %v1797, %v1789
    %v2334 = vpack.c.b16 %v1798, %v1790
    %v2335 = vpack.c.b16 %v1799, %v1791
    %v2336 = vpack.c.b16 %v1800, %v1792
    %v2337 = vpack.c.b16 %v1801, %v1793
    %v2338 = vpack.c.b16 %v1802, %v1794
    %v2339 = vpack.c.b16 %v1803, %v1795
    %v2340 = vpack.c.b16 %v1804, %v1796
    %v2341 = vpack.c.b16 %v1813, %v1805
    %v2342 = vpack.c.b16 %v1814, %v1806
    %v2343 = vpack.c.b16 %v1815, %v1807
    %v2344 = vpack.c.b16 %v1816, %v1808
    %v2345 = vpack.c.b16 %v1817, %v1809
    %v2346 = vpack.c.b16 %v1818, %v1810
    %v2347 = vpack.c.b16 %v1819, %v1811
    %v2348 = vpack.c.b16 %v1820, %v1812
    %v2349 = vpack.c.b16 %v1829, %v1821
    %v2350 = vpack.c.b16 %v1830, %v1822
    %v2351 = vpack.c.b16 %v1831, %v1823
    %v2352 = vpack.c.b16 %v1832, %v1824
    %v2353 = vpack.c.b16 %v1833, %v1825
    %v2354 = vpack.c.b16 %v1834, %v1826
    %v2355 = vpack.c.b16 %v1835, %v1827
    %v2356 = vpack.c.b16 %v1836, %v1828
    %v2357 = vpack.c.b16 %v1845, %v1837
    %v2358 = vpack.c.b16 %v1846, %v1838
    %v2359 = vpack.c.b16 %v1847, %v1839
    %v2360 = vpack.c.b16 %v1848, %v1840
    %v2361 = vpack.c.b16 %v1849, %v1841
    %v2362 = vpack.c.b16 %v1850, %v1842
    %v2363 = vpack.c.b16 %v1851, %v1843
    %v2364 = vpack.c.b16 %v1852, %v1844
    %v2365 = vpack.c.b16 %v1861, %v1853
    %v2366 = vpack.c.b16 %v1862, %v1854
    %v2367 = vpack.c.b16 %v1863, %v1855
    %v2368 = vpack.c.b16 %v1864, %v1856
    %v2369 = vpack.c.b16 %v1865, %v1857
    %v2370 = vpack.c.b16 %v1866, %v1858
    %v2371 = vpack.c.b16 %v1867, %v1859
    %v2372 = vpack.c.b16 %v1868, %v1860
    %v2373 = vpack.c.b16 %v1877, %v1869
    %v2374 = vpack.c.b16 %v1878, %v1870
    %v2375 = vpack.c.b16 %v1879, %v1871
    %v2376 = vpack.c.b16 %v1880, %v1872
    %v2377 = vpack.c.b16 %v1881, %v1873
    %v2378 = vpack.c.b16 %v1882, %v1874
    %v2379 = vpack.c.b16 %v1883, %v1875
    %v2380 = vpack.c.b16 %v1884, %v1876
    %v2381 = vpack.c.b16 %v1893, %v1885
    %v2382 = vpack.c.b16 %v1894, %v1886
    %v2383 = vpack.c.b16 %v1895, %v1887
    %v2384 = vpack.c.b16 %v1896, %v1888
    %v2385 = vpack.c.b16 %v1897, %v1889
    %v2386 = vpack.c.b16 %v1898, %v1890
    %v2387 = vpack.c.b16 %v1899, %v1891
    %v2388 = vpack.c.b16 %v1900, %v1892
    %v2389 = vpack.c.b16 %v1909, %v1901
    %v2390 = vpack.c.b16 %v1910, %v1902
    %v2391 = vpack.c.b16 %v1911, %v1903
    %v2392 = vpack.c.b16 %v1912, %v1904
    %v2393 = vpack.c.b16 %v1913, %v1905
    %v2394 = vpack.c.b16 %v1914, %v1906
    %v2395 = vpack.c.b16 %v1915, %v1907
    %v2396 = vpack.c.b16 %v1916, %v1908
    %v2397 = vpack.c.b16 %v1925, %v1917
    %v2398 = vpack.c.b16 %v1926, %v1918
    %v2399 = vpack.c.b16 %v1927, %v1919
    %v2400 = vpack.c.b16 %v1928, %v1920
    %v2401 = vpack.c.b16 %v1929, %v1921
    %v2402 = vpack.c.b16 %v1930, %v1922
    %v2403 = vpack.c.b16 %v1931, %v1923
    %v2404 = vpack.c.b16 %v1932, %v1924
    %v2405 = vpack.c.b16 %v1941, %v1933
    %v2406 = vpack.c.b16 %v1942, %v1934
    %v2407 = vpack.c.b16 %v1943, %v1935
    %v2408 = vpack.c.b16 %v1944, %v1936
    %v2409 = vpack.c.b16 %v1945, %v1937
    %v2410 = vpack.c.b16 %v1946, %v1938
    %v2411 = vpack.c.b16 %v1947, %v1939
    %v2412 = vpack.c.b16 %v1948, %v1940
    %v2413 = vpack.c.b16 %v1957, %v1949
    %v2414 = vpack.c.b16 %v1958, %v1950
    %v2415 = vpack.c.b16 %v1959, %v1951
    %v2416 = vpack.c.b16 %v1960, %v1952
    %v2417 = vpack.c.b16 %v1961, %v1953
    %v2418 = vpack.c.b16 %v1962, %v1954
    %v2419 = vpack.c.b16 %v1963, %v1955
    %v2420 = vpack.c.b16 %v1964, %v1956
    %v2421 = vpack.c.b16 %v1973, %v1965
    %v2422 = vpack.c.b16 %v1974, %v1966
    %v2423 = vpack.c.b16 %v1975, %v1967
    %v2424 = vpack.c.b16 %v1976, %v1968
    %v2425 = vpack.c.b16 %v1977, %v1969
    %v2426 = vpack.c.b16 %v1978, %v1970
    %v2427 = vpack.c.b16 %v1979, %v1971
    %v2428 = vpack.c.b16 %v1980, %v1972
    %2877 = vmatprep.subr.bf16.mxu0 %v2038
    %2878 = vmatpush1.bf16.msra.mxu0 %v2037
    %2879 = vmatprep.subr.bf16.mxu0 %v2030
    %2880 = vmatpush1.bf16.msra.mxu0 %v2029
    %2881 = vmatprep.subr.bf16.mxu0 %v2022
    %2882 = vmatpush1.bf16.msra.mxu0 %v2021
    %2883 = vmatprep.subr.bf16.mxu0 %v2014
    %2884 = vmatpush1.bf16.msra.mxu0 %v2013
    %2885 = vmatprep.subr.bf16.mxu0 %v2006
    %2886 = vmatpush1.bf16.msra.mxu0 %v2005
    %2887 = vmatprep.subr.bf16.mxu0 %v1998
    %2888 = vmatpush1.bf16.msra.mxu0 %v1997
    %2889 = vmatprep.subr.bf16.mxu0 %v1990
    %2890 = vmatpush1.bf16.msra.mxu0 %v1989
    %2891 = vmatprep.subr.bf16.mxu0 %v1982
    %2892 = vmatpush1.bf16.msra.mxu0 %v1981
    %2893 = vmatprep.subr.bf16.mxu0 %v2102
    %2894 = vmatpush2.bf16.msra.mxu0 %v2101
    %2895 = vmatprep.subr.bf16.mxu0 %v2094
    %2896 = vmatpush2.bf16.msra.mxu0 %v2093
    %2897 = vmatprep.subr.bf16.mxu0 %v2086
    %2898 = vmatpush2.bf16.msra.mxu0 %v2085
    %2899 = vmatprep.subr.bf16.mxu0 %v2078
    %2900 = vmatpush2.bf16.msra.mxu0 %v2077
    %2901 = vmatprep.subr.bf16.mxu0 %v2070
    %2902 = vmatpush2.bf16.msra.mxu0 %v2069
    %2903 = vmatprep.subr.bf16.mxu0 %v2062
    %2904 = vmatpush2.bf16.msra.mxu0 %v2061
    %2905 = vmatprep.subr.bf16.mxu0 %v2054
    %2906 = vmatpush2.bf16.msra.mxu0 %v2053
    %2907 = vmatprep.subr.bf16.mxu0 %v2046
    %2908 = vmatpush2.bf16.msra.mxu0 %v2045
    %2909 = vmatprep.mubr.bf16.mxu0 %v624
    %2910 = vmatmul.mubr.bf16.gmra.mxu0 %v623
    %v2911 = vpop.f32.mrf.mxu0
    %v2912 = vadd.f32 %v564, %v2911
    %v2913 = vpop.f32.mrf.mxu0
    %v2914 = vadd.f32 %v568, %v2913
    %v2915 = vpop.f32.mrf.mxu0
    %v2916 = vadd.f32 %v564, %v2915
    %v2917 = vpop.f32.mrf.mxu0
    %v2918 = vadd.f32 %v568, %v2917
    %2919 = vdwg.mxu0
    %2920 = vmatprep.subr.bf16.mxu0 %v2166
    %2921 = vmatpush1.bf16.msra.mxu0 %v2165
    %2922 = vmatprep.subr.bf16.mxu0 %v2158
    %2923 = vmatpush1.bf16.msra.mxu0 %v2157
    %2924 = vmatprep.subr.bf16.mxu0 %v2150
    %2925 = vmatpush1.bf16.msra.mxu0 %v2149
    %2926 = vmatprep.subr.bf16.mxu0 %v2142
    %2927 = vmatpush1.bf16.msra.mxu0 %v2141
    %2928 = vmatprep.subr.bf16.mxu0 %v2134
    %2929 = vmatpush1.bf16.msra.mxu0 %v2133
    %2930 = vmatprep.subr.bf16.mxu0 %v2126
    %2931 = vmatpush1.bf16.msra.mxu0 %v2125
    %2932 = vmatprep.subr.bf16.mxu0 %v2118
    %2933 = vmatpush1.bf16.msra.mxu0 %v2117
    %2934 = vmatprep.subr.bf16.mxu0 %v2110
    %2935 = vmatpush1.bf16.msra.mxu0 %v2109
    %2936 = vmatprep.subr.bf16.mxu0 %v2230
    %2937 = vmatpush2.bf16.msra.mxu0 %v2229
    %2938 = vmatprep.subr.bf16.mxu0 %v2222
    %2939 = vmatpush2.bf16.msra.mxu0 %v2221
    %2940 = vmatprep.subr.bf16.mxu0 %v2214
    %2941 = vmatpush2.bf16.msra.mxu0 %v2213
    %2942 = vmatprep.subr.bf16.mxu0 %v2206
    %2943 = vmatpush2.bf16.msra.mxu0 %v2205
    %2944 = vmatprep.subr.bf16.mxu0 %v2198
    %2945 = vmatpush2.bf16.msra.mxu0 %v2197
    %2946 = vmatprep.subr.bf16.mxu0 %v2190
    %2947 = vmatpush2.bf16.msra.mxu0 %v2189
    %2948 = vmatprep.subr.bf16.mxu0 %v2182
    %2949 = vmatpush2.bf16.msra.mxu0 %v2181
    %2950 = vmatprep.subr.bf16.mxu0 %v2174
    %2951 = vmatpush2.bf16.msra.mxu0 %v2173
    %2952 = vmatprep.mubr.bf16.mxu0 %v626
    %2953 = vmatmul.mubr.bf16.gmra.mxu0 %v625
    %v2954 = vpop.f32.mrf.mxu0
    %v2955 = vadd.f32 %v2912, %v2954
    %v2956 = vpop.f32.mrf.mxu0
    %v2957 = vadd.f32 %v2914, %v2956
    %v2958 = vpop.f32.mrf.mxu0
    %v2959 = vadd.f32 %v2916, %v2958
    %v2960 = vpop.f32.mrf.mxu0
    %v2961 = vadd.f32 %v2918, %v2960
    %2962 = vdwg.mxu0
    %2963 = vmatprep.subr.bf16.mxu0 %v2294
    %2964 = vmatpush1.bf16.msra.mxu0 %v2293
    %2965 = vmatprep.subr.bf16.mxu0 %v2286
    %2966 = vmatpush1.bf16.msra.mxu0 %v2285
    %2967 = vmatprep.subr.bf16.mxu0 %v2278
    %2968 = vmatpush1.bf16.msra.mxu0 %v2277
    %2969 = vmatprep.subr.bf16.mxu0 %v2270
    %2970 = vmatpush1.bf16.msra.mxu0 %v2269
    %2971 = vmatprep.subr.bf16.mxu0 %v2262
    %2972 = vmatpush1.bf16.msra.mxu0 %v2261
    %2973 = vmatprep.subr.bf16.mxu0 %v2254
    %2974 = vmatpush1.bf16.msra.mxu0 %v2253
    %2975 = vmatprep.subr.bf16.mxu0 %v2246
    %2976 = vmatpush1.bf16.msra.mxu0 %v2245
    %2977 = vmatprep.subr.bf16.mxu0 %v2238
    %2978 = vmatpush1.bf16.msra.mxu0 %v2237
    %2979 = vmatprep.subr.bf16.mxu0 %v2358
    %2980 = vmatpush2.bf16.msra.mxu0 %v2357
    %2981 = vmatprep.subr.bf16.mxu0 %v2350
    %2982 = vmatpush2.bf16.msra.mxu0 %v2349
    %2983 = vmatprep.subr.bf16.mxu0 %v2342
    %2984 = vmatpush2.bf16.msra.mxu0 %v2341
    %2985 = vmatprep.subr.bf16.mxu0 %v2334
    %2986 = vmatpush2.bf16.msra.mxu0 %v2333
    %2987 = vmatprep.subr.bf16.mxu0 %v2326
    %2988 = vmatpush2.bf16.msra.mxu0 %v2325
    %2989 = vmatprep.subr.bf16.mxu0 %v2318
    %2990 = vmatpush2.bf16.msra.mxu0 %v2317
    %2991 = vmatprep.subr.bf16.mxu0 %v2310
    %2992 = vmatpush2.bf16.msra.mxu0 %v2309
    %2993 = vmatprep.subr.bf16.mxu0 %v2302
    %2994 = vmatpush2.bf16.msra.mxu0 %v2301
    %2995 = vmatprep.mubr.bf16.mxu0 %v628
    %2996 = vmatmul.mubr.bf16.gmra.mxu0 %v627
    %v2997 = vpop.f32.mrf.mxu0
    %v2998 = vadd.f32 %v2955, %v2997
    %v2999 = vpop.f32.mrf.mxu0
    %v3000 = vadd.f32 %v2957, %v2999
    %v3001 = vpop.f32.mrf.mxu0
    %v3002 = vadd.f32 %v2959, %v3001
    %v3003 = vpop.f32.mrf.mxu0
    %v3004 = vadd.f32 %v2961, %v3003
    %3005 = vdwg.mxu0
    %3006 = vmatprep.subr.bf16.mxu0 %v2422
    %3007 = vmatpush1.bf16.msra.mxu0 %v2421
    %3008 = vmatprep.subr.bf16.mxu0 %v2414
    %3009 = vmatpush1.bf16.msra.mxu0 %v2413
    %3010 = vmatprep.subr.bf16.mxu0 %v2406
    %3011 = vmatpush1.bf16.msra.mxu0 %v2405
    %3012 = vmatprep.subr.bf16.mxu0 %v2398
    %3013 = vmatpush1.bf16.msra.mxu0 %v2397
    %3014 = vmatprep.subr.bf16.mxu0 %v2390
    %3015 = vmatpush1.bf16.msra.mxu0 %v2389
    %3016 = vmatprep.subr.bf16.mxu0 %v2382
    %3017 = vmatpush1.bf16.msra.mxu0 %v2381
    %3018 = vmatprep.subr.bf16.mxu0 %v2374
    %3019 = vmatpush1.bf16.msra.mxu0 %v2373
    %3020 = vmatprep.subr.bf16.mxu0 %v2366
    %3021 = vmatpush1.bf16.msra.mxu0 %v2365
    %3022 = vmatprep.subr.bf16.mxu0 0
    %3023 = vmatpush2.bf16.msra.mxu0 0
    %3024 = vmatprep.subr.bf16.mxu0 0
    %3025 = vmatpush2.bf16.msra.mxu0 0
    %3026 = vmatprep.subr.bf16.mxu0 0
    %3027 = vmatpush2.bf16.msra.mxu0 0
    %3028 = vmatprep.subr.bf16.mxu0 0
    %3029 = vmatpush2.bf16.msra.mxu0 0
    %3030 = vmatprep.subr.bf16.mxu0 0
    %3031 = vmatpush2.bf16.msra.mxu0 0
    %3032 = vmatprep.subr.bf16.mxu0 0
    %3033 = vmatpush2.bf16.msra.mxu0 0
    %3034 = vmatprep.subr.bf16.mxu0 0
    %3035 = vmatpush2.bf16.msra.mxu0 0
    %3036 = vmatprep.subr.bf16.mxu0 0
    %3037 = vmatpush2.bf16.msra.mxu0 0
    %3038 = vmatprep.mubr.bf16.mxu0 0
    %3039 = vmatmul.mubr.bf16.gmra.mxu0 %v629
    %v3040 = vpop.f32.mrf.mxu0
    %v3041 = vadd.f32 %v2998, %v3040
    %v3042 = vpop.f32.mrf.mxu0
    %v3043 = vadd.f32 %v3000, %v3042
    %v3044 = vpop.f32.mrf.mxu0
    %v3045 = vadd.f32 %v3002, %v3044
    %v3046 = vpop.f32.mrf.mxu0
    %v3047 = vadd.f32 %v3004, %v3046
    %3048 = vdwg.mxu0
    %3049 = vmatprep.subr.bf16.mxu0 %v2040
    %3050 = vmatpush1.bf16.msra.mxu0 %v2039
    %3051 = vmatprep.subr.bf16.mxu0 %v2032
    %3052 = vmatpush1.bf16.msra.mxu0 %v2031
    %3053 = vmatprep.subr.bf16.mxu0 %v2024
    %3054 = vmatpush1.bf16.msra.mxu0 %v2023
    %3055 = vmatprep.subr.bf16.mxu0 %v2016
    %3056 = vmatpush1.bf16.msra.mxu0 %v2015
    %3057 = vmatprep.subr.bf16.mxu0 %v2008
    %3058 = vmatpush1.bf16.msra.mxu0 %v2007
    %3059 = vmatprep.subr.bf16.mxu0 %v2000
    %3060 = vmatpush1.bf16.msra.mxu0 %v1999
    %3061 = vmatprep.subr.bf16.mxu0 %v1992
    %3062 = vmatpush1.bf16.msra.mxu0 %v1991
    %3063 = vmatprep.subr.bf16.mxu0 %v1984
    %3064 = vmatpush1.bf16.msra.mxu0 %v1983
    %3065 = vmatprep.subr.bf16.mxu0 %v2104
    %3066 = vmatpush2.bf16.msra.mxu0 %v2103
    %3067 = vmatprep.subr.bf16.mxu0 %v2096
    %3068 = vmatpush2.bf16.msra.mxu0 %v2095
    %3069 = vmatprep.subr.bf16.mxu0 %v2088
    %3070 = vmatpush2.bf16.msra.mxu0 %v2087
    %3071 = vmatprep.subr.bf16.mxu0 %v2080
    %3072 = vmatpush2.bf16.msra.mxu0 %v2079
    %3073 = vmatprep.subr.bf16.mxu0 %v2072
    %3074 = vmatpush2.bf16.msra.mxu0 %v2071
    %3075 = vmatprep.subr.bf16.mxu0 %v2064
    %3076 = vmatpush2.bf16.msra.mxu0 %v2063
    %3077 = vmatprep.subr.bf16.mxu0 %v2056
    %3078 = vmatpush2.bf16.msra.mxu0 %v2055
    %3079 = vmatprep.subr.bf16.mxu0 %v2048
    %3080 = vmatpush2.bf16.msra.mxu0 %v2047
    %3081 = vmatprep.mubr.bf16.mxu0 %v624
    %3082 = vmatmul.mubr.bf16.gmra.mxu0 %v623
    %v3083 = vpop.f32.mrf.mxu0
    %v3084 = vadd.f32 %v572, %v3083
    %v3085 = vpop.f32.mrf.mxu0
    %v3086 = vadd.f32 %v576, %v3085
    %v3087 = vpop.f32.mrf.mxu0
    %v3088 = vadd.f32 %v572, %v3087
    %v3089 = vpop.f32.mrf.mxu0
    %v3090 = vadd.f32 %v576, %v3089
    %3091 = vdwg.mxu0
    %3092 = vmatprep.subr.bf16.mxu0 %v2168
    %3093 = vmatpush1.bf16.msra.mxu0 %v2167
    %3094 = vmatprep.subr.bf16.mxu0 %v2160
    %3095 = vmatpush1.bf16.msra.mxu0 %v2159
    %3096 = vmatprep.subr.bf16.mxu0 %v2152
    %3097 = vmatpush1.bf16.msra.mxu0 %v2151
    %3098 = vmatprep.subr.bf16.mxu0 %v2144
    %3099 = vmatpush1.bf16.msra.mxu0 %v2143
    %3100 = vmatprep.subr.bf16.mxu0 %v2136
    %3101 = vmatpush1.bf16.msra.mxu0 %v2135
    %3102 = vmatprep.subr.bf16.mxu0 %v2128
    %3103 = vmatpush1.bf16.msra.mxu0 %v2127
    %3104 = vmatprep.subr.bf16.mxu0 %v2120
    %3105 = vmatpush1.bf16.msra.mxu0 %v2119
    %3106 = vmatprep.subr.bf16.mxu0 %v2112
    %3107 = vmatpush1.bf16.msra.mxu0 %v2111
    %3108 = vmatprep.subr.bf16.mxu0 %v2232
    %3109 = vmatpush2.bf16.msra.mxu0 %v2231
    %3110 = vmatprep.subr.bf16.mxu0 %v2224
    %3111 = vmatpush2.bf16.msra.mxu0 %v2223
    %3112 = vmatprep.subr.bf16.mxu0 %v2216
    %3113 = vmatpush2.bf16.msra.mxu0 %v2215
    %3114 = vmatprep.subr.bf16.mxu0 %v2208
    %3115 = vmatpush2.bf16.msra.mxu0 %v2207
    %3116 = vmatprep.subr.bf16.mxu0 %v2200
    %3117 = vmatpush2.bf16.msra.mxu0 %v2199
    %3118 = vmatprep.subr.bf16.mxu0 %v2192
    %3119 = vmatpush2.bf16.msra.mxu0 %v2191
    %3120 = vmatprep.subr.bf16.mxu0 %v2184
    %3121 = vmatpush2.bf16.msra.mxu0 %v2183
    %3122 = vmatprep.subr.bf16.mxu0 %v2176
    %3123 = vmatpush2.bf16.msra.mxu0 %v2175
    %3124 = vmatprep.mubr.bf16.mxu0 %v626
    %3125 = vmatmul.mubr.bf16.gmra.mxu0 %v625
    %v3126 = vpop.f32.mrf.mxu0
    %v3127 = vadd.f32 %v3084, %v3126
    %v3128 = vpop.f32.mrf.mxu0
    %v3129 = vadd.f32 %v3086, %v3128
    %v3130 = vpop.f32.mrf.mxu0
    %v3131 = vadd.f32 %v3088, %v3130
    %v3132 = vpop.f32.mrf.mxu0
    %v3133 = vadd.f32 %v3090, %v3132
    %3134 = vdwg.mxu0
    %3135 = vmatprep.subr.bf16.mxu0 %v2296
    %3136 = vmatpush1.bf16.msra.mxu0 %v2295
    %3137 = vmatprep.subr.bf16.mxu0 %v2288
    %3138 = vmatpush1.bf16.msra.mxu0 %v2287
    %3139 = vmatprep.subr.bf16.mxu0 %v2280
    %3140 = vmatpush1.bf16.msra.mxu0 %v2279
    %3141 = vmatprep.subr.bf16.mxu0 %v2272
    %3142 = vmatpush1.bf16.msra.mxu0 %v2271
    %3143 = vmatprep.subr.bf16.mxu0 %v2264
    %3144 = vmatpush1.bf16.msra.mxu0 %v2263
    %3145 = vmatprep.subr.bf16.mxu0 %v2256
    %3146 = vmatpush1.bf16.msra.mxu0 %v2255
    %3147 = vmatprep.subr.bf16.mxu0 %v2248
    %3148 = vmatpush1.bf16.msra.mxu0 %v2247
    %3149 = vmatprep.subr.bf16.mxu0 %v2240
    %3150 = vmatpush1.bf16.msra.mxu0 %v2239
    %3151 = vmatprep.subr.bf16.mxu0 %v2360
    %3152 = vmatpush2.bf16.msra.mxu0 %v2359
    %3153 = vmatprep.subr.bf16.mxu0 %v2352
    %3154 = vmatpush2.bf16.msra.mxu0 %v2351
    %3155 = vmatprep.subr.bf16.mxu0 %v2344
    %3156 = vmatpush2.bf16.msra.mxu0 %v2343
    %3157 = vmatprep.subr.bf16.mxu0 %v2336
    %3158 = vmatpush2.bf16.msra.mxu0 %v2335
    %3159 = vmatprep.subr.bf16.mxu0 %v2328
    %3160 = vmatpush2.bf16.msra.mxu0 %v2327
    %3161 = vmatprep.subr.bf16.mxu0 %v2320
    %3162 = vmatpush2.bf16.msra.mxu0 %v2319
    %3163 = vmatprep.subr.bf16.mxu0 %v2312
    %3164 = vmatpush2.bf16.msra.mxu0 %v2311
    %3165 = vmatprep.subr.bf16.mxu0 %v2304
    %3166 = vmatpush2.bf16.msra.mxu0 %v2303
    %3167 = vmatprep.mubr.bf16.mxu0 %v628
    %3168 = vmatmul.mubr.bf16.gmra.mxu0 %v627
    %v3169 = vpop.f32.mrf.mxu0
    %v3170 = vadd.f32 %v3127, %v3169
    %v3171 = vpop.f32.mrf.mxu0
    %v3172 = vadd.f32 %v3129, %v3171
    %v3173 = vpop.f32.mrf.mxu0
    %v3174 = vadd.f32 %v3131, %v3173
    %v3175 = vpop.f32.mrf.mxu0
    %v3176 = vadd.f32 %v3133, %v3175
    %3177 = vdwg.mxu0
    %3178 = vmatprep.subr.bf16.mxu0 %v2424
    %3179 = vmatpush1.bf16.msra.mxu0 %v2423
    %3180 = vmatprep.subr.bf16.mxu0 %v2416
    %3181 = vmatpush1.bf16.msra.mxu0 %v2415
    %3182 = vmatprep.subr.bf16.mxu0 %v2408
    %3183 = vmatpush1.bf16.msra.mxu0 %v2407
    %3184 = vmatprep.subr.bf16.mxu0 %v2400
    %3185 = vmatpush1.bf16.msra.mxu0 %v2399
    %3186 = vmatprep.subr.bf16.mxu0 %v2392
    %3187 = vmatpush1.bf16.msra.mxu0 %v2391
    %3188 = vmatprep.subr.bf16.mxu0 %v2384
    %3189 = vmatpush1.bf16.msra.mxu0 %v2383
    %3190 = vmatprep.subr.bf16.mxu0 %v2376
    %3191 = vmatpush1.bf16.msra.mxu0 %v2375
    %3192 = vmatprep.subr.bf16.mxu0 %v2368
    %3193 = vmatpush1.bf16.msra.mxu0 %v2367
    %3194 = vmatprep.subr.bf16.mxu0 0
    %3195 = vmatpush2.bf16.msra.mxu0 0
    %3196 = vmatprep.subr.bf16.mxu0 0
    %3197 = vmatpush2.bf16.msra.mxu0 0
    %3198 = vmatprep.subr.bf16.mxu0 0
    %3199 = vmatpush2.bf16.msra.mxu0 0
    %3200 = vmatprep.subr.bf16.mxu0 0
    %3201 = vmatpush2.bf16.msra.mxu0 0
    %3202 = vmatprep.subr.bf16.mxu0 0
    %3203 = vmatpush2.bf16.msra.mxu0 0
    %3204 = vmatprep.subr.bf16.mxu0 0
    %3205 = vmatpush2.bf16.msra.mxu0 0
    %3206 = vmatprep.subr.bf16.mxu0 0
    %3207 = vmatpush2.bf16.msra.mxu0 0
    %3208 = vmatprep.subr.bf16.mxu0 0
    %3209 = vmatpush2.bf16.msra.mxu0 0
    %3210 = vmatprep.mubr.bf16.mxu0 0
    %3211 = vmatmul.mubr.bf16.gmra.mxu0 %v629
    %v3212 = vpop.f32.mrf.mxu0
    %v3213 = vadd.f32 %v3170, %v3212
    %v3214 = vpop.f32.mrf.mxu0
    %v3215 = vadd.f32 %v3172, %v3214
    %v3216 = vpop.f32.mrf.mxu0
    %v3217 = vadd.f32 %v3174, %v3216
    %v3218 = vpop.f32.mrf.mxu0
    %v3219 = vadd.f32 %v3176, %v3218
    %3220 = vdwg.mxu0
    %3221 = vmatprep.subr.bf16.mxu0 %v2042
    %3222 = vmatpush1.bf16.msra.mxu0 %v2041
    %3223 = vmatprep.subr.bf16.mxu0 %v2034
    %3224 = vmatpush1.bf16.msra.mxu0 %v2033
    %3225 = vmatprep.subr.bf16.mxu0 %v2026
    %3226 = vmatpush1.bf16.msra.mxu0 %v2025
    %3227 = vmatprep.subr.bf16.mxu0 %v2018
    %3228 = vmatpush1.bf16.msra.mxu0 %v2017
    %3229 = vmatprep.subr.bf16.mxu0 %v2010
    %3230 = vmatpush1.bf16.msra.mxu0 %v2009
    %3231 = vmatprep.subr.bf16.mxu0 %v2002
    %3232 = vmatpush1.bf16.msra.mxu0 %v2001
    %3233 = vmatprep.subr.bf16.mxu0 %v1994
    %3234 = vmatpush1.bf16.msra.mxu0 %v1993
    %3235 = vmatprep.subr.bf16.mxu0 %v1986
    %3236 = vmatpush1.bf16.msra.mxu0 %v1985
    %3237 = vmatprep.subr.bf16.mxu0 %v2106
    %3238 = vmatpush2.bf16.msra.mxu0 %v2105
    %3239 = vmatprep.subr.bf16.mxu0 %v2098
    %3240 = vmatpush2.bf16.msra.mxu0 %v2097
    %3241 = vmatprep.subr.bf16.mxu0 %v2090
    %3242 = vmatpush2.bf16.msra.mxu0 %v2089
    %3243 = vmatprep.subr.bf16.mxu0 %v2082
    %3244 = vmatpush2.bf16.msra.mxu0 %v2081
    %3245 = vmatprep.subr.bf16.mxu0 %v2074
    %3246 = vmatpush2.bf16.msra.mxu0 %v2073
    %3247 = vmatprep.subr.bf16.mxu0 %v2066
    %3248 = vmatpush2.bf16.msra.mxu0 %v2065
    %3249 = vmatprep.subr.bf16.mxu0 %v2058
    %3250 = vmatpush2.bf16.msra.mxu0 %v2057
    %3251 = vmatprep.subr.bf16.mxu0 %v2050
    %3252 = vmatpush2.bf16.msra.mxu0 %v2049
    %3253 = vmatprep.mubr.bf16.mxu0 %v624
    %3254 = vmatmul.mubr.bf16.gmra.mxu0 %v623
    %v3255 = vpop.f32.mrf.mxu0
    %v3256 = vadd.f32 %v580, %v3255
    %v3257 = vpop.f32.mrf.mxu0
    %v3258 = vadd.f32 %v584, %v3257
    %v3259 = vpop.f32.mrf.mxu0
    %v3260 = vadd.f32 %v580, %v3259
    %v3261 = vpop.f32.mrf.mxu0
    %v3262 = vadd.f32 %v584, %v3261
    %3263 = vdwg.mxu0
    %3264 = vmatprep.subr.bf16.mxu0 %v2170
    %3265 = vmatpush1.bf16.msra.mxu0 %v2169
    %3266 = vmatprep.subr.bf16.mxu0 %v2162
    %3267 = vmatpush1.bf16.msra.mxu0 %v2161
    %3268 = vmatprep.subr.bf16.mxu0 %v2154
    %3269 = vmatpush1.bf16.msra.mxu0 %v2153
    %3270 = vmatprep.subr.bf16.mxu0 %v2146
    %3271 = vmatpush1.bf16.msra.mxu0 %v2145
    %3272 = vmatprep.subr.bf16.mxu0 %v2138
    %3273 = vmatpush1.bf16.msra.mxu0 %v2137
    %3274 = vmatprep.subr.bf16.mxu0 %v2130
    %3275 = vmatpush1.bf16.msra.mxu0 %v2129
    %3276 = vmatprep.subr.bf16.mxu0 %v2122
    %3277 = vmatpush1.bf16.msra.mxu0 %v2121
    %3278 = vmatprep.subr.bf16.mxu0 %v2114
    %3279 = vmatpush1.bf16.msra.mxu0 %v2113
    %3280 = vmatprep.subr.bf16.mxu0 %v2234
    %3281 = vmatpush2.bf16.msra.mxu0 %v2233
    %3282 = vmatprep.subr.bf16.mxu0 %v2226
    %3283 = vmatpush2.bf16.msra.mxu0 %v2225
    %3284 = vmatprep.subr.bf16.mxu0 %v2218
    %3285 = vmatpush2.bf16.msra.mxu0 %v2217
    %3286 = vmatprep.subr.bf16.mxu0 %v2210
    %3287 = vmatpush2.bf16.msra.mxu0 %v2209
    %3288 = vmatprep.subr.bf16.mxu0 %v2202
    %3289 = vmatpush2.bf16.msra.mxu0 %v2201
    %3290 = vmatprep.subr.bf16.mxu0 %v2194
    %3291 = vmatpush2.bf16.msra.mxu0 %v2193
    %3292 = vmatprep.subr.bf16.mxu0 %v2186
    %3293 = vmatpush2.bf16.msra.mxu0 %v2185
    %3294 = vmatprep.subr.bf16.mxu0 %v2178
    %3295 = vmatpush2.bf16.msra.mxu0 %v2177
    %3296 = vmatprep.mubr.bf16.mxu0 %v626
    %3297 = vmatmul.mubr.bf16.gmra.mxu0 %v625
    %v3298 = vpop.f32.mrf.mxu0
    %v3299 = vadd.f32 %v3256, %v3298
    %v3300 = vpop.f32.mrf.mxu0
    %v3301 = vadd.f32 %v3258, %v3300
    %v3302 = vpop.f32.mrf.mxu0
    %v3303 = vadd.f32 %v3260, %v3302
    %v3304 = vpop.f32.mrf.mxu0
    %v3305 = vadd.f32 %v3262, %v3304
    %3306 = vdwg.mxu0
    %3307 = vmatprep.subr.bf16.mxu0 %v2298
    %3308 = vmatpush1.bf16.msra.mxu0 %v2297
    %3309 = vmatprep.subr.bf16.mxu0 %v2290
    %3310 = vmatpush1.bf16.msra.mxu0 %v2289
    %3311 = vmatprep.subr.bf16.mxu0 %v2282
    %3312 = vmatpush1.bf16.msra.mxu0 %v2281
    %3313 = vmatprep.subr.bf16.mxu0 %v2274
    %3314 = vmatpush1.bf16.msra.mxu0 %v2273
    %3315 = vmatprep.subr.bf16.mxu0 %v2266
    %3316 = vmatpush1.bf16.msra.mxu0 %v2265
    %3317 = vmatprep.subr.bf16.mxu0 %v2258
    %3318 = vmatpush1.bf16.msra.mxu0 %v2257
    %3319 = vmatprep.subr.bf16.mxu0 %v2250
    %3320 = vmatpush1.bf16.msra.mxu0 %v2249
    %3321 = vmatprep.subr.bf16.mxu0 %v2242
    %3322 = vmatpush1.bf16.msra.mxu0 %v2241
    %3323 = vmatprep.subr.bf16.mxu0 %v2362
    %3324 = vmatpush2.bf16.msra.mxu0 %v2361
    %3325 = vmatprep.subr.bf16.mxu0 %v2354
    %3326 = vmatpush2.bf16.msra.mxu0 %v2353
    %3327 = vmatprep.subr.bf16.mxu0 %v2346
    %3328 = vmatpush2.bf16.msra.mxu0 %v2345
    %3329 = vmatprep.subr.bf16.mxu0 %v2338
    %3330 = vmatpush2.bf16.msra.mxu0 %v2337
    %3331 = vmatprep.subr.bf16.mxu0 %v2330
    %3332 = vmatpush2.bf16.msra.mxu0 %v2329
    %3333 = vmatprep.subr.bf16.mxu0 %v2322
    %3334 = vmatpush2.bf16.msra.mxu0 %v2321
    %3335 = vmatprep.subr.bf16.mxu0 %v2314
    %3336 = vmatpush2.bf16.msra.mxu0 %v2313
    %3337 = vmatprep.subr.bf16.mxu0 %v2306
    %3338 = vmatpush2.bf16.msra.mxu0 %v2305
    %3339 = vmatprep.mubr.bf16.mxu0 %v628
    %3340 = vmatmul.mubr.bf16.gmra.mxu0 %v627
    %v3341 = vpop.f32.mrf.mxu0
    %v3342 = vadd.f32 %v3299, %v3341
    %v3343 = vpop.f32.mrf.mxu0
    %v3344 = vadd.f32 %v3301, %v3343
    %v3345 = vpop.f32.mrf.mxu0
    %v3346 = vadd.f32 %v3303, %v3345
    %v3347 = vpop.f32.mrf.mxu0
    %v3348 = vadd.f32 %v3305, %v3347
    %3349 = vdwg.mxu0
    %3350 = vmatprep.subr.bf16.mxu0 %v2426
    %3351 = vmatpush1.bf16.msra.mxu0 %v2425
    %3352 = vmatprep.subr.bf16.mxu0 %v2418
    %3353 = vmatpush1.bf16.msra.mxu0 %v2417
    %3354 = vmatprep.subr.bf16.mxu0 %v2410
    %3355 = vmatpush1.bf16.msra.mxu0 %v2409
    %3356 = vmatprep.subr.bf16.mxu0 %v2402
    %3357 = vmatpush1.bf16.msra.mxu0 %v2401
    %3358 = vmatprep.subr.bf16.mxu0 %v2394
    %3359 = vmatpush1.bf16.msra.mxu0 %v2393
    %3360 = vmatprep.subr.bf16.mxu0 %v2386
    %3361 = vmatpush1.bf16.msra.mxu0 %v2385
    %3362 = vmatprep.subr.bf16.mxu0 %v2378
    %3363 = vmatpush1.bf16.msra.mxu0 %v2377
    %3364 = vmatprep.subr.bf16.mxu0 %v2370
    %3365 = vmatpush1.bf16.msra.mxu0 %v2369
    %3366 = vmatprep.subr.bf16.mxu0 0
    %3367 = vmatpush2.bf16.msra.mxu0 0
    %3368 = vmatprep.subr.bf16.mxu0 0
    %3369 = vmatpush2.bf16.msra.mxu0 0
    %3370 = vmatprep.subr.bf16.mxu0 0
    %3371 = vmatpush2.bf16.msra.mxu0 0
    %3372 = vmatprep.subr.bf16.mxu0 0
    %3373 = vmatpush2.bf16.msra.mxu0 0
    %3374 = vmatprep.subr.bf16.mxu0 0
    %3375 = vmatpush2.bf16.msra.mxu0 0
    %3376 = vmatprep.subr.bf16.mxu0 0
    %3377 = vmatpush2.bf16.msra.mxu0 0
    %3378 = vmatprep.subr.bf16.mxu0 0
    %3379 = vmatpush2.bf16.msra.mxu0 0
    %3380 = vmatprep.subr.bf16.mxu0 0
    %3381 = vmatpush2.bf16.msra.mxu0 0
    %3382 = vmatprep.mubr.bf16.mxu0 0
    %3383 = vmatmul.mubr.bf16.gmra.mxu0 %v629
    %v3384 = vpop.f32.mrf.mxu0
    %v3385 = vadd.f32 %v3342, %v3384
    %v3386 = vpop.f32.mrf.mxu0
    %v3387 = vadd.f32 %v3344, %v3386
    %v3388 = vpop.f32.mrf.mxu0
    %v3389 = vadd.f32 %v3346, %v3388
    %v3390 = vpop.f32.mrf.mxu0
    %v3391 = vadd.f32 %v3348, %v3390
    %3392 = vdwg.mxu0
    %3393 = vmatprep.subr.bf16.mxu0 %v2044
    %3394 = vmatpush1.bf16.msra.mxu0 %v2043
    %3395 = vmatprep.subr.bf16.mxu0 %v2036
    %3396 = vmatpush1.bf16.msra.mxu0 %v2035
    %3397 = vmatprep.subr.bf16.mxu0 %v2028
    %3398 = vmatpush1.bf16.msra.mxu0 %v2027
    %3399 = vmatprep.subr.bf16.mxu0 %v2020
    %3400 = vmatpush1.bf16.msra.mxu0 %v2019
    %3401 = vmatprep.subr.bf16.mxu0 %v2012
    %3402 = vmatpush1.bf16.msra.mxu0 %v2011
    %3403 = vmatprep.subr.bf16.mxu0 %v2004
    %3404 = vmatpush1.bf16.msra.mxu0 %v2003
    %3405 = vmatprep.subr.bf16.mxu0 %v1996
    %3406 = vmatpush1.bf16.msra.mxu0 %v1995
    %3407 = vmatprep.subr.bf16.mxu0 %v1988
    %3408 = vmatpush1.bf16.msra.mxu0 %v1987
    %3409 = vmatprep.subr.bf16.mxu0 %v2108
    %3410 = vmatpush2.bf16.msra.mxu0 %v2107
    %3411 = vmatprep.subr.bf16.mxu0 %v2100
    %3412 = vmatpush2.bf16.msra.mxu0 %v2099
    %3413 = vmatprep.subr.bf16.mxu0 %v2092
    %3414 = vmatpush2.bf16.msra.mxu0 %v2091
    %3415 = vmatprep.subr.bf16.mxu0 %v2084
    %3416 = vmatpush2.bf16.msra.mxu0 %v2083
    %3417 = vmatprep.subr.bf16.mxu0 %v2076
    %3418 = vmatpush2.bf16.msra.mxu0 %v2075
    %3419 = vmatprep.subr.bf16.mxu0 %v2068
    %3420 = vmatpush2.bf16.msra.mxu0 %v2067
    %3421 = vmatprep.subr.bf16.mxu0 %v2060
    %3422 = vmatpush2.bf16.msra.mxu0 %v2059
    %3423 = vmatprep.subr.bf16.mxu0 %v2052
    %3424 = vmatpush2.bf16.msra.mxu0 %v2051
    %3425 = vmatprep.mubr.bf16.mxu0 %v624
    %3426 = vmatmul.mubr.bf16.gmra.mxu0 %v623
    %v3427 = vpop.f32.mrf.mxu0
    %v3428 = vadd.f32 %v588, %v3427
    %v3429 = vpop.f32.mrf.mxu0
    %v3430 = vadd.f32 %v592, %v3429
    %v3431 = vpop.f32.mrf.mxu0
    %v3432 = vadd.f32 %v588, %v3431
    %v3433 = vpop.f32.mrf.mxu0
    %v3434 = vadd.f32 %v592, %v3433
    %3435 = vdwg.mxu0
    %3436 = vmatprep.subr.bf16.mxu0 %v2172
    %3437 = vmatpush1.bf16.msra.mxu0 %v2171
    %3438 = vmatprep.subr.bf16.mxu0 %v2164
    %3439 = vmatpush1.bf16.msra.mxu0 %v2163
    %3440 = vmatprep.subr.bf16.mxu0 %v2156
    %3441 = vmatpush1.bf16.msra.mxu0 %v2155
    %3442 = vmatprep.subr.bf16.mxu0 %v2148
    %3443 = vmatpush1.bf16.msra.mxu0 %v2147
    %3444 = vmatprep.subr.bf16.mxu0 %v2140
    %3445 = vmatpush1.bf16.msra.mxu0 %v2139
    %3446 = vmatprep.subr.bf16.mxu0 %v2132
    %3447 = vmatpush1.bf16.msra.mxu0 %v2131
    %3448 = vmatprep.subr.bf16.mxu0 %v2124
    %3449 = vmatpush1.bf16.msra.mxu0 %v2123
    %3450 = vmatprep.subr.bf16.mxu0 %v2116
    %3451 = vmatpush1.bf16.msra.mxu0 %v2115
    %3452 = vmatprep.subr.bf16.mxu0 %v2236
    %3453 = vmatpush2.bf16.msra.mxu0 %v2235
    %3454 = vmatprep.subr.bf16.mxu0 %v2228
    %3455 = vmatpush2.bf16.msra.mxu0 %v2227
    %3456 = vmatprep.subr.bf16.mxu0 %v2220
    %3457 = vmatpush2.bf16.msra.mxu0 %v2219
    %3458 = vmatprep.subr.bf16.mxu0 %v2212
    %3459 = vmatpush2.bf16.msra.mxu0 %v2211
    %3460 = vmatprep.subr.bf16.mxu0 %v2204
    %3461 = vmatpush2.bf16.msra.mxu0 %v2203
    %3462 = vmatprep.subr.bf16.mxu0 %v2196
    %3463 = vmatpush2.bf16.msra.mxu0 %v2195
    %3464 = vmatprep.subr.bf16.mxu0 %v2188
    %3465 = vmatpush2.bf16.msra.mxu0 %v2187
    %3466 = vmatprep.subr.bf16.mxu0 %v2180
    %3467 = vmatpush2.bf16.msra.mxu0 %v2179
    %3468 = vmatprep.mubr.bf16.mxu0 %v626
    %3469 = vmatmul.mubr.bf16.gmra.mxu0 %v625
    %v3470 = vpop.f32.mrf.mxu0
    %v3471 = vadd.f32 %v3428, %v3470
    %v3472 = vpop.f32.mrf.mxu0
    %v3473 = vadd.f32 %v3430, %v3472
    %v3474 = vpop.f32.mrf.mxu0
    %v3475 = vadd.f32 %v3432, %v3474
    %v3476 = vpop.f32.mrf.mxu0
    %v3477 = vadd.f32 %v3434, %v3476
    %3478 = vdwg.mxu0
    %3479 = vmatprep.subr.bf16.mxu0 %v2300
    %3480 = vmatpush1.bf16.msra.mxu0 %v2299
    %3481 = vmatprep.subr.bf16.mxu0 %v2292
    %3482 = vmatpush1.bf16.msra.mxu0 %v2291
    %3483 = vmatprep.subr.bf16.mxu0 %v2284
    %3484 = vmatpush1.bf16.msra.mxu0 %v2283
    %3485 = vmatprep.subr.bf16.mxu0 %v2276
    %3486 = vmatpush1.bf16.msra.mxu0 %v2275
    %3487 = vmatprep.subr.bf16.mxu0 %v2268
    %3488 = vmatpush1.bf16.msra.mxu0 %v2267
    %3489 = vmatprep.subr.bf16.mxu0 %v2260
    %3490 = vmatpush1.bf16.msra.mxu0 %v2259
    %3491 = vmatprep.subr.bf16.mxu0 %v2252
    %3492 = vmatpush1.bf16.msra.mxu0 %v2251
    %3493 = vmatprep.subr.bf16.mxu0 %v2244
    %3494 = vmatpush1.bf16.msra.mxu0 %v2243
    %3495 = vmatprep.subr.bf16.mxu0 %v2364
    %3496 = vmatpush2.bf16.msra.mxu0 %v2363
    %3497 = vmatprep.subr.bf16.mxu0 %v2356
    %3498 = vmatpush2.bf16.msra.mxu0 %v2355
    %3499 = vmatprep.subr.bf16.mxu0 %v2348
    %3500 = vmatpush2.bf16.msra.mxu0 %v2347
    %3501 = vmatprep.subr.bf16.mxu0 %v2340
    %3502 = vmatpush2.bf16.msra.mxu0 %v2339
    %3503 = vmatprep.subr.bf16.mxu0 %v2332
    %3504 = vmatpush2.bf16.msra.mxu0 %v2331
    %3505 = vmatprep.subr.bf16.mxu0 %v2324
    %3506 = vmatpush2.bf16.msra.mxu0 %v2323
    %3507 = vmatprep.subr.bf16.mxu0 %v2316
    %3508 = vmatpush2.bf16.msra.mxu0 %v2315
    %3509 = vmatprep.subr.bf16.mxu0 %v2308
    %3510 = vmatpush2.bf16.msra.mxu0 %v2307
    %3511 = vmatprep.mubr.bf16.mxu0 %v628
    %3512 = vmatmul.mubr.bf16.gmra.mxu0 %v627
    %v3513 = vpop.f32.mrf.mxu0
    %v3514 = vadd.f32 %v3471, %v3513
    %v3515 = vpop.f32.mrf.mxu0
    %v3516 = vadd.f32 %v3473, %v3515
    %v3517 = vpop.f32.mrf.mxu0
    %v3518 = vadd.f32 %v3475, %v3517
    %v3519 = vpop.f32.mrf.mxu0
    %v3520 = vadd.f32 %v3477, %v3519
    %3521 = vdwg.mxu0
    %3522 = vmatprep.subr.bf16.mxu0 %v2428
    %3523 = vmatpush1.bf16.msra.mxu0 %v2427
    %3524 = vmatprep.subr.bf16.mxu0 %v2420
    %3525 = vmatpush1.bf16.msra.mxu0 %v2419
    %3526 = vmatprep.subr.bf16.mxu0 %v2412
    %3527 = vmatpush1.bf16.msra.mxu0 %v2411
    %3528 = vmatprep.subr.bf16.mxu0 %v2404
    %3529 = vmatpush1.bf16.msra.mxu0 %v2403
    %3530 = vmatprep.subr.bf16.mxu0 %v2396
    %3531 = vmatpush1.bf16.msra.mxu0 %v2395
    %3532 = vmatprep.subr.bf16.mxu0 %v2388
    %3533 = vmatpush1.bf16.msra.mxu0 %v2387
    %3534 = vmatprep.subr.bf16.mxu0 %v2380
    %3535 = vmatpush1.bf16.msra.mxu0 %v2379
    %3536 = vmatprep.subr.bf16.mxu0 %v2372
    %3537 = vmatpush1.bf16.msra.mxu0 %v2371
    %3538 = vmatprep.subr.bf16.mxu0 0
    %3539 = vmatpush2.bf16.msra.mxu0 0
    %3540 = vmatprep.subr.bf16.mxu0 0
    %3541 = vmatpush2.bf16.msra.mxu0 0
    %3542 = vmatprep.subr.bf16.mxu0 0
    %3543 = vmatpush2.bf16.msra.mxu0 0
    %3544 = vmatprep.subr.bf16.mxu0 0
    %3545 = vmatpush2.bf16.msra.mxu0 0
    %3546 = vmatprep.subr.bf16.mxu0 0
    %3547 = vmatpush2.bf16.msra.mxu0 0
    %3548 = vmatprep.subr.bf16.mxu0 0
    %3549 = vmatpush2.bf16.msra.mxu0 0
    %3550 = vmatprep.subr.bf16.mxu0 0
    %3551 = vmatpush2.bf16.msra.mxu0 0
    %3552 = vmatprep.subr.bf16.mxu0 0
    %3553 = vmatpush2.bf16.msra.mxu0 0
    %3554 = vmatprep.mubr.bf16.mxu0 0
    %3555 = vmatmul.mubr.bf16.gmra.mxu0 %v629
    %v3556 = vpop.f32.mrf.mxu0
    %v3557 = vadd.f32 %v3514, %v3556
    %v3558 = vpop.f32.mrf.mxu0
    %v3559 = vadd.f32 %v3516, %v3558
    %v3560 = vpop.f32.mrf.mxu0
    %v3561 = vadd.f32 %v3518, %v3560
    %v3562 = vpop.f32.mrf.mxu0
    %v3563 = vadd.f32 %v3520, %v3562
    %3564 = vdwg.mxu0
    %v3565 = vmax.f32 %v3041, 0.0
    %v3566 = vmax.f32 %v3043, 0.0
    %v3567 = vmax.f32 %v3213, 0.0
    %v3568 = vmax.f32 %v3215, 0.0
    %v3569 = vmax.f32 %v3385, 0.0
    %v3570 = vmax.f32 %v3387, 0.0
    %v3571 = vmax.f32 %v3557, 0.0
    %v3572 = vmax.f32 %v3559, 0.0
    %v3573 = vmax.f32 %v3045, 0.0
    %v3574 = vmax.f32 %v3047, 0.0
    %v3575 = vmax.f32 %v3217, 0.0
    %v3576 = vmax.f32 %v3219, 0.0
    %v3577 = vmax.f32 %v3389, 0.0
    %v3578 = vmax.f32 %v3391, 0.0
    %v3579 = vmax.f32 %v3561, 0.0
    %v3580 = vmax.f32 %v3563, 0.0
    %v3581 = vpack.c.bf16 %v3573, %v3565
    %v3582 = vpack.c.bf16 %v3574, %v3566
    %v3583 = vpack.c.bf16 %v3575, %v3567
    %v3584 = vpack.c.bf16 %v3576, %v3568
    %v3585 = vpack.c.bf16 %v3577, %v3569
    %v3586 = vpack.c.bf16 %v3578, %v3570
    %v3587 = vpack.c.bf16 %v3579, %v3571
    %v3588 = vpack.c.bf16 %v3580, %v3572
    %v3589 = vld [vmem:[#allocation6] sm:$0xff]
    %v3590 = vld [vmem:[#allocation6 + $0x8] sm:$0xff]
    %v3591 = vld [vmem:[#allocation6 + $0x10] sm:$0xff]
    %v3592 = vld [vmem:[#allocation6 + $0x18] sm:$0xff]
    %v3593 = vld [vmem:[#allocation6 + $0x20] sm:$0xff]
    %v3594 = vld [vmem:[#allocation6 + $0x28] sm:$0xff]
    %v3595 = vld [vmem:[#allocation6 + $0x30] sm:$0xff]
    %v3596 = vld [vmem:[#allocation6 + $0x38] sm:$0xff]
    %v3597 = vld [vmem:[#allocation6 + $0x40] sm:$0xff]
    %v3598 = vld [vmem:[#allocation6 + $0x48] sm:$0xff]
    %v3599 = vld [vmem:[#allocation6 + $0x50] sm:$0xff]
    %v3600 = vld [vmem:[#allocation6 + $0x58] sm:$0xff]
    %v3601 = vld [vmem:[#allocation6 + $0x60] sm:$0xff]
    %v3602 = vld [vmem:[#allocation6 + $0x68] sm:$0xff]
    %v3603 = vld [vmem:[#allocation6 + $0x70] sm:$0xff]
    %v3604 = vld [vmem:[#allocation6 + $0x78] sm:$0xff]
    %v3605 = vld [vmem:[#allocation6 + $0x80] sm:$0xff]
    %v3606 = vld [vmem:[#allocation6 + $0x88] sm:$0xff]
    %v3607 = vld [vmem:[#allocation6 + $0x90] sm:$0xff]
    %v3608 = vld [vmem:[#allocation6 + $0x98] sm:$0xff]
    %v3609 = vld [vmem:[#allocation6 + $0xa0] sm:$0xff]
    %v3610 = vld [vmem:[#allocation6 + $0xa8] sm:$0xff]
    %v3611 = vld [vmem:[#allocation6 + $0xb0] sm:$0xff]
    %v3612 = vld [vmem:[#allocation6 + $0xb8] sm:$0xff]
    %v3613 = vld [vmem:[#allocation6 + $0xc0] sm:$0xff]
    %v3614 = vld [vmem:[#allocation6 + $0xc8] sm:$0xff]
    %v3615 = vld [vmem:[#allocation6 + $0xd0] sm:$0xff]
    %v3616 = vld [vmem:[#allocation6 + $0xd8] sm:$0xff]
    %v3617 = vld [vmem:[#allocation6 + $0xe0] sm:$0xff]
    %v3618 = vld [vmem:[#allocation6 + $0xe8] sm:$0xff]
    %v3619 = vld [vmem:[#allocation6 + $0xf0] sm:$0xff]
    %v3620 = vld [vmem:[#allocation6 + $0xf8] sm:$0xff]
    %v3621 = vld [vmem:[#allocation6 + $0x100] sm:$0xff]
    %v3622 = vld [vmem:[#allocation6 + $0x108] sm:$0xff]
    %v3623 = vld [vmem:[#allocation6 + $0x110] sm:$0xff]
    %v3624 = vld [vmem:[#allocation6 + $0x118] sm:$0xff]
    %v3625 = vld [vmem:[#allocation6 + $0x120] sm:$0xff]
    %v3626 = vld [vmem:[#allocation6 + $0x128] sm:$0xff]
    %v3627 = vld [vmem:[#allocation6 + $0x130] sm:$0xff]
    %v3628 = vld [vmem:[#allocation6 + $0x138] sm:$0xff]
    %v3629 = vld [vmem:[#allocation6 + $0x140] sm:$0xff]
    %v3630 = vld [vmem:[#allocation6 + $0x148] sm:$0xff]
    %v3631 = vld [vmem:[#allocation6 + $0x150] sm:$0xff]
    %v3632 = vld [vmem:[#allocation6 + $0x158] sm:$0xff]
    %v3633 = vld [vmem:[#allocation6 + $0x160] sm:$0xff]
    %v3634 = vld [vmem:[#allocation6 + $0x168] sm:$0xff]
    %v3635 = vld [vmem:[#allocation6 + $0x170] sm:$0xff]
    %v3636 = vld [vmem:[#allocation6 + $0x178] sm:$0xff]
    %v3637 = vld [vmem:[#allocation6 + $0x180] sm:$0xff]
    %v3638 = vld [vmem:[#allocation6 + $0x188] sm:$0xff]
    %v3639 = vld [vmem:[#allocation6 + $0x190] sm:$0xff]
    %v3640 = vld [vmem:[#allocation6 + $0x198] sm:$0xff]
    %v3641 = vld [vmem:[#allocation6 + $0x1a0] sm:$0xff]
    %v3642 = vld [vmem:[#allocation6 + $0x1a8] sm:$0xff]
    %v3643 = vld [vmem:[#allocation6 + $0x1b0] sm:$0xff]
    %v3644 = vld [vmem:[#allocation6 + $0x1b8] sm:$0xff]
    %v3645 = vld [vmem:[#allocation6 + $0x1c0] sm:$0xff]
    %v3646 = vld [vmem:[#allocation6 + $0x1c8] sm:$0xff]
    %v3647 = vld [vmem:[#allocation6 + $0x1d0] sm:$0xff]
    %v3648 = vld [vmem:[#allocation6 + $0x1d8] sm:$0xff]
    %v3649 = vld [vmem:[#allocation6 + $0x1e0] sm:$0xff]
    %v3650 = vld [vmem:[#allocation6 + $0x1e8] sm:$0xff]
    %v3651 = vld [vmem:[#allocation6 + $0x1f0] sm:$0xff]
    %v3652 = vld [vmem:[#allocation6 + $0x1f8] sm:$0xff]
    %v3653 = vld [vmem:[#allocation6 + $0x200] sm:$0xff]
    %v3654 = vld [vmem:[#allocation6 + $0x208] sm:$0xff]
    %v3655 = vld [vmem:[#allocation6 + $0x210] sm:$0xff]
    %v3656 = vld [vmem:[#allocation6 + $0x218] sm:$0xff]
    %v3657 = vld [vmem:[#allocation6 + $0x220] sm:$0xff]
    %v3658 = vld [vmem:[#allocation6 + $0x228] sm:$0xff]
    %v3659 = vld [vmem:[#allocation6 + $0x230] sm:$0xff]
    %v3660 = vld [vmem:[#allocation6 + $0x238] sm:$0xff]
    %v3661 = vld [vmem:[#allocation6 + $0x240] sm:$0xff]
    %v3662 = vld [vmem:[#allocation6 + $0x248] sm:$0xff]
    %v3663 = vld [vmem:[#allocation6 + $0x250] sm:$0xff]
    %v3664 = vld [vmem:[#allocation6 + $0x258] sm:$0xff]
    %v3665 = vld [vmem:[#allocation6 + $0x260] sm:$0xff]
    %v3666 = vld [vmem:[#allocation6 + $0x268] sm:$0xff]
    %v3667 = vld [vmem:[#allocation6 + $0x270] sm:$0xff]
    %v3668 = vld [vmem:[#allocation6 + $0x278] sm:$0xff]
    %v3669 = vld [vmem:[#allocation6 + $0x280] sm:$0xff]
    %v3670 = vld [vmem:[#allocation6 + $0x288] sm:$0xff]
    %v3671 = vld [vmem:[#allocation6 + $0x290] sm:$0xff]
    %v3672 = vld [vmem:[#allocation6 + $0x298] sm:$0xff]
    %v3673 = vld [vmem:[#allocation6 + $0x2a0] sm:$0xff]
    %v3674 = vld [vmem:[#allocation6 + $0x2a8] sm:$0xff]
    %v3675 = vld [vmem:[#allocation6 + $0x2b0] sm:$0xff]
    %v3676 = vld [vmem:[#allocation6 + $0x2b8] sm:$0xff]
    %v3677 = vld [vmem:[#allocation6 + $0x2c0] sm:$0xff]
    %v3678 = vld [vmem:[#allocation6 + $0x2c8] sm:$0xff]
    %v3679 = vld [vmem:[#allocation6 + $0x2d0] sm:$0xff]
    %v3680 = vld [vmem:[#allocation6 + $0x2d8] sm:$0xff]
    %v3681 = vld [vmem:[#allocation6 + $0x2e0] sm:$0xff]
    %v3682 = vld [vmem:[#allocation6 + $0x2e8] sm:$0xff]
    %v3683 = vld [vmem:[#allocation6 + $0x2f0] sm:$0xff]
    %v3684 = vld [vmem:[#allocation6 + $0x2f8] sm:$0xff]
    %v3685 = vld [vmem:[#allocation6 + $0x300] sm:$0xff]
    %v3686 = vld [vmem:[#allocation6 + $0x308] sm:$0xff]
    %v3687 = vld [vmem:[#allocation6 + $0x310] sm:$0xff]
    %v3688 = vld [vmem:[#allocation6 + $0x318] sm:$0xff]
    %v3689 = vld [vmem:[#allocation6 + $0x320] sm:$0xff]
    %v3690 = vld [vmem:[#allocation6 + $0x328] sm:$0xff]
    %v3691 = vld [vmem:[#allocation6 + $0x330] sm:$0xff]
    %v3692 = vld [vmem:[#allocation6 + $0x338] sm:$0xff]
    %v3693 = vld [vmem:[#allocation6 + $0x340] sm:$0xff]
    %v3694 = vld [vmem:[#allocation6 + $0x348] sm:$0xff]
    %v3695 = vld [vmem:[#allocation6 + $0x350] sm:$0xff]
    %v3696 = vld [vmem:[#allocation6 + $0x358] sm:$0xff]
    %v3697 = vld [vmem:[#allocation6 + $0x360] sm:$0xff]
    %v3698 = vld [vmem:[#allocation6 + $0x368] sm:$0xff]
    %v3699 = vld [vmem:[#allocation6 + $0x370] sm:$0xff]
    %v3700 = vld [vmem:[#allocation6 + $0x378] sm:$0xff]
    %v3701 = vld [vmem:[#allocation6 + $0x380] sm:$0xff]
    %v3702 = vld [vmem:[#allocation6 + $0x388] sm:$0xff]
    %v3703 = vld [vmem:[#allocation6 + $0x390] sm:$0xff]
    %v3704 = vld [vmem:[#allocation6 + $0x398] sm:$0xff]
    %v3705 = vld [vmem:[#allocation6 + $0x3a0] sm:$0xff]
    %v3706 = vld [vmem:[#allocation6 + $0x3a8] sm:$0xff]
    %v3707 = vld [vmem:[#allocation6 + $0x3b0] sm:$0xff]
    %v3708 = vld [vmem:[#allocation6 + $0x3b8] sm:$0xff]
    %v3709 = vld [vmem:[#allocation6 + $0x3c0] sm:$0xff]
    %v3710 = vld [vmem:[#allocation6 + $0x3c8] sm:$0xff]
    %v3711 = vld [vmem:[#allocation6 + $0x3d0] sm:$0xff]
    %v3712 = vld [vmem:[#allocation6 + $0x3d8] sm:$0xff]
    %v3713 = vld [vmem:[#allocation6 + $0x3e0] sm:$0xff]
    %v3714 = vld [vmem:[#allocation6 + $0x3e8] sm:$0xff]
    %v3715 = vld [vmem:[#allocation6 + $0x3f0] sm:$0xff]
    %v3716 = vld [vmem:[#allocation6 + $0x3f8] sm:$0xff]
    %v3717 = vld [vmem:[#allocation7] sm:$0x3]
    %v3719 = vlaneseq
    %v3720 = vshrl.u32 %v3719, 7
    %v3721 = vsub.s32 0, %v3720
    %v3722 = vrot.slane %v3717, %v3721
    %v3723 = vlaneseq
    %v3724 = vshrl.u32 %v3723, 7
    %v3725 = vsub.s32 1, %v3724
    %v3726 = vrot.slane %v3717, %v3725
    %v3857 = vunpack.c.l.b16 %v3589
    %v3858 = vunpack.c.h.b16 %v3589
    %v3859 = vunpack.c.l.b16 %v3590
    %v3860 = vunpack.c.h.b16 %v3590
    %v3861 = vunpack.c.l.b16 %v3591
    %v3862 = vunpack.c.h.b16 %v3591
    %v3863 = vunpack.c.l.b16 %v3592
    %v3864 = vunpack.c.h.b16 %v3592
    %v3865 = vunpack.c.l.b16 %v3593
    %v3866 = vunpack.c.h.b16 %v3593
    %v3867 = vunpack.c.l.b16 %v3594
    %v3868 = vunpack.c.h.b16 %v3594
    %v3869 = vunpack.c.l.b16 %v3595
    %v3870 = vunpack.c.h.b16 %v3595
    %v3871 = vunpack.c.l.b16 %v3596
    %v3872 = vunpack.c.h.b16 %v3596
    %v3873 = vunpack.c.l.b16 %v3597
    %v3874 = vunpack.c.h.b16 %v3597
    %v3875 = vunpack.c.l.b16 %v3598
    %v3876 = vunpack.c.h.b16 %v3598
    %v3877 = vunpack.c.l.b16 %v3599
    %v3878 = vunpack.c.h.b16 %v3599
    %v3879 = vunpack.c.l.b16 %v3600
    %v3880 = vunpack.c.h.b16 %v3600
    %v3881 = vunpack.c.l.b16 %v3601
    %v3882 = vunpack.c.h.b16 %v3601
    %v3883 = vunpack.c.l.b16 %v3602
    %v3884 = vunpack.c.h.b16 %v3602
    %v3885 = vunpack.c.l.b16 %v3603
    %v3886 = vunpack.c.h.b16 %v3603
    %v3887 = vunpack.c.l.b16 %v3604
    %v3888 = vunpack.c.h.b16 %v3604
    %v3889 = vunpack.c.l.b16 %v3605
    %v3890 = vunpack.c.h.b16 %v3605
    %v3891 = vunpack.c.l.b16 %v3606
    %v3892 = vunpack.c.h.b16 %v3606
    %v3893 = vunpack.c.l.b16 %v3607
    %v3894 = vunpack.c.h.b16 %v3607
    %v3895 = vunpack.c.l.b16 %v3608
    %v3896 = vunpack.c.h.b16 %v3608
    %v3897 = vunpack.c.l.b16 %v3609
    %v3898 = vunpack.c.h.b16 %v3609
    %v3899 = vunpack.c.l.b16 %v3610
    %v3900 = vunpack.c.h.b16 %v3610
    %v3901 = vunpack.c.l.b16 %v3611
    %v3902 = vunpack.c.h.b16 %v3611
    %v3903 = vunpack.c.l.b16 %v3612
    %v3904 = vunpack.c.h.b16 %v3612
    %v3905 = vunpack.c.l.b16 %v3613
    %v3906 = vunpack.c.h.b16 %v3613
    %v3907 = vunpack.c.l.b16 %v3614
    %v3908 = vunpack.c.h.b16 %v3614
    %v3909 = vunpack.c.l.b16 %v3615
    %v3910 = vunpack.c.h.b16 %v3615
    %v3911 = vunpack.c.l.b16 %v3616
    %v3912 = vunpack.c.h.b16 %v3616
    %v3913 = vunpack.c.l.b16 %v3617
    %v3914 = vunpack.c.h.b16 %v3617
    %v3915 = vunpack.c.l.b16 %v3618
    %v3916 = vunpack.c.h.b16 %v3618
    %v3917 = vunpack.c.l.b16 %v3619
    %v3918 = vunpack.c.h.b16 %v3619
    %v3919 = vunpack.c.l.b16 %v3620
    %v3920 = vunpack.c.h.b16 %v3620
    %v3921 = vunpack.c.l.b16 %v3621
    %v3922 = vunpack.c.h.b16 %v3621
    %v3923 = vunpack.c.l.b16 %v3622
    %v3924 = vunpack.c.h.b16 %v3622
    %v3925 = vunpack.c.l.b16 %v3623
    %v3926 = vunpack.c.h.b16 %v3623
    %v3927 = vunpack.c.l.b16 %v3624
    %v3928 = vunpack.c.h.b16 %v3624
    %v3929 = vunpack.c.l.b16 %v3625
    %v3930 = vunpack.c.h.b16 %v3625
    %v3931 = vunpack.c.l.b16 %v3626
    %v3932 = vunpack.c.h.b16 %v3626
    %v3933 = vunpack.c.l.b16 %v3627
    %v3934 = vunpack.c.h.b16 %v3627
    %v3935 = vunpack.c.l.b16 %v3628
    %v3936 = vunpack.c.h.b16 %v3628
    %v3937 = vunpack.c.l.b16 %v3629
    %v3938 = vunpack.c.h.b16 %v3629
    %v3939 = vunpack.c.l.b16 %v3630
    %v3940 = vunpack.c.h.b16 %v3630
    %v3941 = vunpack.c.l.b16 %v3631
    %v3942 = vunpack.c.h.b16 %v3631
    %v3943 = vunpack.c.l.b16 %v3632
    %v3944 = vunpack.c.h.b16 %v3632
    %v3945 = vunpack.c.l.b16 %v3633
    %v3946 = vunpack.c.h.b16 %v3633
    %v3947 = vunpack.c.l.b16 %v3634
    %v3948 = vunpack.c.h.b16 %v3634
    %v3949 = vunpack.c.l.b16 %v3635
    %v3950 = vunpack.c.h.b16 %v3635
    %v3951 = vunpack.c.l.b16 %v3636
    %v3952 = vunpack.c.h.b16 %v3636
    %v3953 = vunpack.c.l.b16 %v3637
    %v3954 = vunpack.c.h.b16 %v3637
    %v3955 = vunpack.c.l.b16 %v3638
    %v3956 = vunpack.c.h.b16 %v3638
    %v3957 = vunpack.c.l.b16 %v3639
    %v3958 = vunpack.c.h.b16 %v3639
    %v3959 = vunpack.c.l.b16 %v3640
    %v3960 = vunpack.c.h.b16 %v3640
    %v3961 = vunpack.c.l.b16 %v3641
    %v3962 = vunpack.c.h.b16 %v3641
    %v3963 = vunpack.c.l.b16 %v3642
    %v3964 = vunpack.c.h.b16 %v3642
    %v3965 = vunpack.c.l.b16 %v3643
    %v3966 = vunpack.c.h.b16 %v3643
    %v3967 = vunpack.c.l.b16 %v3644
    %v3968 = vunpack.c.h.b16 %v3644
    %v3969 = vunpack.c.l.b16 %v3645
    %v3970 = vunpack.c.h.b16 %v3645
    %v3971 = vunpack.c.l.b16 %v3646
    %v3972 = vunpack.c.h.b16 %v3646
    %v3973 = vunpack.c.l.b16 %v3647
    %v3974 = vunpack.c.h.b16 %v3647
    %v3975 = vunpack.c.l.b16 %v3648
    %v3976 = vunpack.c.h.b16 %v3648
    %v3977 = vunpack.c.l.b16 %v3649
    %v3978 = vunpack.c.h.b16 %v3649
    %v3979 = vunpack.c.l.b16 %v3650
    %v3980 = vunpack.c.h.b16 %v3650
    %v3981 = vunpack.c.l.b16 %v3651
    %v3982 = vunpack.c.h.b16 %v3651
    %v3983 = vunpack.c.l.b16 %v3652
    %v3984 = vunpack.c.h.b16 %v3652
    %v3985 = vunpack.c.l.b16 %v3653
    %v3986 = vunpack.c.h.b16 %v3653
    %v3987 = vunpack.c.l.b16 %v3654
    %v3988 = vunpack.c.h.b16 %v3654
    %v3989 = vunpack.c.l.b16 %v3655
    %v3990 = vunpack.c.h.b16 %v3655
    %v3991 = vunpack.c.l.b16 %v3656
    %v3992 = vunpack.c.h.b16 %v3656
    %v3993 = vunpack.c.l.b16 %v3657
    %v3994 = vunpack.c.h.b16 %v3657
    %v3995 = vunpack.c.l.b16 %v3658
    %v3996 = vunpack.c.h.b16 %v3658
    %v3997 = vunpack.c.l.b16 %v3659
    %v3998 = vunpack.c.h.b16 %v3659
    %v3999 = vunpack.c.l.b16 %v3660
    %v4000 = vunpack.c.h.b16 %v3660
    %v4001 = vunpack.c.l.b16 %v3661
    %v4002 = vunpack.c.h.b16 %v3661
    %v4003 = vunpack.c.l.b16 %v3662
    %v4004 = vunpack.c.h.b16 %v3662
    %v4005 = vunpack.c.l.b16 %v3663
    %v4006 = vunpack.c.h.b16 %v3663
    %v4007 = vunpack.c.l.b16 %v3664
    %v4008 = vunpack.c.h.b16 %v3664
    %v4009 = vunpack.c.l.b16 %v3665
    %v4010 = vunpack.c.h.b16 %v3665
    %v4011 = vunpack.c.l.b16 %v3666
    %v4012 = vunpack.c.h.b16 %v3666
    %v4013 = vunpack.c.l.b16 %v3667
    %v4014 = vunpack.c.h.b16 %v3667
    %v4015 = vunpack.c.l.b16 %v3668
    %v4016 = vunpack.c.h.b16 %v3668
    %v4017 = vunpack.c.l.b16 %v3669
    %v4018 = vunpack.c.h.b16 %v3669
    %v4019 = vunpack.c.l.b16 %v3670
    %v4020 = vunpack.c.h.b16 %v3670
    %v4021 = vunpack.c.l.b16 %v3671
    %v4022 = vunpack.c.h.b16 %v3671
    %v4023 = vunpack.c.l.b16 %v3672
    %v4024 = vunpack.c.h.b16 %v3672
    %v4025 = vunpack.c.l.b16 %v3673
    %v4026 = vunpack.c.h.b16 %v3673
    %v4027 = vunpack.c.l.b16 %v3674
    %v4028 = vunpack.c.h.b16 %v3674
    %v4029 = vunpack.c.l.b16 %v3675
    %v4030 = vunpack.c.h.b16 %v3675
    %v4031 = vunpack.c.l.b16 %v3676
    %v4032 = vunpack.c.h.b16 %v3676
    %v4033 = vunpack.c.l.b16 %v3677
    %v4034 = vunpack.c.h.b16 %v3677
    %v4035 = vunpack.c.l.b16 %v3678
    %v4036 = vunpack.c.h.b16 %v3678
    %v4037 = vunpack.c.l.b16 %v3679
    %v4038 = vunpack.c.h.b16 %v3679
    %v4039 = vunpack.c.l.b16 %v3680
    %v4040 = vunpack.c.h.b16 %v3680
    %v4041 = vunpack.c.l.b16 %v3681
    %v4042 = vunpack.c.h.b16 %v3681
    %v4043 = vunpack.c.l.b16 %v3682
    %v4044 = vunpack.c.h.b16 %v3682
    %v4045 = vunpack.c.l.b16 %v3683
    %v4046 = vunpack.c.h.b16 %v3683
    %v4047 = vunpack.c.l.b16 %v3684
    %v4048 = vunpack.c.h.b16 %v3684
    %v4049 = vunpack.c.l.b16 %v3685
    %v4050 = vunpack.c.h.b16 %v3685
    %v4051 = vunpack.c.l.b16 %v3686
    %v4052 = vunpack.c.h.b16 %v3686
    %v4053 = vunpack.c.l.b16 %v3687
    %v4054 = vunpack.c.h.b16 %v3687
    %v4055 = vunpack.c.l.b16 %v3688
    %v4056 = vunpack.c.h.b16 %v3688
    %v4057 = vunpack.c.l.b16 %v3689
    %v4058 = vunpack.c.h.b16 %v3689
    %v4059 = vunpack.c.l.b16 %v3690
    %v4060 = vunpack.c.h.b16 %v3690
    %v4061 = vunpack.c.l.b16 %v3691
    %v4062 = vunpack.c.h.b16 %v3691
    %v4063 = vunpack.c.l.b16 %v3692
    %v4064 = vunpack.c.h.b16 %v3692
    %v4065 = vunpack.c.l.b16 %v3693
    %v4066 = vunpack.c.h.b16 %v3693
    %v4067 = vunpack.c.l.b16 %v3694
    %v4068 = vunpack.c.h.b16 %v3694
    %v4069 = vunpack.c.l.b16 %v3695
    %v4070 = vunpack.c.h.b16 %v3695
    %v4071 = vunpack.c.l.b16 %v3696
    %v4072 = vunpack.c.h.b16 %v3696
    %v4073 = vunpack.c.l.b16 %v3697
    %v4074 = vunpack.c.h.b16 %v3697
    %v4075 = vunpack.c.l.b16 %v3698
    %v4076 = vunpack.c.h.b16 %v3698
    %v4077 = vunpack.c.l.b16 %v3699
    %v4078 = vunpack.c.h.b16 %v3699
    %v4079 = vunpack.c.l.b16 %v3700
    %v4080 = vunpack.c.h.b16 %v3700
    %v4081 = vunpack.c.l.b16 %v3701
    %v4082 = vunpack.c.h.b16 %v3701
    %v4083 = vunpack.c.l.b16 %v3702
    %v4084 = vunpack.c.h.b16 %v3702
    %v4085 = vunpack.c.l.b16 %v3703
    %v4086 = vunpack.c.h.b16 %v3703
    %v4087 = vunpack.c.l.b16 %v3704
    %v4088 = vunpack.c.h.b16 %v3704
    %v4089 = vunpack.c.l.b16 %v3705
    %v4090 = vunpack.c.h.b16 %v3705
    %v4091 = vunpack.c.l.b16 %v3706
    %v4092 = vunpack.c.h.b16 %v3706
    %v4093 = vunpack.c.l.b16 %v3707
    %v4094 = vunpack.c.h.b16 %v3707
    %v4095 = vunpack.c.l.b16 %v3708
    %v4096 = vunpack.c.h.b16 %v3708
    %v4097 = vunpack.c.l.b16 %v3709
    %v4098 = vunpack.c.h.b16 %v3709
    %v4099 = vunpack.c.l.b16 %v3710
    %v4100 = vunpack.c.h.b16 %v3710
    %v4101 = vunpack.c.l.b16 %v3711
    %v4102 = vunpack.c.h.b16 %v3711
    %v4103 = vunpack.c.l.b16 %v3712
    %v4104 = vunpack.c.h.b16 %v3712
    %v4105 = vunpack.c.l.b16 %v3713
    %v4106 = vunpack.c.h.b16 %v3713
    %v4107 = vunpack.c.l.b16 %v3714
    %v4108 = vunpack.c.h.b16 %v3714
    %v4109 = vunpack.c.l.b16 %v3715
    %v4110 = vunpack.c.h.b16 %v3715
    %v4111 = vunpack.c.l.b16 %v3716
    %v4112 = vunpack.c.h.b16 %v3716
    %v4113 = vpack.c.b16 %v3859, %v3857
    %v4114 = vpack.c.b16 %v3860, %v3858
    %v4115 = vpack.c.b16 %v3863, %v3861
    %v4116 = vpack.c.b16 %v3864, %v3862
    %v4117 = vpack.c.b16 %v3867, %v3865
    %v4118 = vpack.c.b16 %v3868, %v3866
    %v4119 = vpack.c.b16 %v3871, %v3869
    %v4120 = vpack.c.b16 %v3872, %v3870
    %v4121 = vpack.c.b16 %v3875, %v3873
    %v4122 = vpack.c.b16 %v3876, %v3874
    %v4123 = vpack.c.b16 %v3879, %v3877
    %v4124 = vpack.c.b16 %v3880, %v3878
    %v4125 = vpack.c.b16 %v3883, %v3881
    %v4126 = vpack.c.b16 %v3884, %v3882
    %v4127 = vpack.c.b16 %v3887, %v3885
    %v4128 = vpack.c.b16 %v3888, %v3886
    %v4129 = vpack.c.b16 %v3891, %v3889
    %v4130 = vpack.c.b16 %v3892, %v3890
    %v4131 = vpack.c.b16 %v3895, %v3893
    %v4132 = vpack.c.b16 %v3896, %v3894
    %v4133 = vpack.c.b16 %v3899, %v3897
    %v4134 = vpack.c.b16 %v3900, %v3898
    %v4135 = vpack.c.b16 %v3903, %v3901
    %v4136 = vpack.c.b16 %v3904, %v3902
    %v4137 = vpack.c.b16 %v3907, %v3905
    %v4138 = vpack.c.b16 %v3908, %v3906
    %v4139 = vpack.c.b16 %v3911, %v3909
    %v4140 = vpack.c.b16 %v3912, %v3910
    %v4141 = vpack.c.b16 %v3915, %v3913
    %v4142 = vpack.c.b16 %v3916, %v3914
    %v4143 = vpack.c.b16 %v3919, %v3917
    %v4144 = vpack.c.b16 %v3920, %v3918
    %v4145 = vpack.c.b16 %v3923, %v3921
    %v4146 = vpack.c.b16 %v3924, %v3922
    %v4147 = vpack.c.b16 %v3927, %v3925
    %v4148 = vpack.c.b16 %v3928, %v3926
    %v4149 = vpack.c.b16 %v3931, %v3929
    %v4150 = vpack.c.b16 %v3932, %v3930
    %v4151 = vpack.c.b16 %v3935, %v3933
    %v4152 = vpack.c.b16 %v3936, %v3934
    %v4153 = vpack.c.b16 %v3939, %v3937
    %v4154 = vpack.c.b16 %v3940, %v3938
    %v4155 = vpack.c.b16 %v3943, %v3941
    %v4156 = vpack.c.b16 %v3944, %v3942
    %v4157 = vpack.c.b16 %v3947, %v3945
    %v4158 = vpack.c.b16 %v3948, %v3946
    %v4159 = vpack.c.b16 %v3951, %v3949
    %v4160 = vpack.c.b16 %v3952, %v3950
    %v4161 = vpack.c.b16 %v3955, %v3953
    %v4162 = vpack.c.b16 %v3956, %v3954
    %v4163 = vpack.c.b16 %v3959, %v3957
    %v4164 = vpack.c.b16 %v3960, %v3958
    %v4165 = vpack.c.b16 %v3963, %v3961
    %v4166 = vpack.c.b16 %v3964, %v3962
    %v4167 = vpack.c.b16 %v3967, %v3965
    %v4168 = vpack.c.b16 %v3968, %v3966
    %v4169 = vpack.c.b16 %v3971, %v3969
    %v4170 = vpack.c.b16 %v3972, %v3970
    %v4171 = vpack.c.b16 %v3975, %v3973
    %v4172 = vpack.c.b16 %v3976, %v3974
    %v4173 = vpack.c.b16 %v3979, %v3977
    %v4174 = vpack.c.b16 %v3980, %v3978
    %v4175 = vpack.c.b16 %v3983, %v3981
    %v4176 = vpack.c.b16 %v3984, %v3982
    %v4177 = vpack.c.b16 %v3987, %v3985
    %v4178 = vpack.c.b16 %v3988, %v3986
    %v4179 = vpack.c.b16 %v3991, %v3989
    %v4180 = vpack.c.b16 %v3992, %v3990
    %v4181 = vpack.c.b16 %v3995, %v3993
    %v4182 = vpack.c.b16 %v3996, %v3994
    %v4183 = vpack.c.b16 %v3999, %v3997
    %v4184 = vpack.c.b16 %v4000, %v3998
    %v4185 = vpack.c.b16 %v4003, %v4001
    %v4186 = vpack.c.b16 %v4004, %v4002
    %v4187 = vpack.c.b16 %v4007, %v4005
    %v4188 = vpack.c.b16 %v4008, %v4006
    %v4189 = vpack.c.b16 %v4011, %v4009
    %v4190 = vpack.c.b16 %v4012, %v4010
    %v4191 = vpack.c.b16 %v4015, %v4013
    %v4192 = vpack.c.b16 %v4016, %v4014
    %v4193 = vpack.c.b16 %v4019, %v4017
    %v4194 = vpack.c.b16 %v4020, %v4018
    %v4195 = vpack.c.b16 %v4023, %v4021
    %v4196 = vpack.c.b16 %v4024, %v4022
    %v4197 = vpack.c.b16 %v4027, %v4025
    %v4198 = vpack.c.b16 %v4028, %v4026
    %v4199 = vpack.c.b16 %v4031, %v4029
    %v4200 = vpack.c.b16 %v4032, %v4030
    %v4201 = vpack.c.b16 %v4035, %v4033
    %v4202 = vpack.c.b16 %v4036, %v4034
    %v4203 = vpack.c.b16 %v4039, %v4037
    %v4204 = vpack.c.b16 %v4040, %v4038
    %v4205 = vpack.c.b16 %v4043, %v4041
    %v4206 = vpack.c.b16 %v4044, %v4042
    %v4207 = vpack.c.b16 %v4047, %v4045
    %v4208 = vpack.c.b16 %v4048, %v4046
    %v4209 = vpack.c.b16 %v4051, %v4049
    %v4210 = vpack.c.b16 %v4052, %v4050
    %v4211 = vpack.c.b16 %v4055, %v4053
    %v4212 = vpack.c.b16 %v4056, %v4054
    %v4213 = vpack.c.b16 %v4059, %v4057
    %v4214 = vpack.c.b16 %v4060, %v4058
    %v4215 = vpack.c.b16 %v4063, %v4061
    %v4216 = vpack.c.b16 %v4064, %v4062
    %v4217 = vpack.c.b16 %v4067, %v4065
    %v4218 = vpack.c.b16 %v4068, %v4066
    %v4219 = vpack.c.b16 %v4071, %v4069
    %v4220 = vpack.c.b16 %v4072, %v4070
    %v4221 = vpack.c.b16 %v4075, %v4073
    %v4222 = vpack.c.b16 %v4076, %v4074
    %v4223 = vpack.c.b16 %v4079, %v4077
    %v4224 = vpack.c.b16 %v4080, %v4078
    %v4225 = vpack.c.b16 %v4083, %v4081
    %v4226 = vpack.c.b16 %v4084, %v4082
    %v4227 = vpack.c.b16 %v4087, %v4085
    %v4228 = vpack.c.b16 %v4088, %v4086
    %v4229 = vpack.c.b16 %v4091, %v4089
    %v4230 = vpack.c.b16 %v4092, %v4090
    %v4231 = vpack.c.b16 %v4095, %v4093
    %v4232 = vpack.c.b16 %v4096, %v4094
    %v4233 = vpack.c.b16 %v4099, %v4097
    %v4234 = vpack.c.b16 %v4100, %v4098
    %v4235 = vpack.c.b16 %v4103, %v4101
    %v4236 = vpack.c.b16 %v4104, %v4102
    %v4237 = vpack.c.b16 %v4107, %v4105
    %v4238 = vpack.c.b16 %v4108, %v4106
    %v4239 = vpack.c.b16 %v4111, %v4109
    %v4240 = vpack.c.b16 %v4112, %v4110
    %4369 = vmatprep.subr.bf16.mxu0 %v4128
    %4370 = vmatpush1.bf16.msra.mxu0 %v4127
    %4371 = vmatprep.subr.bf16.mxu0 %v4126
    %4372 = vmatpush1.bf16.msra.mxu0 %v4125
    %4373 = vmatprep.subr.bf16.mxu0 %v4124
    %4374 = vmatpush1.bf16.msra.mxu0 %v4123
    %4375 = vmatprep.subr.bf16.mxu0 %v4122
    %4376 = vmatpush1.bf16.msra.mxu0 %v4121
    %4377 = vmatprep.subr.bf16.mxu0 %v4120
    %4378 = vmatpush1.bf16.msra.mxu0 %v4119
    %4379 = vmatprep.subr.bf16.mxu0 %v4118
    %4380 = vmatpush1.bf16.msra.mxu0 %v4117
    %4381 = vmatprep.subr.bf16.mxu0 %v4116
    %4382 = vmatpush1.bf16.msra.mxu0 %v4115
    %4383 = vmatprep.subr.bf16.mxu0 %v4114
    %4384 = vmatpush1.bf16.msra.mxu0 %v4113
    %4385 = vmatprep.subr.bf16.mxu0 %v4144
    %4386 = vmatpush2.bf16.msra.mxu0 %v4143
    %4387 = vmatprep.subr.bf16.mxu0 %v4142
    %4388 = vmatpush2.bf16.msra.mxu0 %v4141
    %4389 = vmatprep.subr.bf16.mxu0 %v4140
    %4390 = vmatpush2.bf16.msra.mxu0 %v4139
    %4391 = vmatprep.subr.bf16.mxu0 %v4138
    %4392 = vmatpush2.bf16.msra.mxu0 %v4137
    %4393 = vmatprep.subr.bf16.mxu0 %v4136
    %4394 = vmatpush2.bf16.msra.mxu0 %v4135
    %4395 = vmatprep.subr.bf16.mxu0 %v4134
    %4396 = vmatpush2.bf16.msra.mxu0 %v4133
    %4397 = vmatprep.subr.bf16.mxu0 %v4132
    %4398 = vmatpush2.bf16.msra.mxu0 %v4131
    %4399 = vmatprep.subr.bf16.mxu0 %v4130
    %4400 = vmatpush2.bf16.msra.mxu0 %v4129
    %4401 = vmatprep.mubr.bf16.mxu0 %v3582
    %4402 = vmatmul.mubr.bf16.gmra.mxu0 %v3581
    %v4403 = vpop.f32.mrf.mxu0
    %v4404 = vadd.f32 %v3722, %v4403
    %v4405 = vpop.f32.mrf.mxu0
    %v4406 = vadd.f32 %v3726, %v4405
    %v4407 = vpop.f32.mrf.mxu0
    %v4408 = vadd.f32 %v3722, %v4407
    %v4409 = vpop.f32.mrf.mxu0
    %v4410 = vadd.f32 %v3726, %v4409
    %4411 = vdwg.mxu0
    %4412 = vmatprep.subr.bf16.mxu0 %v4160
    %4413 = vmatpush1.bf16.msra.mxu0 %v4159
    %4414 = vmatprep.subr.bf16.mxu0 %v4158
    %4415 = vmatpush1.bf16.msra.mxu0 %v4157
    %4416 = vmatprep.subr.bf16.mxu0 %v4156
    %4417 = vmatpush1.bf16.msra.mxu0 %v4155
    %4418 = vmatprep.subr.bf16.mxu0 %v4154
    %4419 = vmatpush1.bf16.msra.mxu0 %v4153
    %4420 = vmatprep.subr.bf16.mxu0 %v4152
    %4421 = vmatpush1.bf16.msra.mxu0 %v4151
    %4422 = vmatprep.subr.bf16.mxu0 %v4150
    %4423 = vmatpush1.bf16.msra.mxu0 %v4149
    %4424 = vmatprep.subr.bf16.mxu0 %v4148
    %4425 = vmatpush1.bf16.msra.mxu0 %v4147
    %4426 = vmatprep.subr.bf16.mxu0 %v4146
    %4427 = vmatpush1.bf16.msra.mxu0 %v4145
    %4428 = vmatprep.subr.bf16.mxu0 %v4176
    %4429 = vmatpush2.bf16.msra.mxu0 %v4175
    %4430 = vmatprep.subr.bf16.mxu0 %v4174
    %4431 = vmatpush2.bf16.msra.mxu0 %v4173
    %4432 = vmatprep.subr.bf16.mxu0 %v4172
    %4433 = vmatpush2.bf16.msra.mxu0 %v4171
    %4434 = vmatprep.subr.bf16.mxu0 %v4170
    %4435 = vmatpush2.bf16.msra.mxu0 %v4169
    %4436 = vmatprep.subr.bf16.mxu0 %v4168
    %4437 = vmatpush2.bf16.msra.mxu0 %v4167
    %4438 = vmatprep.subr.bf16.mxu0 %v4166
    %4439 = vmatpush2.bf16.msra.mxu0 %v4165
    %4440 = vmatprep.subr.bf16.mxu0 %v4164
    %4441 = vmatpush2.bf16.msra.mxu0 %v4163
    %4442 = vmatprep.subr.bf16.mxu0 %v4162
    %4443 = vmatpush2.bf16.msra.mxu0 %v4161
    %4444 = vmatprep.mubr.bf16.mxu0 %v3584
    %4445 = vmatmul.mubr.bf16.gmra.mxu0 %v3583
    %v4446 = vpop.f32.mrf.mxu0
    %v4447 = vadd.f32 %v4404, %v4446
    %v4448 = vpop.f32.mrf.mxu0
    %v4449 = vadd.f32 %v4406, %v4448
    %v4450 = vpop.f32.mrf.mxu0
    %v4451 = vadd.f32 %v4408, %v4450
    %v4452 = vpop.f32.mrf.mxu0
    %v4453 = vadd.f32 %v4410, %v4452
    %4454 = vdwg.mxu0
    %4455 = vmatprep.subr.bf16.mxu0 %v4192
    %4456 = vmatpush1.bf16.msra.mxu0 %v4191
    %4457 = vmatprep.subr.bf16.mxu0 %v4190
    %4458 = vmatpush1.bf16.msra.mxu0 %v4189
    %4459 = vmatprep.subr.bf16.mxu0 %v4188
    %4460 = vmatpush1.bf16.msra.mxu0 %v4187
    %4461 = vmatprep.subr.bf16.mxu0 %v4186
    %4462 = vmatpush1.bf16.msra.mxu0 %v4185
    %4463 = vmatprep.subr.bf16.mxu0 %v4184
    %4464 = vmatpush1.bf16.msra.mxu0 %v4183
    %4465 = vmatprep.subr.bf16.mxu0 %v4182
    %4466 = vmatpush1.bf16.msra.mxu0 %v4181
    %4467 = vmatprep.subr.bf16.mxu0 %v4180
    %4468 = vmatpush1.bf16.msra.mxu0 %v4179
    %4469 = vmatprep.subr.bf16.mxu0 %v4178
    %4470 = vmatpush1.bf16.msra.mxu0 %v4177
    %4471 = vmatprep.subr.bf16.mxu0 %v4208
    %4472 = vmatpush2.bf16.msra.mxu0 %v4207
    %4473 = vmatprep.subr.bf16.mxu0 %v4206
    %4474 = vmatpush2.bf16.msra.mxu0 %v4205
    %4475 = vmatprep.subr.bf16.mxu0 %v4204
    %4476 = vmatpush2.bf16.msra.mxu0 %v4203
    %4477 = vmatprep.subr.bf16.mxu0 %v4202
    %4478 = vmatpush2.bf16.msra.mxu0 %v4201
    %4479 = vmatprep.subr.bf16.mxu0 %v4200
    %4480 = vmatpush2.bf16.msra.mxu0 %v4199
    %4481 = vmatprep.subr.bf16.mxu0 %v4198
    %4482 = vmatpush2.bf16.msra.mxu0 %v4197
    %4483 = vmatprep.subr.bf16.mxu0 %v4196
    %4484 = vmatpush2.bf16.msra.mxu0 %v4195
    %4485 = vmatprep.subr.bf16.mxu0 %v4194
    %4486 = vmatpush2.bf16.msra.mxu0 %v4193
    %4487 = vmatprep.mubr.bf16.mxu0 %v3586
    %4488 = vmatmul.mubr.bf16.gmra.mxu0 %v3585
    %v4489 = vpop.f32.mrf.mxu0
    %v4490 = vadd.f32 %v4447, %v4489
    %v4491 = vpop.f32.mrf.mxu0
    %v4492 = vadd.f32 %v4449, %v4491
    %v4493 = vpop.f32.mrf.mxu0
    %v4494 = vadd.f32 %v4451, %v4493
    %v4495 = vpop.f32.mrf.mxu0
    %v4496 = vadd.f32 %v4453, %v4495
    %4497 = vdwg.mxu0
    %4498 = vmatprep.subr.bf16.mxu0 %v4224
    %4499 = vmatpush1.bf16.msra.mxu0 %v4223
    %4500 = vmatprep.subr.bf16.mxu0 %v4222
    %4501 = vmatpush1.bf16.msra.mxu0 %v4221
    %4502 = vmatprep.subr.bf16.mxu0 %v4220
    %4503 = vmatpush1.bf16.msra.mxu0 %v4219
    %4504 = vmatprep.subr.bf16.mxu0 %v4218
    %4505 = vmatpush1.bf16.msra.mxu0 %v4217
    %4506 = vmatprep.subr.bf16.mxu0 %v4216
    %4507 = vmatpush1.bf16.msra.mxu0 %v4215
    %4508 = vmatprep.subr.bf16.mxu0 %v4214
    %4509 = vmatpush1.bf16.msra.mxu0 %v4213
    %4510 = vmatprep.subr.bf16.mxu0 %v4212
    %4511 = vmatpush1.bf16.msra.mxu0 %v4211
    %4512 = vmatprep.subr.bf16.mxu0 %v4210
    %4513 = vmatpush1.bf16.msra.mxu0 %v4209
    %4514 = vmatprep.subr.bf16.mxu0 %v4240
    %4515 = vmatpush2.bf16.msra.mxu0 %v4239
    %4516 = vmatprep.subr.bf16.mxu0 %v4238
    %4517 = vmatpush2.bf16.msra.mxu0 %v4237
    %4518 = vmatprep.subr.bf16.mxu0 %v4236
    %4519 = vmatpush2.bf16.msra.mxu0 %v4235
    %4520 = vmatprep.subr.bf16.mxu0 %v4234
    %4521 = vmatpush2.bf16.msra.mxu0 %v4233
    %4522 = vmatprep.subr.bf16.mxu0 %v4232
    %4523 = vmatpush2.bf16.msra.mxu0 %v4231
    %4524 = vmatprep.subr.bf16.mxu0 %v4230
    %4525 = vmatpush2.bf16.msra.mxu0 %v4229
    %4526 = vmatprep.subr.bf16.mxu0 %v4228
    %4527 = vmatpush2.bf16.msra.mxu0 %v4227
    %4528 = vmatprep.subr.bf16.mxu0 %v4226
    %4529 = vmatpush2.bf16.msra.mxu0 %v4225
    %4530 = vmatprep.mubr.bf16.mxu0 %v3588
    %4531 = vmatmul.mubr.bf16.gmra.mxu0 %v3587
    %v4532 = vpop.f32.mrf.mxu0
    %v4533 = vadd.f32 %v4490, %v4532
    %v4534 = vpop.f32.mrf.mxu0
    %v4535 = vadd.f32 %v4492, %v4534
    %v4536 = vpop.f32.mrf.mxu0
    %v4537 = vadd.f32 %v4494, %v4536
    %v4538 = vpop.f32.mrf.mxu0
    %v4539 = vadd.f32 %v4496, %v4538
    %4540 = vdwg.mxu0
    %v4541 = vmax.f32 %v4533, 0.0
    %v4542 = vmax.f32 %v4535, 0.0
    %v4543 = vmax.f32 %v4537, 0.0
    %v4544 = vmax.f32 %v4539, 0.0
    %v4545 = vpack.c.bf16 %v4543, %v4541
    %v4546 = vpack.c.bf16 %v4544, %v4542
    %v4547 = vld [vmem:[#allocation9] sm:$0xf]
    %v4548 = vld [vmem:[#allocation9 + $0x4] sm:$0xf]
    %v4549 = vld [vmem:[#allocation9 + $0x8] sm:$0xf]
    %v4550 = vld [vmem:[#allocation9 + $0xc] sm:$0xf]
    %v4551 = vld [vmem:[#allocation9 + $0x10] sm:$0xf]
    %v4552 = vld [vmem:[#allocation9 + $0x14] sm:$0xf]
    %v4553 = vld [vmem:[#allocation9 + $0x18] sm:$0xf]
    %v4554 = vld [vmem:[#allocation9 + $0x1c] sm:$0xf]
    %v4555 = vld [vmem:[#allocation9 + $0x20] sm:$0xf]
    %v4556 = vld [vmem:[#allocation9 + $0x24] sm:$0xf]
    %v4557 = vld [vmem:[#allocation9 + $0x28] sm:$0xf]
    %v4558 = vld [vmem:[#allocation9 + $0x2c] sm:$0xf]
    %v4559 = vld [vmem:[#allocation9 + $0x30] sm:$0xf]
    %v4560 = vld [vmem:[#allocation9 + $0x34] sm:$0xf]
    %v4561 = vld [vmem:[#allocation9 + $0x38] sm:$0xf]
    %v4562 = vld [vmem:[#allocation9 + $0x3c] sm:$0xf]
    %v4563 = vld [vmem:[#allocation9 + $0x40] sm:$0xf]
    %v4564 = vld [vmem:[#allocation9 + $0x44] sm:$0xf]
    %v4565 = vld [vmem:[#allocation9 + $0x48] sm:$0xf]
    %v4566 = vld [vmem:[#allocation9 + $0x4c] sm:$0xf]
    %v4567 = vld [vmem:[#allocation9 + $0x50] sm:$0xf]
    %v4568 = vld [vmem:[#allocation9 + $0x54] sm:$0xf]
    %v4569 = vld [vmem:[#allocation9 + $0x58] sm:$0xf]
    %v4570 = vld [vmem:[#allocation9 + $0x5c] sm:$0xf]
    %v4571 = vld [vmem:[#allocation9 + $0x60] sm:$0xf]
    %v4572 = vld [vmem:[#allocation9 + $0x64] sm:$0xf]
    %v4573 = vld [vmem:[#allocation9 + $0x68] sm:$0xf]
    %v4574 = vld [vmem:[#allocation9 + $0x6c] sm:$0xf]
    %v4575 = vld [vmem:[#allocation9 + $0x70] sm:$0xf]
    %v4576 = vld [vmem:[#allocation9 + $0x74] sm:$0xf]
    %v4577 = vld [vmem:[#allocation9 + $0x78] sm:$0xf]
    %v4578 = vld [vmem:[#allocation9 + $0x7c] sm:$0xf]
    %v4579 = vld [vmem:[#allocation10] sm:$0x1]
    %v4581 = vlaneseq
    %v4582 = vshrl.u32 %v4581, 7
    %v4583 = vsub.s32 0, %v4582
    %v4584 = vrot.slane %v4579, %v4583
    %v4618 = vunpack.c.l.b16 %v4547
    %v4619 = vunpack.c.l.b16 %v4548
    %v4620 = vunpack.c.l.b16 %v4549
    %v4621 = vunpack.c.l.b16 %v4550
    %v4622 = vunpack.c.l.b16 %v4551
    %v4623 = vunpack.c.l.b16 %v4552
    %v4624 = vunpack.c.l.b16 %v4553
    %v4625 = vunpack.c.l.b16 %v4554
    %v4626 = vunpack.c.l.b16 %v4555
    %v4627 = vunpack.c.l.b16 %v4556
    %v4628 = vunpack.c.l.b16 %v4557
    %v4629 = vunpack.c.l.b16 %v4558
    %v4630 = vunpack.c.l.b16 %v4559
    %v4631 = vunpack.c.l.b16 %v4560
    %v4632 = vunpack.c.l.b16 %v4561
    %v4633 = vunpack.c.l.b16 %v4562
    %v4634 = vunpack.c.l.b16 %v4563
    %v4635 = vunpack.c.l.b16 %v4564
    %v4636 = vunpack.c.l.b16 %v4565
    %v4637 = vunpack.c.l.b16 %v4566
    %v4638 = vunpack.c.l.b16 %v4567
    %v4639 = vunpack.c.l.b16 %v4568
    %v4640 = vunpack.c.l.b16 %v4569
    %v4641 = vunpack.c.l.b16 %v4570
    %v4642 = vunpack.c.l.b16 %v4571
    %v4643 = vunpack.c.l.b16 %v4572
    %v4644 = vunpack.c.l.b16 %v4573
    %v4645 = vunpack.c.l.b16 %v4574
    %v4646 = vunpack.c.l.b16 %v4575
    %v4647 = vunpack.c.l.b16 %v4576
    %v4648 = vunpack.c.l.b16 %v4577
    %v4649 = vunpack.c.l.b16 %v4578
    %v4650 = vpack.c.b16 %v4619, %v4618
    %v4651 = vpack.c.b16 %v4621, %v4620
    %v4652 = vpack.c.b16 %v4623, %v4622
    %v4653 = vpack.c.b16 %v4625, %v4624
    %v4654 = vpack.c.b16 %v4627, %v4626
    %v4655 = vpack.c.b16 %v4629, %v4628
    %v4656 = vpack.c.b16 %v4631, %v4630
    %v4657 = vpack.c.b16 %v4633, %v4632
    %v4658 = vpack.c.b16 %v4635, %v4634
    %v4659 = vpack.c.b16 %v4637, %v4636
    %v4660 = vpack.c.b16 %v4639, %v4638
    %v4661 = vpack.c.b16 %v4641, %v4640
    %v4662 = vpack.c.b16 %v4643, %v4642
    %v4663 = vpack.c.b16 %v4645, %v4644
    %v4664 = vpack.c.b16 %v4647, %v4646
    %v4665 = vpack.c.b16 %v4649, %v4648
    %4682 = vmatprep.subr.bf16.mxu0 0
    %4683 = vmatpush1.bf16.msra.mxu0 %v4657
    %4684 = vmatprep.subr.bf16.mxu0 0
    %4685 = vmatpush1.bf16.msra.mxu0 %v4656
    %4686 = vmatprep.subr.bf16.mxu0 0
    %4687 = vmatpush1.bf16.msra.mxu0 %v4655
    %4688 = vmatprep.subr.bf16.mxu0 0
    %4689 = vmatpush1.bf16.msra.mxu0 %v4654
    %4690 = vmatprep.subr.bf16.mxu0 0
    %4691 = vmatpush1.bf16.msra.mxu0 %v4653
    %4692 = vmatprep.subr.bf16.mxu0 0
    %4693 = vmatpush1.bf16.msra.mxu0 %v4652
    %4694 = vmatprep.subr.bf16.mxu0 0
    %4695 = vmatpush1.bf16.msra.mxu0 %v4651
    %4696 = vmatprep.subr.bf16.mxu0 0
    %4697 = vmatpush1.bf16.msra.mxu0 %v4650
    %4698 = vmatprep.subr.bf16.mxu0 0
    %4699 = vmatpush2.bf16.msra.mxu0 %v4665
    %4700 = vmatprep.subr.bf16.mxu0 0
    %4701 = vmatpush2.bf16.msra.mxu0 %v4664
    %4702 = vmatprep.subr.bf16.mxu0 0
    %4703 = vmatpush2.bf16.msra.mxu0 %v4663
    %4704 = vmatprep.subr.bf16.mxu0 0
    %4705 = vmatpush2.bf16.msra.mxu0 %v4662
    %4706 = vmatprep.subr.bf16.mxu0 0
    %4707 = vmatpush2.bf16.msra.mxu0 %v4661
    %4708 = vmatprep.subr.bf16.mxu0 0
    %4709 = vmatpush2.bf16.msra.mxu0 %v4660
    %4710 = vmatprep.subr.bf16.mxu0 0
    %4711 = vmatpush2.bf16.msra.mxu0 %v4659
    %4712 = vmatprep.subr.bf16.mxu0 0
    %4713 = vmatpush2.bf16.msra.mxu0 %v4658
    %4714 = vmatprep.mubr.bf16.mxu0 %v4546
    %4715 = vmatmul.mubr.bf16.gmra.mxu0 %v4545
    %v4716 = vpop.f32.mrf.mxu0
    %v4717 = vadd.f32 %v4584, %v4716
    %v4718 = vpop.f32.mrf.mxu0
    %v4719 = vpop.f32.mrf.mxu0
    %v4720 = vadd.f32 %v4584, %v4719
    %v4721 = vpop.f32.mrf.mxu0
    %4722 = vdwg.mxu0
    %4723 = vmax.xlane.f32.xlu0 %v4717
    %v4724 = vpop.xlane.xlu0 %4723
    %4725 = vmax.xlane.f32.xlu0 %v4720
    %v4726 = vpop.xlane.xlu0 %4725
    %v4727 = vsub.f32 %v4717, %v4724
    %v4728 = vsub.f32 %v4720, %v4726
    %v4729 = vmul.f32 %v4727, 1.442695
    %v4730 = vpow.pop %v4729
    %v4731 = vmul.f32 %v4728, 1.442695
    %v4732 = vpow.pop %v4731
    %4733 = vadd.xlane.f32.xlu0 %v4730
    %v4734 = vpop.xlane.xlu0 %4733
    %4735 = vadd.xlane.f32.xlu0 %v4732
    %v4736 = vpop.xlane.xlu0 %4735
    %v4737 = vlog2.pop %v4734
    %v4738 = vmul.f32 %v4737, 0.6931472
    %v4739 = vlog2.pop %v4736
    %v4740 = vmul.f32 %v4739, 0.6931472
    %v4741 = vsub.f32 %v4727, %v4738
    %v4742 = vsub.f32 %v4728, %v4740
    %4743 = vst [vmem:[%s7] sm:$0xff] %v4741
    %4744 = vst [vmem:[%s7 + $0x8] sm:$0xff] %v4742
    // Predicated region
    $region54: #{mlp_forward.1} parent=1 // pred_check
      _
    $region55: #{mlp_forward.1} parent=1 // pred_check_branch
      %4746 = sbr.rel (0) target = $region57
    $region56: #{mlp_forward.1} parent=1 // pred_region
      _
    $region57: #{mlp_forward.1} parent=1 // pred_fallthru
      _
    // Predicated region
    $region58: #{mlp_forward.1} parent=1 // pred_check
      _
    $region59: #{mlp_forward.1} parent=1 // pred_check_branch
      %4748 = sbr.rel (0) target = $region61
    $region60: #{mlp_forward.1} parent=1 // pred_region
      _
    $region61: #{mlp_forward.1} parent=1 // pred_fallthru
      _
    %4749 = vsyncpa [#allocation3], 1
    %4750 = vsyncpa [#allocation5], 1
    %4751 = vsyncpa [#allocation8], 1
    %4752 = vsyncpa [#allocation11], 1

</llo_original>
